<compile_context>
chip_gen: v7x
topology: tpu7x:2x2x1
jax: 0.10.0
libtpu: 0.0.40
codegen_flags: <defaults>
</compile_context>

<pallas_src>
import functools

import jax
import jax.numpy as jnp
from jax.experimental import pallas as pl
from jax.experimental.pallas import tpu as pltpu


# ------------------------------ fused kernel --------------------------------

def _basic_block_kernel(x_ref, w1_ref, b1_ref, w2_ref, b2_ref, o_ref,
                        pad_ref, col_ref, *, H, W, C, mxu_dtype):
    """One batch element:  out = relu(bn2(conv2(relu(bn1(conv1(x))))) + x)."""
    Co = C  # inplanes == planes for the default BasicBlock configuration

    # Scratch is not zero-initialised: clear the halo buffer so the 3x3 conv
    # sees zero padding.  Must run every grid step (with "parallel" semantics
    # different cores may execute different steps); the fill is a cheap VPU op.
    pad_ref[...] = jnp.zeros_like(pad_ref)

    x = x_ref[...].reshape(H, W, C)          # f32 activation tile (one image)

    def conv3x3_bn(w_ref, b_ref):
        # im2col: 9 statically shifted (H, W, C) views of the padded buffer are
        # laid side by side along the lane dim of col_ref -> ONE MXU matmul
        # with K = 9*C (instead of 9 degenerate K=C matmuls + 8 VPU adds).
        for dh in range(3):
            for dw in range(3):
                t = dh * 3 + dw
                col_ref[:, :, t * C:(t + 1) * C] = pad_ref[dh:dh + H, dw:dw + W, :]
        # bf16 (or f32) MXU inputs, f32 accumulation; the BN scale is already
        # folded into the weight columns, the BN shift is the f32 bias here.
        col = col_ref[...].reshape(H * W, 9 * C).astype(mxu_dtype)
        acc = jnp.dot(col, w_ref[...], preferred_element_type=jnp.float32)
        return acc + b_ref[...]              # (H*W, Co) f32 epilogue

    # ---- conv1 + bn1 + relu ----
    pad_ref[1:H + 1, 1:W + 1, :] = x
    h1 = jnp.maximum(conv3x3_bn(w1_ref, b1_ref), 0.0)

    # ---- conv2 + bn2 + residual-add + relu (h1 never touches HBM) ----
    pad_ref[1:H + 1, 1:W + 1, :] = h1.reshape(H, W, Co)
    h2 = conv3x3_bn(w2_ref, b2_ref) + x.reshape(H * W, C)
    o_ref[...] = jnp.maximum(h2, 0.0).reshape(1, H, W, Co)


# -------------------------------- wrapper ------------------------------------

def _fold_bn(gamma, beta, mean, var, eps=1e-5):
    scale = gamma / jnp.sqrt(var + eps)
    shift = beta - mean * scale
    return scale, shift


def _pack_weight(w_oihw, scale, mxu_dtype):
    """Torch (Cout, Cin, 3, 3) -> im2col (9*Cin, Cout) with the BN scale folded in."""
    co, ci = w_oihw.shape[0], w_oihw.shape[1]
    w = jnp.transpose(w_oihw, (2, 3, 1, 0)).reshape(9 * ci, co)   # (kh,kw,ci) major
    return (w.astype(jnp.float32) * scale[None, :]).astype(mxu_dtype)


def basic_block_forward(x_nchw, params, *, mxu_dtype=jnp.bfloat16, eps=1e-5):
    """Pallas TPU implementation of BasicBlock.forward (stride=1, downsample=None)."""
    B, C, H, W = x_nchw.shape
    Co = params["w1"].shape[0]
    assert Co == C, "stride=1 / no-downsample BasicBlock requires inplanes == planes"

    s1, b1 = _fold_bn(*params["bn1"], eps=eps)
    s2, b2 = _fold_bn(*params["bn2"], eps=eps)
    w1 = _pack_weight(params["w1"], s1, mxu_dtype)            # (9*C, Co)
    w2 = _pack_weight(params["w2"], s2, mxu_dtype)            # (9*Co, Co)
    b1 = b1.reshape(1, Co).astype(jnp.float32)
    b2 = b2.reshape(1, Co).astype(jnp.float32)

    x_nhwc = jnp.transpose(x_nchw, (0, 2, 3, 1)).astype(jnp.float32)   # NCHW -> NHWC

    kernel = functools.partial(_basic_block_kernel, H=H, W=W, C=C, mxu_dtype=mxu_dtype)

    flops = 2 * 2 * B * H * W * 9 * C * Co                    # two convs, 2*M*K*N each
    bytes_accessed = (
        x_nhwc.size * 4 + B * H * W * Co * 4
        + w1.size * w1.dtype.itemsize + w2.size * w2.dtype.itemsize
        + (b1.size + b2.size) * 4)

    out = pl.pallas_call(
        kernel,
        out_shape=jax.ShapeDtypeStruct((B, H, W, Co), jnp.float32),
        grid=(B,),
        in_specs=[
            pl.BlockSpec((1, H, W, C), lambda b: (b, 0, 0, 0)),   # per-image tile
            pl.BlockSpec((9 * C, Co), lambda b: (0, 0)),          # resident weights 1
            pl.BlockSpec((1, Co), lambda b: (0, 0)),              # resident bn1 shift
            pl.BlockSpec((9 * Co, Co), lambda b: (0, 0)),         # resident weights 2
            pl.BlockSpec((1, Co), lambda b: (0, 0)),              # resident bn2 shift
        ],
        out_specs=pl.BlockSpec((1, H, W, Co), lambda b: (b, 0, 0, 0)),
        scratch_shapes=[
            pltpu.VMEM((H + 2, W + 2, C), jnp.float32),   # zero-padded halo buf (x, then h1)
            pltpu.VMEM((H, W, 9 * C), jnp.float32),       # im2col buf (shared by both convs)
        ],
        compiler_params=pltpu.CompilerParams(
            # Shards the batch grid across v7x's 2 TensorCores; no-op on v5e/v6e.
            dimension_semantics=("parallel",),
        ),
        cost_estimate=pl.CostEstimate(
            flops=flops, transcendentals=0, bytes_accessed=bytes_accessed),
    )(x_nhwc, w1, b1, w2, b2)

    return jnp.transpose(out, (0, 3, 1, 2))                   # NHWC -> NCHW


# --------------------------- pure-JAX reference ------------------------------

def _ref_basic_block(x_nchw, params, eps=1e-5):
    def conv(x, w):
        return jax.lax.conv_general_dilated(
            x, w, window_strides=(1, 1), padding=((1, 1), (1, 1)),
            dimension_numbers=("NCHW", "OIHW", "NCHW"))

    def bn(x, g, b, m, v):
        g, b, m, v = (a[None, :, None, None] for a in (g, b, m, v))
        return (x - m) / jnp.sqrt(v + eps) * g + b

    out = jax.nn.relu(bn(conv(x_nchw, params["w1"]), *params["bn1"]))
    out = bn(conv(out, params["w2"]), *params["bn2"]) + x_nchw
    return jax.nn.relu(out)


# --------------------------------- main --------------------------------------

if __name__ == "__main__":
    B, Cin, H, W = 2, 4, 16, 16        # inplanes = planes = 4, stride = 1
    planes = Cin

    key = jax.random.PRNGKey(0)
    k = jax.random.split(key, 10)
    params = {
        "w1": 0.1 * jax.random.normal(k[0], (planes, Cin, 3, 3), jnp.float32),
        "w2": 0.1 * jax.random.normal(k[1], (planes, planes, 3, 3), jnp.float32),
        "bn1": (
            1.0 + 0.1 * jax.random.normal(k[2], (planes,), jnp.float32),   # gamma
            0.1 * jax.random.normal(k[3], (planes,), jnp.float32),         # beta
            0.1 * jax.random.normal(k[4], (planes,), jnp.float32),         # running_mean
            0.5 + jax.random.uniform(k[5], (planes,), jnp.float32),        # running_var
        ),
        "bn2": (
            1.0 + 0.1 * jax.random.normal(k[6], (planes,), jnp.float32),
            0.1 * jax.random.normal(k[7], (planes,), jnp.float32),
            0.1 * jax.random.normal(k[8], (planes,), jnp.float32),
            0.5 + jax.random.uniform(k[9], (planes,), jnp.float32),
        ),
    }
    x = jax.random.normal(jax.random.PRNGKey(42), (B, Cin, H, W), jnp.float32)

    ref = jax.block_until_ready(_ref_basic_block(x, params))

    # Exact path: f32 MXU inputs -> must match the XLA reference tightly.
    out_f32 = jax.block_until_ready(
        basic_block_forward(x, params, mxu_dtype=jnp.float32))
    assert out_f32.shape == (B, planes, H, W)
    assert jnp.allclose(out_f32, ref, atol=1e-4, rtol=1e-4), "f32 path mismatch"

    # Fast path (default): bf16 MXU inputs, f32 accumulation + f32 epilogue.
    # Typical max |err| is ~1e-2 from bf16 input rounding; tolerance sized for that.
    out_bf16 = jax.block_until_ready(basic_block_forward(x, params))
    assert out_bf16.shape == (B, planes, H, W)
    assert jnp.allclose(out_bf16, ref, atol=1e-1, rtol=1e-1), "bf16 path mismatch"

    print("KERNEL_OK")
</pallas_src>

<mosaic_0001>
module attributes {stable_mosaic.version = 11 : i64} {
  func.func @_basic_block_kernel(%arg0: i32, %arg1: memref<1x16x16x4xf32, #tpu.memory_space<vmem>>, %arg2: memref<36x4xf32, #tpu.memory_space<vmem>>, %arg3: memref<1x4xf32, #tpu.memory_space<vmem>>, %arg4: memref<36x4xf32, #tpu.memory_space<vmem>>, %arg5: memref<1x4xf32, #tpu.memory_space<vmem>>, %arg6: memref<1x16x16x4xf32, #tpu.memory_space<vmem>>, %arg7: memref<18x18x4xf32, #tpu.memory_space<vmem>>, %arg8: memref<16x16x36xf32, #tpu.memory_space<vmem>>) attributes {dimension_semantics = [#tpu.dimension_semantics<parallel>], iteration_bounds = array<i64: 2>, scalar_prefetch = 0 : i64, scratch_operands = 2 : i64, tpu.core_type = #tpu.core_type<tc>, window_params = [{transform_indices = @transform_0, window_bounds = array<i64: 1, 16, 16, 4>}, {pipeline_mode = #tpu.pipeline_mode<synchronous>, transform_indices = @transform_1, window_bounds = array<i64: 36, 4>}, {pipeline_mode = #tpu.pipeline_mode<synchronous>, transform_indices = @transform_2, window_bounds = array<i64: 1, 4>}, {pipeline_mode = #tpu.pipeline_mode<synchronous>, transform_indices = @transform_3, window_bounds = array<i64: 36, 4>}, {pipeline_mode = #tpu.pipeline_mode<synchronous>, transform_indices = @transform_4, window_bounds = array<i64: 1, 4>}, {transform_indices = @transform_5, window_bounds = array<i64: 1, 16, 16, 4>}]} {
    %cst = arith.constant 0.000000e+00 : f32
    %0 = vector.broadcast %cst : f32 to vector<18x18x4xf32>
    %c0 = arith.constant 0 : index
    %c0_0 = arith.constant 0 : index
    %c0_1 = arith.constant 0 : index
    %1 = vector.load %arg7[%c0, %c0_0, %c0_1] : memref<18x18x4xf32, #tpu.memory_space<vmem>>, vector<18x18x4xf32>
    tpu.vector_store %arg7[%c0, %c0_0, %c0_1], %0 {strides = array<i32>} : memref<18x18x4xf32, #tpu.memory_space<vmem>>, vector<18x18x4xf32>,
    %c0_2 = arith.constant 0 : index
    %c0_3 = arith.constant 0 : index
    %c0_4 = arith.constant 0 : index
    %c0_5 = arith.constant 0 : index
    %2 = vector.load %arg1[%c0_2, %c0_3, %c0_4, %c0_5] : memref<1x16x16x4xf32, #tpu.memory_space<vmem>>, vector<1x16x16x4xf32>
    %3 = vector.shape_cast %2 : vector<1x16x16x4xf32> to vector<16x16x4xf32>
    %c1 = arith.constant 1 : index
    %c1_6 = arith.constant 1 : index
    %c0_7 = arith.constant 0 : index
    %4 = vector.load %arg7[%c1, %c1_6, %c0_7] : memref<18x18x4xf32, #tpu.memory_space<vmem>>, vector<16x16x4xf32>
    tpu.vector_store %arg7[%c1, %c1_6, %c0_7], %3 {strides = array<i32>} : memref<18x18x4xf32, #tpu.memory_space<vmem>>, vector<16x16x4xf32>,
    %c0_8 = arith.constant 0 : index
    %c0_9 = arith.constant 0 : index
    %c0_10 = arith.constant 0 : index
    %5 = vector.load %arg7[%c0_8, %c0_9, %c0_10] : memref<18x18x4xf32, #tpu.memory_space<vmem>>, vector<16x16x4xf32>
    %c0_11 = arith.constant 0 : index
    %c0_12 = arith.constant 0 : index
    %c0_13 = arith.constant 0 : index
    %6 = vector.load %arg8[%c0_11, %c0_12, %c0_13] : memref<16x16x36xf32, #tpu.memory_space<vmem>>, vector<16x16x4xf32>
    tpu.vector_store %arg8[%c0_11, %c0_12, %c0_13], %5 {strides = array<i32>} : memref<16x16x36xf32, #tpu.memory_space<vmem>>, vector<16x16x4xf32>,
    %c0_14 = arith.constant 0 : index
    %c1_15 = arith.constant 1 : index
    %c0_16 = arith.constant 0 : index
    %7 = vector.load %arg7[%c0_14, %c1_15, %c0_16] : memref<18x18x4xf32, #tpu.memory_space<vmem>>, vector<16x16x4xf32>
    %c0_17 = arith.constant 0 : index
    %c0_18 = arith.constant 0 : index
    %c4 = arith.constant 4 : index
    %8 = vector.load %arg8[%c0_17, %c0_18, %c4] : memref<16x16x36xf32, #tpu.memory_space<vmem>>, vector<16x16x4xf32>
    tpu.vector_store %arg8[%c0_17, %c0_18, %c4], %7 {strides = array<i32>} : memref<16x16x36xf32, #tpu.memory_space<vmem>>, vector<16x16x4xf32>,
    %c0_19 = arith.constant 0 : index
    %c2 = arith.constant 2 : index
    %c0_20 = arith.constant 0 : index
    %9 = vector.load %arg7[%c0_19, %c2, %c0_20] : memref<18x18x4xf32, #tpu.memory_space<vmem>>, vector<16x16x4xf32>
    %c0_21 = arith.constant 0 : index
    %c0_22 = arith.constant 0 : index
    %c8 = arith.constant 8 : index
    %10 = vector.load %arg8[%c0_21, %c0_22, %c8] : memref<16x16x36xf32, #tpu.memory_space<vmem>>, vector<16x16x4xf32>
    tpu.vector_store %arg8[%c0_21, %c0_22, %c8], %9 {strides = array<i32>} : memref<16x16x36xf32, #tpu.memory_space<vmem>>, vector<16x16x4xf32>,
    %c1_23 = arith.constant 1 : index
    %c0_24 = arith.constant 0 : index
    %c0_25 = arith.constant 0 : index
    %11 = vector.load %arg7[%c1_23, %c0_24, %c0_25] : memref<18x18x4xf32, #tpu.memory_space<vmem>>, vector<16x16x4xf32>
    %c0_26 = arith.constant 0 : index
    %c0_27 = arith.constant 0 : index
    %c12 = arith.constant 12 : index
    %12 = vector.load %arg8[%c0_26, %c0_27, %c12] : memref<16x16x36xf32, #tpu.memory_space<vmem>>, vector<16x16x4xf32>
    tpu.vector_store %arg8[%c0_26, %c0_27, %c12], %11 {strides = array<i32>} : memref<16x16x36xf32, #tpu.memory_space<vmem>>, vector<16x16x4xf32>,
    %c1_28 = arith.constant 1 : index
    %c1_29 = arith.constant 1 : index
    %c0_30 = arith.constant 0 : index
    %13 = vector.load %arg7[%c1_28, %c1_29, %c0_30] : memref<18x18x4xf32, #tpu.memory_space<vmem>>, vector<16x16x4xf32>
    %c0_31 = arith.constant 0 : index
    %c0_32 = arith.constant 0 : index
    %c16 = arith.constant 16 : index
    %14 = vector.load %arg8[%c0_31, %c0_32, %c16] : memref<16x16x36xf32, #tpu.memory_space<vmem>>, vector<16x16x4xf32>
    tpu.vector_store %arg8[%c0_31, %c0_32, %c16], %13 {strides = array<i32>} : memref<16x16x36xf32, #tpu.memory_space<vmem>>, vector<16x16x4xf32>,
    %c1_33 = arith.constant 1 : index
    %c2_34 = arith.constant 2 : index
    %c0_35 = arith.constant 0 : index
    %15 = vector.load %arg7[%c1_33, %c2_34, %c0_35] : memref<18x18x4xf32, #tpu.memory_space<vmem>>, vector<16x16x4xf32>
    %c0_36 = arith.constant 0 : index
    %c0_37 = arith.constant 0 : index
    %c20 = arith.constant 20 : index
    %16 = vector.load %arg8[%c0_36, %c0_37, %c20] : memref<16x16x36xf32, #tpu.memory_space<vmem>>, vector<16x16x4xf32>
    tpu.vector_store %arg8[%c0_36, %c0_37, %c20], %15 {strides = array<i32>} : memref<16x16x36xf32, #tpu.memory_space<vmem>>, vector<16x16x4xf32>,
    %c2_38 = arith.constant 2 : index
    %c0_39 = arith.constant 0 : index
    %c0_40 = arith.constant 0 : index
    %17 = vector.load %arg7[%c2_38, %c0_39, %c0_40] : memref<18x18x4xf32, #tpu.memory_space<vmem>>, vector<16x16x4xf32>
    %c0_41 = arith.constant 0 : index
    %c0_42 = arith.constant 0 : index
    %c24 = arith.constant 24 : index
    %18 = vector.load %arg8[%c0_41, %c0_42, %c24] : memref<16x16x36xf32, #tpu.memory_space<vmem>>, vector<16x16x4xf32>
    tpu.vector_store %arg8[%c0_41, %c0_42, %c24], %17 {strides = array<i32>} : memref<16x16x36xf32, #tpu.memory_space<vmem>>, vector<16x16x4xf32>,
    %c2_43 = arith.constant 2 : index
    %c1_44 = arith.constant 1 : index
    %c0_45 = arith.constant 0 : index
    %19 = vector.load %arg7[%c2_43, %c1_44, %c0_45] : memref<18x18x4xf32, #tpu.memory_space<vmem>>, vector<16x16x4xf32>
    %c0_46 = arith.constant 0 : index
    %c0_47 = arith.constant 0 : index
    %c28 = arith.constant 28 : index
    %20 = vector.load %arg8[%c0_46, %c0_47, %c28] : memref<16x16x36xf32, #tpu.memory_space<vmem>>, vector<16x16x4xf32>
    tpu.vector_store %arg8[%c0_46, %c0_47, %c28], %19 {strides = array<i32>} : memref<16x16x36xf32, #tpu.memory_space<vmem>>, vector<16x16x4xf32>,
    %c2_48 = arith.constant 2 : index
    %c2_49 = arith.constant 2 : index
    %c0_50 = arith.constant 0 : index
    %21 = vector.load %arg7[%c2_48, %c2_49, %c0_50] : memref<18x18x4xf32, #tpu.memory_space<vmem>>, vector<16x16x4xf32>
    %c0_51 = arith.constant 0 : index
    %c0_52 = arith.constant 0 : index
    %c32 = arith.constant 32 : index
    %22 = vector.load %arg8[%c0_51, %c0_52, %c32] : memref<16x16x36xf32, #tpu.memory_space<vmem>>, vector<16x16x4xf32>
    tpu.vector_store %arg8[%c0_51, %c0_52, %c32], %21 {strides = array<i32>} : memref<16x16x36xf32, #tpu.memory_space<vmem>>, vector<16x16x4xf32>,
    %c0_53 = arith.constant 0 : index
    %c0_54 = arith.constant 0 : index
    %c0_55 = arith.constant 0 : index
    %23 = vector.load %arg8[%c0_53, %c0_54, %c0_55] : memref<16x16x36xf32, #tpu.memory_space<vmem>>, vector<16x16x36xf32>
    %24 = vector.shape_cast %23 : vector<16x16x36xf32> to vector<256x36xf32>
    %c0_56 = arith.constant 0 : index
    %c0_57 = arith.constant 0 : index
    %25 = vector.load %arg2[%c0_56, %c0_57] : memref<36x4xf32, #tpu.memory_space<vmem>>, vector<36x4xf32>
    %cst_58 = arith.constant dense<0.000000e+00> : vector<256x4xf32>
    %26 = tpu.matmul %24, %25, %cst_58 {dimension_numbers = #tpu.dot_dimension_numbers<[1], [0], [0], [1], [0, 0, 1, 1], [], []>} : vector<256x36xf32>, vector<36x4xf32>, vector<256x4xf32> -> vector<256x4xf32>
    %c0_59 = arith.constant 0 : index
    %c0_60 = arith.constant 0 : index
    %27 = vector.load %arg3[%c0_59, %c0_60] : memref<1x4xf32, #tpu.memory_space<vmem>>, vector<1x4xf32>
    %28 = vector.broadcast %27 : vector<1x4xf32> to vector<256x4xf32>
    %29 = arith.addf %26, %28 : vector<256x4xf32>
    %cst_61 = arith.constant 0.000000e+00 : f32
    %30 = vector.broadcast %cst_61 : f32 to vector<256x4xf32>
    %31 = arith.maximumf %29, %30 : vector<256x4xf32>
    %32 = vector.shape_cast %31 : vector<256x4xf32> to vector<16x16x4xf32>
    %c1_62 = arith.constant 1 : index
    %c1_63 = arith.constant 1 : index
    %c0_64 = arith.constant 0 : index
    %33 = vector.load %arg7[%c1_62, %c1_63, %c0_64] : memref<18x18x4xf32, #tpu.memory_space<vmem>>, vector<16x16x4xf32>
    tpu.vector_store %arg7[%c1_62, %c1_63, %c0_64], %32 {strides = array<i32>} : memref<18x18x4xf32, #tpu.memory_space<vmem>>, vector<16x16x4xf32>,
    %c0_65 = arith.constant 0 : index
    %c0_66 = arith.constant 0 : index
    %c0_67 = arith.constant 0 : index
    %34 = vector.load %arg7[%c0_65, %c0_66, %c0_67] : memref<18x18x4xf32, #tpu.memory_space<vmem>>, vector<16x16x4xf32>
    %c0_68 = arith.constant 0 : index
    %c0_69 = arith.constant 0 : index
    %c0_70 = arith.constant 0 : index
    %35 = vector.load %arg8[%c0_68, %c0_69, %c0_70] : memref<16x16x36xf32, #tpu.memory_space<vmem>>, vector<16x16x4xf32>
    tpu.vector_store %arg8[%c0_68, %c0_69, %c0_70], %34 {strides = array<i32>} : memref<16x16x36xf32, #tpu.memory_space<vmem>>, vector<16x16x4xf32>,
    %c0_71 = arith.constant 0 : index
    %c1_72 = arith.constant 1 : index
    %c0_73 = arith.constant 0 : index
    %36 = vector.load %arg7[%c0_71, %c1_72, %c0_73] : memref<18x18x4xf32, #tpu.memory_space<vmem>>, vector<16x16x4xf32>
    %c0_74 = arith.constant 0 : index
    %c0_75 = arith.constant 0 : index
    %c4_76 = arith.constant 4 : index
    %37 = vector.load %arg8[%c0_74, %c0_75, %c4_76] : memref<16x16x36xf32, #tpu.memory_space<vmem>>, vector<16x16x4xf32>
    tpu.vector_store %arg8[%c0_74, %c0_75, %c4_76], %36 {strides = array<i32>} : memref<16x16x36xf32, #tpu.memory_space<vmem>>, vector<16x16x4xf32>,
    %c0_77 = arith.constant 0 : index
    %c2_78 = arith.constant 2 : index
    %c0_79 = arith.constant 0 : index
    %38 = vector.load %arg7[%c0_77, %c2_78, %c0_79] : memref<18x18x4xf32, #tpu.memory_space<vmem>>, vector<16x16x4xf32>
    %c0_80 = arith.constant 0 : index
    %c0_81 = arith.constant 0 : index
    %c8_82 = arith.constant 8 : index
    %39 = vector.load %arg8[%c0_80, %c0_81, %c8_82] : memref<16x16x36xf32, #tpu.memory_space<vmem>>, vector<16x16x4xf32>
    tpu.vector_store %arg8[%c0_80, %c0_81, %c8_82], %38 {strides = array<i32>} : memref<16x16x36xf32, #tpu.memory_space<vmem>>, vector<16x16x4xf32>,
    %c1_83 = arith.constant 1 : index
    %c0_84 = arith.constant 0 : index
    %c0_85 = arith.constant 0 : index
    %40 = vector.load %arg7[%c1_83, %c0_84, %c0_85] : memref<18x18x4xf32, #tpu.memory_space<vmem>>, vector<16x16x4xf32>
    %c0_86 = arith.constant 0 : index
    %c0_87 = arith.constant 0 : index
    %c12_88 = arith.constant 12 : index
    %41 = vector.load %arg8[%c0_86, %c0_87, %c12_88] : memref<16x16x36xf32, #tpu.memory_space<vmem>>, vector<16x16x4xf32>
    tpu.vector_store %arg8[%c0_86, %c0_87, %c12_88], %40 {strides = array<i32>} : memref<16x16x36xf32, #tpu.memory_space<vmem>>, vector<16x16x4xf32>,
    %c1_89 = arith.constant 1 : index
    %c1_90 = arith.constant 1 : index
    %c0_91 = arith.constant 0 : index
    %42 = vector.load %arg7[%c1_89, %c1_90, %c0_91] : memref<18x18x4xf32, #tpu.memory_space<vmem>>, vector<16x16x4xf32>
    %c0_92 = arith.constant 0 : index
    %c0_93 = arith.constant 0 : index
    %c16_94 = arith.constant 16 : index
    %43 = vector.load %arg8[%c0_92, %c0_93, %c16_94] : memref<16x16x36xf32, #tpu.memory_space<vmem>>, vector<16x16x4xf32>
    tpu.vector_store %arg8[%c0_92, %c0_93, %c16_94], %42 {strides = array<i32>} : memref<16x16x36xf32, #tpu.memory_space<vmem>>, vector<16x16x4xf32>,
    %c1_95 = arith.constant 1 : index
    %c2_96 = arith.constant 2 : index
    %c0_97 = arith.constant 0 : index
    %44 = vector.load %arg7[%c1_95, %c2_96, %c0_97] : memref<18x18x4xf32, #tpu.memory_space<vmem>>, vector<16x16x4xf32>
    %c0_98 = arith.constant 0 : index
    %c0_99 = arith.constant 0 : index
    %c20_100 = arith.constant 20 : index
    %45 = vector.load %arg8[%c0_98, %c0_99, %c20_100] : memref<16x16x36xf32, #tpu.memory_space<vmem>>, vector<16x16x4xf32>
    tpu.vector_store %arg8[%c0_98, %c0_99, %c20_100], %44 {strides = array<i32>} : memref<16x16x36xf32, #tpu.memory_space<vmem>>, vector<16x16x4xf32>,
    %c2_101 = arith.constant 2 : index
    %c0_102 = arith.constant 0 : index
    %c0_103 = arith.constant 0 : index
    %46 = vector.load %arg7[%c2_101, %c0_102, %c0_103] : memref<18x18x4xf32, #tpu.memory_space<vmem>>, vector<16x16x4xf32>
    %c0_104 = arith.constant 0 : index
    %c0_105 = arith.constant 0 : index
    %c24_106 = arith.constant 24 : index
    %47 = vector.load %arg8[%c0_104, %c0_105, %c24_106] : memref<16x16x36xf32, #tpu.memory_space<vmem>>, vector<16x16x4xf32>
    tpu.vector_store %arg8[%c0_104, %c0_105, %c24_106], %46 {strides = array<i32>} : memref<16x16x36xf32, #tpu.memory_space<vmem>>, vector<16x16x4xf32>,
    %c2_107 = arith.constant 2 : index
    %c1_108 = arith.constant 1 : index
    %c0_109 = arith.constant 0 : index
    %48 = vector.load %arg7[%c2_107, %c1_108, %c0_109] : memref<18x18x4xf32, #tpu.memory_space<vmem>>, vector<16x16x4xf32>
    %c0_110 = arith.constant 0 : index
    %c0_111 = arith.constant 0 : index
    %c28_112 = arith.constant 28 : index
    %49 = vector.load %arg8[%c0_110, %c0_111, %c28_112] : memref<16x16x36xf32, #tpu.memory_space<vmem>>, vector<16x16x4xf32>
    tpu.vector_store %arg8[%c0_110, %c0_111, %c28_112], %48 {strides = array<i32>} : memref<16x16x36xf32, #tpu.memory_space<vmem>>, vector<16x16x4xf32>,
    %c2_113 = arith.constant 2 : index
    %c2_114 = arith.constant 2 : index
    %c0_115 = arith.constant 0 : index
    %50 = vector.load %arg7[%c2_113, %c2_114, %c0_115] : memref<18x18x4xf32, #tpu.memory_space<vmem>>, vector<16x16x4xf32>
    %c0_116 = arith.constant 0 : index
    %c0_117 = arith.constant 0 : index
    %c32_118 = arith.constant 32 : index
    %51 = vector.load %arg8[%c0_116, %c0_117, %c32_118] : memref<16x16x36xf32, #tpu.memory_space<vmem>>, vector<16x16x4xf32>
    tpu.vector_store %arg8[%c0_116, %c0_117, %c32_118], %50 {strides = array<i32>} : memref<16x16x36xf32, #tpu.memory_space<vmem>>, vector<16x16x4xf32>,
    %c0_119 = arith.constant 0 : index
    %c0_120 = arith.constant 0 : index
    %c0_121 = arith.constant 0 : index
    %52 = vector.load %arg8[%c0_119, %c0_120, %c0_121] : memref<16x16x36xf32, #tpu.memory_space<vmem>>, vector<16x16x36xf32>
    %53 = vector.shape_cast %52 : vector<16x16x36xf32> to vector<256x36xf32>
    %c0_122 = arith.constant 0 : index
    %c0_123 = arith.constant 0 : index
    %54 = vector.load %arg4[%c0_122, %c0_123] : memref<36x4xf32, #tpu.memory_space<vmem>>, vector<36x4xf32>
    %cst_124 = arith.constant dense<0.000000e+00> : vector<256x4xf32>
    %55 = tpu.matmul %53, %54, %cst_124 {dimension_numbers = #tpu.dot_dimension_numbers<[1], [0], [0], [1], [0, 0, 1, 1], [], []>} : vector<256x36xf32>, vector<36x4xf32>, vector<256x4xf32> -> vector<256x4xf32>
    %c0_125 = arith.constant 0 : index
    %c0_126 = arith.constant 0 : index
    %56 = vector.load %arg5[%c0_125, %c0_126] : memref<1x4xf32, #tpu.memory_space<vmem>>, vector<1x4xf32>
    %57 = vector.broadcast %56 : vector<1x4xf32> to vector<256x4xf32>
    %58 = arith.addf %55, %57 : vector<256x4xf32>
    %59 = vector.shape_cast %3 : vector<16x16x4xf32> to vector<256x4xf32>
    %60 = arith.addf %58, %59 : vector<256x4xf32>
    %cst_127 = arith.constant 0.000000e+00 : f32
    %61 = vector.broadcast %cst_127 : f32 to vector<256x4xf32>
    %62 = arith.maximumf %60, %61 : vector<256x4xf32>
    %63 = vector.shape_cast %62 : vector<256x4xf32> to vector<1x16x16x4xf32>
    %c0_128 = arith.constant 0 : index
    %c0_129 = arith.constant 0 : index
    %c0_130 = arith.constant 0 : index
    %c0_131 = arith.constant 0 : index
    %64 = vector.load %arg6[%c0_128, %c0_129, %c0_130, %c0_131] : memref<1x16x16x4xf32, #tpu.memory_space<vmem>>, vector<1x16x16x4xf32>
    tpu.vector_store %arg6[%c0_128, %c0_129, %c0_130, %c0_131], %63 {strides = array<i32>} : memref<1x16x16x4xf32, #tpu.memory_space<vmem>>, vector<1x16x16x4xf32>,
    return
  }
  func.func @transform_0(%arg0: i32) -> (i32, i32, i32, i32) {
    %c0_i32 = arith.constant 0 : i32
    %c0_i32_0 = arith.constant 0 : i32
    %c0_i32_1 = arith.constant 0 : i32
    %c0_i32_2 = arith.constant 0 : i32
    return %arg0, %c0_i32, %c0_i32_0, %c0_i32_1 : i32, i32, i32, i32
  }
  func.func @transform_1(%arg0: i32) -> (i32, i32) {
    %c0_i32 = arith.constant 0 : i32
    %c0_i32_0 = arith.constant 0 : i32
    %c0_i32_1 = arith.constant 0 : i32
    return %c0_i32, %c0_i32_0 : i32, i32
  }
  func.func @transform_2(%arg0: i32) -> (i32, i32) {
    %c0_i32 = arith.constant 0 : i32
    %c0_i32_0 = arith.constant 0 : i32
    %c0_i32_1 = arith.constant 0 : i32
    return %c0_i32, %c0_i32_0 : i32, i32
  }
  func.func @transform_3(%arg0: i32) -> (i32, i32) {
    %c0_i32 = arith.constant 0 : i32
    %c0_i32_0 = arith.constant 0 : i32
    %c0_i32_1 = arith.constant 0 : i32
    return %c0_i32, %c0_i32_0 : i32, i32
  }
  func.func @transform_4(%arg0: i32) -> (i32, i32) {
    %c0_i32 = arith.constant 0 : i32
    %c0_i32_0 = arith.constant 0 : i32
    %c0_i32_1 = arith.constant 0 : i32
    return %c0_i32, %c0_i32_0 : i32, i32
  }
  func.func @transform_5(%arg0: i32) -> (i32, i32, i32, i32) {
    %c0_i32 = arith.constant 0 : i32
    %c0_i32_0 = arith.constant 0 : i32
    %c0_i32_1 = arith.constant 0 : i32
    %c0_i32_2 = arith.constant 0 : i32
    return %arg0, %c0_i32, %c0_i32_0, %c0_i32_1 : i32, i32, i32, i32
  }
}

</mosaic_0001>

<llo_original>
// kernel: tpu_custom_call.1
$region0: #{tpu_custom_call.1}
  #allocation0 [shape = 'u32[]', space=smem, size = 0x4, offset = 0x4, fixed_abs, tag = 'smem constant byte address 0x4 - core index']
  #allocation1 [shape = 'u32[144,128]{1,0:T(1,128)}', space=vmem, size = 0x12000, scoped, tag = 'internal scratch']
  #allocation2 [shape = 'f32[18,18,4]{2,1,0:T(8,128)}', space=vmem, size = 0x36000, scoped, tag = 'scratch operand']
  #allocation3 [shape = 'f32[16,16,36]{2,1,0:T(8,128)}', space=vmem, size = 0x20000, scoped, tag = 'scratch operand']
  %s0 = inlined_call_operand.vmem [shape: f32[2,16,16,4], index: 0, kind: input, shape index: {}]
  %s1 = inlined_call_operand.vmem [shape: f32[36,4], index: 1, kind: input, shape index: {}]
  %s2 = inlined_call_operand.vmem [shape: f32[1,4], index: 2, kind: input, shape index: {}]
  %s3 = inlined_call_operand.vmem [shape: f32[36,4], index: 3, kind: input, shape index: {}]
  %s4 = inlined_call_operand.vmem [shape: f32[1,4], index: 4, kind: input, shape index: {}]
  %s5 = inlined_call_operand.vmem [shape: f32[2,16,16,4], index: 5, kind: output, shape index: {}]
  %s6 = sld [smem:[#allocation0]]
  $region53: #{tpu_custom_call.1} parent=0
    _
  %s8 = ssub.s32 1, %s6
  %s9 = scalar_select 0, %s8, %s6
  loop: start=0, step=1, limit=4
  $region2: #{tpu_custom_call.1} parent=0 // loop_pre_header
    _
  $region3: #{tpu_custom_call.1} parent=0 // loop_header
    %s11 = sphi 0, %s15
    %p12 = scmp.ge.s32.totalorder %s11, 4
    %s21 = sphi 0, %s23
    %s24 = sphi 0, %s21
    %s25 = sphi 0, %s24
    %s41 = sphi 0, %s25
    %s45 = sphi 0, %s45
    %s47 = sphi 0, %s45
    %s48 = sphi 0, %s47
    %s62 = sphi 0, %s48
    %s66 = sphi 0, %s66
    %s68 = sphi 0, %s66
    %s69 = sphi 0, %s68
    %s83 = sphi 0, %s69
    %s87 = sphi 0, %s87
    %s89 = sphi 0, %s87
    %s90 = sphi 0, %s89
    %s104 = sphi 0, %s90
    %s108 = sphi 0, %s108
    %s110 = sphi 0, %s108
    %s111 = sphi 0, %s110
    %s125 = sphi 0, %s111
    %s131 = sphi 0, %s133
    %s134 = sphi 0, %s131
    %s135 = sphi 0, %s134
    %s151 = sphi 0, %s135
  $region4: #{tpu_custom_call.1} parent=0 // loop_header_branch
    %14 = sbr.rel (%p12) target = $region8
  $region5: #{tpu_custom_call.1} parent=0 // loop_body
    %s16 = ssub.s32 %s11, 1
    %s17 = ssub.s32 %s11, 2
    %s18 = sadd.s32 %s11, 1
    %s19 = ssub.s32 %s11, %s18
    %p20 = scmp.eq.s32.totalorder %s19, 0
    %s22 = sadd.s32 %s21, 1
    %s23 = scalar_select %p20, %s21, %s22
    %p26 = pneg %p20
    %p27 = scmp.eq.s32.totalorder %s11, 1
    %p28 = por %p26, %p27
    %p29 = scmp.ne.s32.totalorder %s21, %s24
    %p30 = scmp.eq.s32.totalorder %s11, 0
    %p31 = por %p29, %p30
    %p32 = scmp.ne.s32.totalorder %s21, %s24
    %p33 = scmp.eq.s32.totalorder %s16, 1
    %p34 = por %p32, %p33
    %p35 = scmp.ne.s32.totalorder %s24, %s25
    %p36 = scmp.eq.s32.totalorder %s16, 0
    %p37 = por %p35, %p36
    %p38 = scmp.ne.s32.totalorder %s24, %s25
    %p39 = scmp.eq.s32.totalorder %s17, 1
    %p40 = por %p38, %p39
    %p42 = scmp.ne.s32.totalorder %s25, %s41
    %p43 = scmp.eq.s32.totalorder %s17, 0
    %p44 = por %p42, %p43
    %s46 = sadd.s32 %s45, 1
    %p49 = scmp.eq.s32.totalorder %s11, 1
    %p50 = scmp.ne.s32.totalorder %s45, %s47
    %p51 = scmp.eq.s32.totalorder %s11, 0
    %p52 = por %p50, %p51
    %p53 = scmp.ne.s32.totalorder %s45, %s47
    %p54 = scmp.eq.s32.totalorder %s16, 1
    %p55 = por %p53, %p54
    %p56 = scmp.ne.s32.totalorder %s47, %s48
    %p57 = scmp.eq.s32.totalorder %s16, 0
    %p58 = por %p56, %p57
    %p59 = scmp.ne.s32.totalorder %s47, %s48
    %p60 = scmp.eq.s32.totalorder %s17, 1
    %p61 = por %p59, %p60
    %p63 = scmp.ne.s32.totalorder %s48, %s62
    %p64 = scmp.eq.s32.totalorder %s17, 0
    %p65 = por %p63, %p64
    %s67 = sadd.s32 %s66, 1
    %p70 = scmp.eq.s32.totalorder %s11, 1
    %p71 = scmp.ne.s32.totalorder %s66, %s68
    %p72 = scmp.eq.s32.totalorder %s11, 0
    %p73 = por %p71, %p72
    %p74 = scmp.ne.s32.totalorder %s66, %s68
    %p75 = scmp.eq.s32.totalorder %s16, 1
    %p76 = por %p74, %p75
    %p77 = scmp.ne.s32.totalorder %s68, %s69
    %p78 = scmp.eq.s32.totalorder %s16, 0
    %p79 = por %p77, %p78
    %p80 = scmp.ne.s32.totalorder %s68, %s69
    %p81 = scmp.eq.s32.totalorder %s17, 1
    %p82 = por %p80, %p81
    %p84 = scmp.ne.s32.totalorder %s69, %s83
    %p85 = scmp.eq.s32.totalorder %s17, 0
    %p86 = por %p84, %p85
    %s88 = sadd.s32 %s87, 1
    %p91 = scmp.eq.s32.totalorder %s11, 1
    %p92 = scmp.ne.s32.totalorder %s87, %s89
    %p93 = scmp.eq.s32.totalorder %s11, 0
    %p94 = por %p92, %p93
    %p95 = scmp.ne.s32.totalorder %s87, %s89
    %p96 = scmp.eq.s32.totalorder %s16, 1
    %p97 = por %p95, %p96
    %p98 = scmp.ne.s32.totalorder %s89, %s90
    %p99 = scmp.eq.s32.totalorder %s16, 0
    %p100 = por %p98, %p99
    %p101 = scmp.ne.s32.totalorder %s89, %s90
    %p102 = scmp.eq.s32.totalorder %s17, 1
    %p103 = por %p101, %p102
    %p105 = scmp.ne.s32.totalorder %s90, %s104
    %p106 = scmp.eq.s32.totalorder %s17, 0
    %p107 = por %p105, %p106
    %s109 = sadd.s32 %s108, 1
    %p112 = scmp.eq.s32.totalorder %s11, 1
    %p113 = scmp.ne.s32.totalorder %s108, %s110
    %p114 = scmp.eq.s32.totalorder %s11, 0
    %p115 = por %p113, %p114
    %p116 = scmp.ne.s32.totalorder %s108, %s110
    %p117 = scmp.eq.s32.totalorder %s16, 1
    %p118 = por %p116, %p117
    %p119 = scmp.ne.s32.totalorder %s110, %s111
    %p120 = scmp.eq.s32.totalorder %s16, 0
    %p121 = por %p119, %p120
    %p122 = scmp.ne.s32.totalorder %s110, %s111
    %p123 = scmp.eq.s32.totalorder %s17, 1
    %p124 = por %p122, %p123
    %p126 = scmp.ne.s32.totalorder %s111, %s125
    %p127 = scmp.eq.s32.totalorder %s17, 0
    %p128 = por %p126, %p127
    %s129 = ssub.s32 %s11, %s18
    %p130 = scmp.eq.s32.totalorder %s129, 0
    %s132 = sadd.s32 %s131, 1
    %s133 = scalar_select %p130, %s131, %s132
    %p136 = pneg %p130
    %p137 = scmp.eq.s32.totalorder %s11, 1
    %p138 = por %p136, %p137
    %p139 = scmp.ne.s32.totalorder %s131, %s134
    %p140 = scmp.eq.s32.totalorder %s11, 0
    %p141 = por %p139, %p140
    %p142 = scmp.ne.s32.totalorder %s131, %s134
    %p143 = scmp.eq.s32.totalorder %s16, 1
    %p144 = por %p142, %p143
    %p145 = scmp.ne.s32.totalorder %s134, %s135
    %p146 = scmp.eq.s32.totalorder %s16, 0
    %p147 = por %p145, %p146
    %p148 = scmp.ne.s32.totalorder %s134, %s135
    %p149 = scmp.eq.s32.totalorder %s17, 1
    %p150 = por %p148, %p149
    %p152 = scmp.ne.s32.totalorder %s135, %s151
    %p153 = scmp.eq.s32.totalorder %s17, 0
    %p154 = por %p152, %p153
    %p155 = scmp.le.s32.totalorder 1, %s11
    %p156 = scmp.lt.s32.totalorder %s11, 3
    %p157 = pnand %p155, %p156
    %p158 = pneg %p157
    // Predicated region
    $region9: #{tpu_custom_call.1} parent=5 // pred_check
      _
    $region10: #{tpu_custom_call.1} parent=5 // pred_check_branch
      %160 = sbr.rel (%p157) target = $region12
    $region11: #{tpu_custom_call.1} parent=5 // pred_region
      %s161 = ssub.s32 %s11, 1
      // Predicated region
      $region13: #{tpu_custom_call.1} parent=11 // pred_check
        %p162 = pneg %p58
      $region14: #{tpu_custom_call.1} parent=11 // pred_check_branch
        %164 = sbr.rel (%p162) target = $region16
      $region15: #{tpu_custom_call.1} parent=11 // pred_region
        _
      $region16: #{tpu_custom_call.1} parent=11 // pred_fallthru
        _
      // Predicated region
      $region17: #{tpu_custom_call.1} parent=11 // pred_check
        %p165 = pneg %p79
      $region18: #{tpu_custom_call.1} parent=11 // pred_check_branch
        %167 = sbr.rel (%p165) target = $region20
      $region19: #{tpu_custom_call.1} parent=11 // pred_region
        _
      $region20: #{tpu_custom_call.1} parent=11 // pred_fallthru
        _
      // Predicated region
      $region21: #{tpu_custom_call.1} parent=11 // pred_check
        %p168 = pneg %p100
      $region22: #{tpu_custom_call.1} parent=11 // pred_check_branch
        %170 = sbr.rel (%p168) target = $region24
      $region23: #{tpu_custom_call.1} parent=11 // pred_region
        _
      $region24: #{tpu_custom_call.1} parent=11 // pred_fallthru
        _
      // Predicated region
      $region25: #{tpu_custom_call.1} parent=11 // pred_check
        %p171 = pneg %p121
      $region26: #{tpu_custom_call.1} parent=11 // pred_check_branch
        %173 = sbr.rel (%p171) target = $region28
      $region27: #{tpu_custom_call.1} parent=11 // pred_region
        _
      $region28: #{tpu_custom_call.1} parent=11 // pred_fallthru
        _
    $region12: #{tpu_custom_call.1} parent=5 // pred_fallthru
      _
    %p174 = scmp.lt.s32.totalorder %s11, 2
    // Predicated region
    $region29: #{tpu_custom_call.1} parent=5 // pred_check
      %p175 = pneg %p174
    $region30: #{tpu_custom_call.1} parent=5 // pred_check_branch
      %177 = sbr.rel (%p175) target = $region32
    $region31: #{tpu_custom_call.1} parent=5 // pred_region
      // Predicated region
      $region33: #{tpu_custom_call.1} parent=31 // pred_check
        %p178 = pneg %p31
      $region34: #{tpu_custom_call.1} parent=31 // pred_check_branch
        %180 = sbr.rel (%p178) target = $region36
      $region35: #{tpu_custom_call.1} parent=31 // pred_region
        %p181 = scmp.lt.s32.totalorder %s11, 1
        %s182 = scalar_select %p181, %s11, 1
        %s183 = smul.addr %s182, 32
        %s184 = smul.addr %s183, 8
        %s185 = scalar_lea.vmem %s0, %s184
      $region36: #{tpu_custom_call.1} parent=31 // pred_fallthru
        _
    $region32: #{tpu_custom_call.1} parent=5 // pred_fallthru
      _
    %p186 = scmp.le.s32.totalorder 1, %s11
    %p187 = scmp.lt.s32.totalorder %s11, 3
    %p188 = pnand %p186, %p187
    %p189 = pneg %p188
    // Predicated region
    $region37: #{tpu_custom_call.1} parent=5 // pred_check
      _
    $region38: #{tpu_custom_call.1} parent=5 // pred_check_branch
      %191 = sbr.rel (%p188) target = $region40
    $region39: #{tpu_custom_call.1} parent=5 // pred_region
      %s192 = ssub.s32 %s11, 1
      %p193 = scmp.lt.s32.totalorder %s16, 1
      %s194 = scalar_select %p193, %s16, 1
      %s195 = smul.addr %s194, 32
      %s196 = smul.addr %s195, 8
      %s197 = scalar_lea.vmem %s0, %s196
      %p198 = pneg %p37
      %p199 = pneg %p34
      %p200 = pneg %p58
      %p201 = pneg %p55
      %p202 = pneg %p79
      %p203 = pneg %p76
      %p204 = pneg %p100
      %p205 = pneg %p97
      %p206 = pneg %p121
      %p207 = pneg %p118
      %p208 = pneg %p147
      %p209 = pneg %p144
      %p210 = scmp.lt.s32.totalorder %s16, 1
      %s211 = scalar_select %p210, %s16, 1
      %s212 = smul.addr %s211, 32
      %s213 = smul.addr %s212, 8
      %s214 = scalar_lea.vmem %s5, %s213
      %p215 = scmp.lt.s32.totalorder %s16, 1
      %s216 = scalar_select %p215, %s16, 1
      %s217 = smul.addr %s216, 32
      %s218 = smul.addr %s217, 8
      %s219 = scalar_lea.vmem %s0, %s218
      %p220 = scmp.lt.s32.totalorder %s16, 1
      %s221 = scalar_select %p220, %s16, 1
      %s222 = smul.addr %s221, 32
      %s223 = smul.addr %s222, 8
      %s224 = scalar_lea.vmem %s5, %s223
      %vm225 = vcmask 31744
      %226 = vst.msk [vmem:[#allocation2] sm:$0xff] %vm225, 0.0
      %227 = vst.msk [vmem:[#allocation2 + $0x8] sm:$0xff] %vm225, 0.0
      %vm228 = vcmask 25600
      %229 = vst.msk [vmem:[#allocation2 + $0x10] sm:$0x3] %vm228, 0.0
      %230 = vst.msk [vmem:[#allocation2 + $0x18] sm:$0xff] %vm225, 0.0
      %231 = vst.msk [vmem:[#allocation2 + $0x20] sm:$0xff] %vm225, 0.0
      %232 = vst.msk [vmem:[#allocation2 + $0x28] sm:$0x3] %vm228, 0.0
      %233 = vst.msk [vmem:[#allocation2 + $0x30] sm:$0xff] %vm225, 0.0
      %234 = vst.msk [vmem:[#allocation2 + $0x38] sm:$0xff] %vm225, 0.0
      %235 = vst.msk [vmem:[#allocation2 + $0x40] sm:$0x3] %vm228, 0.0
      %236 = vst.msk [vmem:[#allocation2 + $0x48] sm:$0xff] %vm225, 0.0
      %237 = vst.msk [vmem:[#allocation2 + $0x50] sm:$0xff] %vm225, 0.0
      %238 = vst.msk [vmem:[#allocation2 + $0x58] sm:$0x3] %vm228, 0.0
      %239 = vst.msk [vmem:[#allocation2 + $0x60] sm:$0xff] %vm225, 0.0
      %240 = vst.msk [vmem:[#allocation2 + $0x68] sm:$0xff] %vm225, 0.0
      %241 = vst.msk [vmem:[#allocation2 + $0x70] sm:$0x3] %vm228, 0.0
      %242 = vst.msk [vmem:[#allocation2 + $0x78] sm:$0xff] %vm225, 0.0
      %243 = vst.msk [vmem:[#allocation2 + $0x80] sm:$0xff] %vm225, 0.0
      %244 = vst.msk [vmem:[#allocation2 + $0x88] sm:$0x3] %vm228, 0.0
      %245 = vst.msk [vmem:[#allocation2 + $0x90] sm:$0xff] %vm225, 0.0
      %246 = vst.msk [vmem:[#allocation2 + $0x98] sm:$0xff] %vm225, 0.0
      %247 = vst.msk [vmem:[#allocation2 + $0xa0] sm:$0x3] %vm228, 0.0
      %248 = vst.msk [vmem:[#allocation2 + $0xa8] sm:$0xff] %vm225, 0.0
      %249 = vst.msk [vmem:[#allocation2 + $0xb0] sm:$0xff] %vm225, 0.0
      %250 = vst.msk [vmem:[#allocation2 + $0xb8] sm:$0x3] %vm228, 0.0
      %251 = vst.msk [vmem:[#allocation2 + $0xc0] sm:$0xff] %vm225, 0.0
      %252 = vst.msk [vmem:[#allocation2 + $0xc8] sm:$0xff] %vm225, 0.0
      %253 = vst.msk [vmem:[#allocation2 + $0xd0] sm:$0x3] %vm228, 0.0
      %254 = vst.msk [vmem:[#allocation2 + $0xd8] sm:$0xff] %vm225, 0.0
      %255 = vst.msk [vmem:[#allocation2 + $0xe0] sm:$0xff] %vm225, 0.0
      %256 = vst.msk [vmem:[#allocation2 + $0xe8] sm:$0x3] %vm228, 0.0
      %257 = vst.msk [vmem:[#allocation2 + $0xf0] sm:$0xff] %vm225, 0.0
      %258 = vst.msk [vmem:[#allocation2 + $0xf8] sm:$0xff] %vm225, 0.0
      %259 = vst.msk [vmem:[#allocation2 + $0x100] sm:$0x3] %vm228, 0.0
      %260 = vst.msk [vmem:[#allocation2 + $0x108] sm:$0xff] %vm225, 0.0
      %261 = vst.msk [vmem:[#allocation2 + $0x110] sm:$0xff] %vm225, 0.0
      %262 = vst.msk [vmem:[#allocation2 + $0x118] sm:$0x3] %vm228, 0.0
      %263 = vst.msk [vmem:[#allocation2 + $0x120] sm:$0xff] %vm225, 0.0
      %264 = vst.msk [vmem:[#allocation2 + $0x128] sm:$0xff] %vm225, 0.0
      %265 = vst.msk [vmem:[#allocation2 + $0x130] sm:$0x3] %vm228, 0.0
      %266 = vst.msk [vmem:[#allocation2 + $0x138] sm:$0xff] %vm225, 0.0
      %267 = vst.msk [vmem:[#allocation2 + $0x140] sm:$0xff] %vm225, 0.0
      %268 = vst.msk [vmem:[#allocation2 + $0x148] sm:$0x3] %vm228, 0.0
      %269 = vst.msk [vmem:[#allocation2 + $0x150] sm:$0xff] %vm225, 0.0
      %270 = vst.msk [vmem:[#allocation2 + $0x158] sm:$0xff] %vm225, 0.0
      %271 = vst.msk [vmem:[#allocation2 + $0x160] sm:$0x3] %vm228, 0.0
      %272 = vst.msk [vmem:[#allocation2 + $0x168] sm:$0xff] %vm225, 0.0
      %273 = vst.msk [vmem:[#allocation2 + $0x170] sm:$0xff] %vm225, 0.0
      %274 = vst.msk [vmem:[#allocation2 + $0x178] sm:$0x3] %vm228, 0.0
      %275 = vst.msk [vmem:[#allocation2 + $0x180] sm:$0xff] %vm225, 0.0
      %276 = vst.msk [vmem:[#allocation2 + $0x188] sm:$0xff] %vm225, 0.0
      %277 = vst.msk [vmem:[#allocation2 + $0x190] sm:$0x3] %vm228, 0.0
      %278 = vst.msk [vmem:[#allocation2 + $0x198] sm:$0xff] %vm225, 0.0
      %279 = vst.msk [vmem:[#allocation2 + $0x1a0] sm:$0xff] %vm225, 0.0
      %280 = vst.msk [vmem:[#allocation2 + $0x1a8] sm:$0x3] %vm228, 0.0
      %v281 = vld [vmem:[%s219] sm:$0xff]
      %v282 = vld [vmem:[%s219 + $0x8] sm:$0xff]
      %v283 = vld [vmem:[%s219 + $0x10] sm:$0xff]
      %v284 = vld [vmem:[%s219 + $0x18] sm:$0xff]
      %v285 = vld [vmem:[%s219 + $0x20] sm:$0xff]
      %v286 = vld [vmem:[%s219 + $0x28] sm:$0xff]
      %v287 = vld [vmem:[%s219 + $0x30] sm:$0xff]
      %v288 = vld [vmem:[%s219 + $0x38] sm:$0xff]
      %v289 = vld [vmem:[%s219 + $0x40] sm:$0xff]
      %v290 = vld [vmem:[%s219 + $0x48] sm:$0xff]
      %v291 = vld [vmem:[%s219 + $0x50] sm:$0xff]
      %v292 = vld [vmem:[%s219 + $0x58] sm:$0xff]
      %v293 = vld [vmem:[%s219 + $0x60] sm:$0xff]
      %v294 = vld [vmem:[%s219 + $0x68] sm:$0xff]
      %v295 = vld [vmem:[%s219 + $0x70] sm:$0xff]
      %v296 = vld [vmem:[%s219 + $0x78] sm:$0xff]
      %v297 = vld [vmem:[%s219 + $0x80] sm:$0xff]
      %v298 = vld [vmem:[%s219 + $0x88] sm:$0xff]
      %v299 = vld [vmem:[%s219 + $0x90] sm:$0xff]
      %v300 = vld [vmem:[%s219 + $0x98] sm:$0xff]
      %v301 = vld [vmem:[%s219 + $0xa0] sm:$0xff]
      %v302 = vld [vmem:[%s219 + $0xa8] sm:$0xff]
      %v303 = vld [vmem:[%s219 + $0xb0] sm:$0xff]
      %v304 = vld [vmem:[%s219 + $0xb8] sm:$0xff]
      %v305 = vld [vmem:[%s219 + $0xc0] sm:$0xff]
      %v306 = vld [vmem:[%s219 + $0xc8] sm:$0xff]
      %v307 = vld [vmem:[%s219 + $0xd0] sm:$0xff]
      %v308 = vld [vmem:[%s219 + $0xd8] sm:$0xff]
      %v309 = vld [vmem:[%s219 + $0xe0] sm:$0xff]
      %v310 = vld [vmem:[%s219 + $0xe8] sm:$0xff]
      %v311 = vld [vmem:[%s219 + $0xf0] sm:$0xff]
      %v312 = vld [vmem:[%s219 + $0xf8] sm:$0xff]
      %s313 = scalar_lea.vmem [#allocation2], 24
      %314 = vst.msk [vmem:[%s313 + $0x1] sm:$0xff] %vm225, %v281
      %315 = vst.msk [vmem:[%s313 + $0x9] sm:$0xff] %vm225, %v282
      %316 = vst.msk [vmem:[%s313 + $0x19] sm:$0xff] %vm225, %v283
      %317 = vst.msk [vmem:[%s313 + $0x21] sm:$0xff] %vm225, %v284
      %318 = vst.msk [vmem:[%s313 + $0x31] sm:$0xff] %vm225, %v285
      %319 = vst.msk [vmem:[%s313 + $0x39] sm:$0xff] %vm225, %v286
      %320 = vst.msk [vmem:[%s313 + $0x49] sm:$0xff] %vm225, %v287
      %321 = vst.msk [vmem:[%s313 + $0x51] sm:$0xff] %vm225, %v288
      %322 = vst.msk [vmem:[%s313 + $0x61] sm:$0xff] %vm225, %v289
      %323 = vst.msk [vmem:[%s313 + $0x69] sm:$0xff] %vm225, %v290
      %324 = vst.msk [vmem:[%s313 + $0x79] sm:$0xff] %vm225, %v291
      %325 = vst.msk [vmem:[%s313 + $0x81] sm:$0xff] %vm225, %v292
      %326 = vst.msk [vmem:[%s313 + $0x91] sm:$0xff] %vm225, %v293
      %327 = vst.msk [vmem:[%s313 + $0x99] sm:$0xff] %vm225, %v294
      %328 = vst.msk [vmem:[%s313 + $0xa9] sm:$0xff] %vm225, %v295
      %329 = vst.msk [vmem:[%s313 + $0xb1] sm:$0xff] %vm225, %v296
      %330 = vst.msk [vmem:[%s313 + $0xc1] sm:$0xff] %vm225, %v297
      %331 = vst.msk [vmem:[%s313 + $0xc9] sm:$0xff] %vm225, %v298
      %332 = vst.msk [vmem:[%s313 + $0xd9] sm:$0xff] %vm225, %v299
      %333 = vst.msk [vmem:[%s313 + $0xe1] sm:$0xff] %vm225, %v300
      %334 = vst.msk [vmem:[%s313 + $0xf1] sm:$0xff] %vm225, %v301
      %335 = vst.msk [vmem:[%s313 + $0xf9] sm:$0xff] %vm225, %v302
      %336 = vst.msk [vmem:[%s313 + $0x109] sm:$0xff] %vm225, %v303
      %337 = vst.msk [vmem:[%s313 + $0x111] sm:$0xff] %vm225, %v304
      %338 = vst.msk [vmem:[%s313 + $0x121] sm:$0xff] %vm225, %v305
      %339 = vst.msk [vmem:[%s313 + $0x129] sm:$0xff] %vm225, %v306
      %340 = vst.msk [vmem:[%s313 + $0x139] sm:$0xff] %vm225, %v307
      %341 = vst.msk [vmem:[%s313 + $0x141] sm:$0xff] %vm225, %v308
      %342 = vst.msk [vmem:[%s313 + $0x151] sm:$0xff] %vm225, %v309
      %343 = vst.msk [vmem:[%s313 + $0x159] sm:$0xff] %vm225, %v310
      %344 = vst.msk [vmem:[%s313 + $0x169] sm:$0xff] %vm225, %v311
      %345 = vst.msk [vmem:[%s313 + $0x171] sm:$0xff] %vm225, %v312
      %v346 = vld [vmem:[#allocation2] sm:$0xff]
      %v347 = vld [vmem:[#allocation2 + $0x8] sm:$0xff]
      %v348 = vld [vmem:[#allocation2 + $0x18] sm:$0xff]
      %v349 = vld [vmem:[#allocation2 + $0x20] sm:$0xff]
      %v350 = vld [vmem:[#allocation2 + $0x30] sm:$0xff]
      %v351 = vld [vmem:[#allocation2 + $0x38] sm:$0xff]
      %v352 = vld [vmem:[#allocation2 + $0x48] sm:$0xff]
      %v353 = vld [vmem:[#allocation2 + $0x50] sm:$0xff]
      %v354 = vld [vmem:[#allocation2 + $0x60] sm:$0xff]
      %v355 = vld [vmem:[#allocation2 + $0x68] sm:$0xff]
      %v356 = vld [vmem:[#allocation2 + $0x78] sm:$0xff]
      %v357 = vld [vmem:[#allocation2 + $0x80] sm:$0xff]
      %v358 = vld [vmem:[#allocation2 + $0x90] sm:$0xff]
      %v359 = vld [vmem:[#allocation2 + $0x98] sm:$0xff]
      %v360 = vld [vmem:[#allocation2 + $0xa8] sm:$0xff]
      %v361 = vld [vmem:[#allocation2 + $0xb0] sm:$0xff]
      %v362 = vld [vmem:[#allocation2 + $0xc0] sm:$0xff]
      %v363 = vld [vmem:[#allocation2 + $0xc8] sm:$0xff]
      %v364 = vld [vmem:[#allocation2 + $0xd8] sm:$0xff]
      %v365 = vld [vmem:[#allocation2 + $0xe0] sm:$0xff]
      %v366 = vld [vmem:[#allocation2 + $0xf0] sm:$0xff]
      %v367 = vld [vmem:[#allocation2 + $0xf8] sm:$0xff]
      %v368 = vld [vmem:[#allocation2 + $0x108] sm:$0xff]
      %v369 = vld [vmem:[#allocation2 + $0x110] sm:$0xff]
      %v370 = vld [vmem:[#allocation2 + $0x120] sm:$0xff]
      %v371 = vld [vmem:[#allocation2 + $0x128] sm:$0xff]
      %v372 = vld [vmem:[#allocation2 + $0x138] sm:$0xff]
      %v373 = vld [vmem:[#allocation2 + $0x140] sm:$0xff]
      %v374 = vld [vmem:[#allocation2 + $0x150] sm:$0xff]
      %v375 = vld [vmem:[#allocation2 + $0x158] sm:$0xff]
      %v376 = vld [vmem:[#allocation2 + $0x168] sm:$0xff]
      %v377 = vld [vmem:[#allocation2 + $0x170] sm:$0xff]
      %378 = vst.msk [vmem:[#allocation3] sm:$0xff] %vm225, %v346
      %379 = vst.msk [vmem:[#allocation3 + $0x8] sm:$0xff] %vm225, %v347
      %380 = vst.msk [vmem:[#allocation3 + $0x10] sm:$0xff] %vm225, %v348
      %381 = vst.msk [vmem:[#allocation3 + $0x18] sm:$0xff] %vm225, %v349
      %382 = vst.msk [vmem:[#allocation3 + $0x20] sm:$0xff] %vm225, %v350
      %383 = vst.msk [vmem:[#allocation3 + $0x28] sm:$0xff] %vm225, %v351
      %384 = vst.msk [vmem:[#allocation3 + $0x30] sm:$0xff] %vm225, %v352
      %385 = vst.msk [vmem:[#allocation3 + $0x38] sm:$0xff] %vm225, %v353
      %386 = vst.msk [vmem:[#allocation3 + $0x40] sm:$0xff] %vm225, %v354
      %387 = vst.msk [vmem:[#allocation3 + $0x48] sm:$0xff] %vm225, %v355
      %388 = vst.msk [vmem:[#allocation3 + $0x50] sm:$0xff] %vm225, %v356
      %389 = vst.msk [vmem:[#allocation3 + $0x58] sm:$0xff] %vm225, %v357
      %390 = vst.msk [vmem:[#allocation3 + $0x60] sm:$0xff] %vm225, %v358
      %391 = vst.msk [vmem:[#allocation3 + $0x68] sm:$0xff] %vm225, %v359
      %392 = vst.msk [vmem:[#allocation3 + $0x70] sm:$0xff] %vm225, %v360
      %393 = vst.msk [vmem:[#allocation3 + $0x78] sm:$0xff] %vm225, %v361
      %394 = vst.msk [vmem:[#allocation3 + $0x80] sm:$0xff] %vm225, %v362
      %395 = vst.msk [vmem:[#allocation3 + $0x88] sm:$0xff] %vm225, %v363
      %396 = vst.msk [vmem:[#allocation3 + $0x90] sm:$0xff] %vm225, %v364
      %397 = vst.msk [vmem:[#allocation3 + $0x98] sm:$0xff] %vm225, %v365
      %398 = vst.msk [vmem:[#allocation3 + $0xa0] sm:$0xff] %vm225, %v366
      %399 = vst.msk [vmem:[#allocation3 + $0xa8] sm:$0xff] %vm225, %v367
      %400 = vst.msk [vmem:[#allocation3 + $0xb0] sm:$0xff] %vm225, %v368
      %401 = vst.msk [vmem:[#allocation3 + $0xb8] sm:$0xff] %vm225, %v369
      %402 = vst.msk [vmem:[#allocation3 + $0xc0] sm:$0xff] %vm225, %v370
      %403 = vst.msk [vmem:[#allocation3 + $0xc8] sm:$0xff] %vm225, %v371
      %404 = vst.msk [vmem:[#allocation3 + $0xd0] sm:$0xff] %vm225, %v372
      %405 = vst.msk [vmem:[#allocation3 + $0xd8] sm:$0xff] %vm225, %v373
      %406 = vst.msk [vmem:[#allocation3 + $0xe0] sm:$0xff] %vm225, %v374
      %407 = vst.msk [vmem:[#allocation3 + $0xe8] sm:$0xff] %vm225, %v375
      %408 = vst.msk [vmem:[#allocation3 + $0xf0] sm:$0xff] %vm225, %v376
      %409 = vst.msk [vmem:[#allocation3 + $0xf8] sm:$0xff] %vm225, %v377
      %v410 = vld [vmem:[#allocation2 + $0x1] sm:$0xff]
      %v411 = vld [vmem:[#allocation2 + $0x9] sm:$0xff]
      %v412 = vld [vmem:[#allocation2 + $0x19] sm:$0xff]
      %v413 = vld [vmem:[#allocation2 + $0x21] sm:$0xff]
      %v414 = vld [vmem:[#allocation2 + $0x31] sm:$0xff]
      %v415 = vld [vmem:[#allocation2 + $0x39] sm:$0xff]
      %v416 = vld [vmem:[#allocation2 + $0x49] sm:$0xff]
      %v417 = vld [vmem:[#allocation2 + $0x51] sm:$0xff]
      %v418 = vld [vmem:[#allocation2 + $0x61] sm:$0xff]
      %v419 = vld [vmem:[#allocation2 + $0x69] sm:$0xff]
      %v420 = vld [vmem:[#allocation2 + $0x79] sm:$0xff]
      %v421 = vld [vmem:[#allocation2 + $0x81] sm:$0xff]
      %v422 = vld [vmem:[#allocation2 + $0x91] sm:$0xff]
      %v423 = vld [vmem:[#allocation2 + $0x99] sm:$0xff]
      %v424 = vld [vmem:[#allocation2 + $0xa9] sm:$0xff]
      %v425 = vld [vmem:[#allocation2 + $0xb1] sm:$0xff]
      %v426 = vld [vmem:[#allocation2 + $0xc1] sm:$0xff]
      %v427 = vld [vmem:[#allocation2 + $0xc9] sm:$0xff]
      %v428 = vld [vmem:[#allocation2 + $0xd9] sm:$0xff]
      %v429 = vld [vmem:[#allocation2 + $0xe1] sm:$0xff]
      %v430 = vld [vmem:[#allocation2 + $0xf1] sm:$0xff]
      %v431 = vld [vmem:[#allocation2 + $0xf9] sm:$0xff]
      %v432 = vld [vmem:[#allocation2 + $0x109] sm:$0xff]
      %v433 = vld [vmem:[#allocation2 + $0x111] sm:$0xff]
      %v434 = vld [vmem:[#allocation2 + $0x121] sm:$0xff]
      %v435 = vld [vmem:[#allocation2 + $0x129] sm:$0xff]
      %v436 = vld [vmem:[#allocation2 + $0x139] sm:$0xff]
      %v437 = vld [vmem:[#allocation2 + $0x141] sm:$0xff]
      %v438 = vld [vmem:[#allocation2 + $0x151] sm:$0xff]
      %v439 = vld [vmem:[#allocation2 + $0x159] sm:$0xff]
      %v440 = vld [vmem:[#allocation2 + $0x169] sm:$0xff]
      %v441 = vld [vmem:[#allocation2 + $0x171] sm:$0xff]
      %474 = vrot.lane.b32.xlu0 %v410, 4
      %v475 = vpop.permute.xlu0 %474
      %476 = vrot.lane.b32.xlu0 %v411, 4
      %v477 = vpop.permute.xlu0 %476
      %478 = vrot.lane.b32.xlu0 %v412, 4
      %v479 = vpop.permute.xlu0 %478
      %480 = vrot.lane.b32.xlu0 %v413, 4
      %v481 = vpop.permute.xlu0 %480
      %482 = vrot.lane.b32.xlu0 %v414, 4
      %v483 = vpop.permute.xlu0 %482
      %484 = vrot.lane.b32.xlu0 %v415, 4
      %v485 = vpop.permute.xlu0 %484
      %486 = vrot.lane.b32.xlu0 %v416, 4
      %v487 = vpop.permute.xlu0 %486
      %488 = vrot.lane.b32.xlu0 %v417, 4
      %v489 = vpop.permute.xlu0 %488
      %490 = vrot.lane.b32.xlu0 %v418, 4
      %v491 = vpop.permute.xlu0 %490
      %492 = vrot.lane.b32.xlu0 %v419, 4
      %v493 = vpop.permute.xlu0 %492
      %494 = vrot.lane.b32.xlu0 %v420, 4
      %v495 = vpop.permute.xlu0 %494
      %496 = vrot.lane.b32.xlu0 %v421, 4
      %v497 = vpop.permute.xlu0 %496
      %498 = vrot.lane.b32.xlu0 %v422, 4
      %v499 = vpop.permute.xlu0 %498
      %500 = vrot.lane.b32.xlu0 %v423, 4
      %v501 = vpop.permute.xlu0 %500
      %502 = vrot.lane.b32.xlu0 %v424, 4
      %v503 = vpop.permute.xlu0 %502
      %504 = vrot.lane.b32.xlu0 %v425, 4
      %v505 = vpop.permute.xlu0 %504
      %506 = vrot.lane.b32.xlu0 %v426, 4
      %v507 = vpop.permute.xlu0 %506
      %508 = vrot.lane.b32.xlu0 %v427, 4
      %v509 = vpop.permute.xlu0 %508
      %510 = vrot.lane.b32.xlu0 %v428, 4
      %v511 = vpop.permute.xlu0 %510
      %512 = vrot.lane.b32.xlu0 %v429, 4
      %v513 = vpop.permute.xlu0 %512
      %514 = vrot.lane.b32.xlu0 %v430, 4
      %v515 = vpop.permute.xlu0 %514
      %516 = vrot.lane.b32.xlu0 %v431, 4
      %v517 = vpop.permute.xlu0 %516
      %518 = vrot.lane.b32.xlu0 %v432, 4
      %v519 = vpop.permute.xlu0 %518
      %520 = vrot.lane.b32.xlu0 %v433, 4
      %v521 = vpop.permute.xlu0 %520
      %522 = vrot.lane.b32.xlu0 %v434, 4
      %v523 = vpop.permute.xlu0 %522
      %524 = vrot.lane.b32.xlu0 %v435, 4
      %v525 = vpop.permute.xlu0 %524
      %526 = vrot.lane.b32.xlu0 %v436, 4
      %v527 = vpop.permute.xlu0 %526
      %528 = vrot.lane.b32.xlu0 %v437, 4
      %v529 = vpop.permute.xlu0 %528
      %530 = vrot.lane.b32.xlu0 %v438, 4
      %v531 = vpop.permute.xlu0 %530
      %532 = vrot.lane.b32.xlu0 %v439, 4
      %v533 = vpop.permute.xlu0 %532
      %534 = vrot.lane.b32.xlu0 %v440, 4
      %v535 = vpop.permute.xlu0 %534
      %536 = vrot.lane.b32.xlu0 %v441, 4
      %v537 = vpop.permute.xlu0 %536
      %vm570 = vcmask 64544
      %571 = vst.msk [vmem:[#allocation3] sm:$0xff] %vm570, %v475
      %572 = vst.msk [vmem:[#allocation3 + $0x8] sm:$0xff] %vm570, %v477
      %573 = vst.msk [vmem:[#allocation3 + $0x10] sm:$0xff] %vm570, %v479
      %574 = vst.msk [vmem:[#allocation3 + $0x18] sm:$0xff] %vm570, %v481
      %575 = vst.msk [vmem:[#allocation3 + $0x20] sm:$0xff] %vm570, %v483
      %576 = vst.msk [vmem:[#allocation3 + $0x28] sm:$0xff] %vm570, %v485
      %577 = vst.msk [vmem:[#allocation3 + $0x30] sm:$0xff] %vm570, %v487
      %578 = vst.msk [vmem:[#allocation3 + $0x38] sm:$0xff] %vm570, %v489
      %579 = vst.msk [vmem:[#allocation3 + $0x40] sm:$0xff] %vm570, %v491
      %580 = vst.msk [vmem:[#allocation3 + $0x48] sm:$0xff] %vm570, %v493
      %581 = vst.msk [vmem:[#allocation3 + $0x50] sm:$0xff] %vm570, %v495
      %582 = vst.msk [vmem:[#allocation3 + $0x58] sm:$0xff] %vm570, %v497
      %583 = vst.msk [vmem:[#allocation3 + $0x60] sm:$0xff] %vm570, %v499
      %584 = vst.msk [vmem:[#allocation3 + $0x68] sm:$0xff] %vm570, %v501
      %585 = vst.msk [vmem:[#allocation3 + $0x70] sm:$0xff] %vm570, %v503
      %586 = vst.msk [vmem:[#allocation3 + $0x78] sm:$0xff] %vm570, %v505
      %587 = vst.msk [vmem:[#allocation3 + $0x80] sm:$0xff] %vm570, %v507
      %588 = vst.msk [vmem:[#allocation3 + $0x88] sm:$0xff] %vm570, %v509
      %589 = vst.msk [vmem:[#allocation3 + $0x90] sm:$0xff] %vm570, %v511
      %590 = vst.msk [vmem:[#allocation3 + $0x98] sm:$0xff] %vm570, %v513
      %591 = vst.msk [vmem:[#allocation3 + $0xa0] sm:$0xff] %vm570, %v515
      %592 = vst.msk [vmem:[#allocation3 + $0xa8] sm:$0xff] %vm570, %v517
      %593 = vst.msk [vmem:[#allocation3 + $0xb0] sm:$0xff] %vm570, %v519
      %594 = vst.msk [vmem:[#allocation3 + $0xb8] sm:$0xff] %vm570, %v521
      %595 = vst.msk [vmem:[#allocation3 + $0xc0] sm:$0xff] %vm570, %v523
      %596 = vst.msk [vmem:[#allocation3 + $0xc8] sm:$0xff] %vm570, %v525
      %597 = vst.msk [vmem:[#allocation3 + $0xd0] sm:$0xff] %vm570, %v527
      %598 = vst.msk [vmem:[#allocation3 + $0xd8] sm:$0xff] %vm570, %v529
      %599 = vst.msk [vmem:[#allocation3 + $0xe0] sm:$0xff] %vm570, %v531
      %600 = vst.msk [vmem:[#allocation3 + $0xe8] sm:$0xff] %vm570, %v533
      %601 = vst.msk [vmem:[#allocation3 + $0xf0] sm:$0xff] %vm570, %v535
      %602 = vst.msk [vmem:[#allocation3 + $0xf8] sm:$0xff] %vm570, %v537
      %v603 = vld [vmem:[#allocation2 + $0x2] sm:$0xff]
      %v604 = vld [vmem:[#allocation2 + $0xa] sm:$0xff]
      %v605 = vld [vmem:[#allocation2 + $0x1a] sm:$0xff]
      %v606 = vld [vmem:[#allocation2 + $0x22] sm:$0xff]
      %v607 = vld [vmem:[#allocation2 + $0x32] sm:$0xff]
      %v608 = vld [vmem:[#allocation2 + $0x3a] sm:$0xff]
      %v609 = vld [vmem:[#allocation2 + $0x4a] sm:$0xff]
      %v610 = vld [vmem:[#allocation2 + $0x52] sm:$0xff]
      %v611 = vld [vmem:[#allocation2 + $0x62] sm:$0xff]
      %v612 = vld [vmem:[#allocation2 + $0x6a] sm:$0xff]
      %v613 = vld [vmem:[#allocation2 + $0x7a] sm:$0xff]
      %v614 = vld [vmem:[#allocation2 + $0x82] sm:$0xff]
      %v615 = vld [vmem:[#allocation2 + $0x92] sm:$0xff]
      %v616 = vld [vmem:[#allocation2 + $0x9a] sm:$0xff]
      %v617 = vld [vmem:[#allocation2 + $0xaa] sm:$0xff]
      %v618 = vld [vmem:[#allocation2 + $0xb2] sm:$0xff]
      %v619 = vld [vmem:[#allocation2 + $0xc2] sm:$0xff]
      %v620 = vld [vmem:[#allocation2 + $0xca] sm:$0xff]
      %v621 = vld [vmem:[#allocation2 + $0xda] sm:$0xff]
      %v622 = vld [vmem:[#allocation2 + $0xe2] sm:$0xff]
      %v623 = vld [vmem:[#allocation2 + $0xf2] sm:$0xff]
      %v624 = vld [vmem:[#allocation2 + $0xfa] sm:$0xff]
      %v625 = vld [vmem:[#allocation2 + $0x10a] sm:$0xff]
      %v626 = vld [vmem:[#allocation2 + $0x112] sm:$0xff]
      %v627 = vld [vmem:[#allocation2 + $0x122] sm:$0xff]
      %v628 = vld [vmem:[#allocation2 + $0x12a] sm:$0xff]
      %v629 = vld [vmem:[#allocation2 + $0x13a] sm:$0xff]
      %v630 = vld [vmem:[#allocation2 + $0x142] sm:$0xff]
      %v631 = vld [vmem:[#allocation2 + $0x152] sm:$0xff]
      %v632 = vld [vmem:[#allocation2 + $0x15a] sm:$0xff]
      %v633 = vld [vmem:[#allocation2 + $0x16a] sm:$0xff]
      %v634 = vld [vmem:[#allocation2 + $0x172] sm:$0xff]
      %667 = vrot.lane.b32.xlu0 %v603, 8
      %v668 = vpop.permute.xlu0 %667
      %669 = vrot.lane.b32.xlu0 %v604, 8
      %v670 = vpop.permute.xlu0 %669
      %671 = vrot.lane.b32.xlu0 %v605, 8
      %v672 = vpop.permute.xlu0 %671
      %673 = vrot.lane.b32.xlu0 %v606, 8
      %v674 = vpop.permute.xlu0 %673
      %675 = vrot.lane.b32.xlu0 %v607, 8
      %v676 = vpop.permute.xlu0 %675
      %677 = vrot.lane.b32.xlu0 %v608, 8
      %v678 = vpop.permute.xlu0 %677
      %679 = vrot.lane.b32.xlu0 %v609, 8
      %v680 = vpop.permute.xlu0 %679
      %681 = vrot.lane.b32.xlu0 %v610, 8
      %v682 = vpop.permute.xlu0 %681
      %683 = vrot.lane.b32.xlu0 %v611, 8
      %v684 = vpop.permute.xlu0 %683
      %685 = vrot.lane.b32.xlu0 %v612, 8
      %v686 = vpop.permute.xlu0 %685
      %687 = vrot.lane.b32.xlu0 %v613, 8
      %v688 = vpop.permute.xlu0 %687
      %689 = vrot.lane.b32.xlu0 %v614, 8
      %v690 = vpop.permute.xlu0 %689
      %691 = vrot.lane.b32.xlu0 %v615, 8
      %v692 = vpop.permute.xlu0 %691
      %693 = vrot.lane.b32.xlu0 %v616, 8
      %v694 = vpop.permute.xlu0 %693
      %695 = vrot.lane.b32.xlu0 %v617, 8
      %v696 = vpop.permute.xlu0 %695
      %697 = vrot.lane.b32.xlu0 %v618, 8
      %v698 = vpop.permute.xlu0 %697
      %699 = vrot.lane.b32.xlu0 %v619, 8
      %v700 = vpop.permute.xlu0 %699
      %701 = vrot.lane.b32.xlu0 %v620, 8
      %v702 = vpop.permute.xlu0 %701
      %703 = vrot.lane.b32.xlu0 %v621, 8
      %v704 = vpop.permute.xlu0 %703
      %705 = vrot.lane.b32.xlu0 %v622, 8
      %v706 = vpop.permute.xlu0 %705
      %707 = vrot.lane.b32.xlu0 %v623, 8
      %v708 = vpop.permute.xlu0 %707
      %709 = vrot.lane.b32.xlu0 %v624, 8
      %v710 = vpop.permute.xlu0 %709
      %711 = vrot.lane.b32.xlu0 %v625, 8
      %v712 = vpop.permute.xlu0 %711
      %713 = vrot.lane.b32.xlu0 %v626, 8
      %v714 = vpop.permute.xlu0 %713
      %715 = vrot.lane.b32.xlu0 %v627, 8
      %v716 = vpop.permute.xlu0 %715
      %717 = vrot.lane.b32.xlu0 %v628, 8
      %v718 = vpop.permute.xlu0 %717
      %719 = vrot.lane.b32.xlu0 %v629, 8
      %v720 = vpop.permute.xlu0 %719
      %721 = vrot.lane.b32.xlu0 %v630, 8
      %v722 = vpop.permute.xlu0 %721
      %723 = vrot.lane.b32.xlu0 %v631, 8
      %v724 = vpop.permute.xlu0 %723
      %725 = vrot.lane.b32.xlu0 %v632, 8
      %v726 = vpop.permute.xlu0 %725
      %727 = vrot.lane.b32.xlu0 %v633, 8
      %v728 = vpop.permute.xlu0 %727
      %729 = vrot.lane.b32.xlu0 %v634, 8
      %v730 = vpop.permute.xlu0 %729
      %vm763 = vcmask 97344
      %764 = vst.msk [vmem:[#allocation3] sm:$0xff] %vm763, %v668
      %765 = vst.msk [vmem:[#allocation3 + $0x8] sm:$0xff] %vm763, %v670
      %766 = vst.msk [vmem:[#allocation3 + $0x10] sm:$0xff] %vm763, %v672
      %767 = vst.msk [vmem:[#allocation3 + $0x18] sm:$0xff] %vm763, %v674
      %768 = vst.msk [vmem:[#allocation3 + $0x20] sm:$0xff] %vm763, %v676
      %769 = vst.msk [vmem:[#allocation3 + $0x28] sm:$0xff] %vm763, %v678
      %770 = vst.msk [vmem:[#allocation3 + $0x30] sm:$0xff] %vm763, %v680
      %771 = vst.msk [vmem:[#allocation3 + $0x38] sm:$0xff] %vm763, %v682
      %772 = vst.msk [vmem:[#allocation3 + $0x40] sm:$0xff] %vm763, %v684
      %773 = vst.msk [vmem:[#allocation3 + $0x48] sm:$0xff] %vm763, %v686
      %774 = vst.msk [vmem:[#allocation3 + $0x50] sm:$0xff] %vm763, %v688
      %775 = vst.msk [vmem:[#allocation3 + $0x58] sm:$0xff] %vm763, %v690
      %776 = vst.msk [vmem:[#allocation3 + $0x60] sm:$0xff] %vm763, %v692
      %777 = vst.msk [vmem:[#allocation3 + $0x68] sm:$0xff] %vm763, %v694
      %778 = vst.msk [vmem:[#allocation3 + $0x70] sm:$0xff] %vm763, %v696
      %779 = vst.msk [vmem:[#allocation3 + $0x78] sm:$0xff] %vm763, %v698
      %780 = vst.msk [vmem:[#allocation3 + $0x80] sm:$0xff] %vm763, %v700
      %781 = vst.msk [vmem:[#allocation3 + $0x88] sm:$0xff] %vm763, %v702
      %782 = vst.msk [vmem:[#allocation3 + $0x90] sm:$0xff] %vm763, %v704
      %783 = vst.msk [vmem:[#allocation3 + $0x98] sm:$0xff] %vm763, %v706
      %784 = vst.msk [vmem:[#allocation3 + $0xa0] sm:$0xff] %vm763, %v708
      %785 = vst.msk [vmem:[#allocation3 + $0xa8] sm:$0xff] %vm763, %v710
      %786 = vst.msk [vmem:[#allocation3 + $0xb0] sm:$0xff] %vm763, %v712
      %787 = vst.msk [vmem:[#allocation3 + $0xb8] sm:$0xff] %vm763, %v714
      %788 = vst.msk [vmem:[#allocation3 + $0xc0] sm:$0xff] %vm763, %v716
      %789 = vst.msk [vmem:[#allocation3 + $0xc8] sm:$0xff] %vm763, %v718
      %790 = vst.msk [vmem:[#allocation3 + $0xd0] sm:$0xff] %vm763, %v720
      %791 = vst.msk [vmem:[#allocation3 + $0xd8] sm:$0xff] %vm763, %v722
      %792 = vst.msk [vmem:[#allocation3 + $0xe0] sm:$0xff] %vm763, %v724
      %793 = vst.msk [vmem:[#allocation3 + $0xe8] sm:$0xff] %vm763, %v726
      %794 = vst.msk [vmem:[#allocation3 + $0xf0] sm:$0xff] %vm763, %v728
      %795 = vst.msk [vmem:[#allocation3 + $0xf8] sm:$0xff] %vm763, %v730
      %v796 = vld [vmem:[%s313] sm:$0xff]
      %v797 = vld [vmem:[%s313 + $0x8] sm:$0xff]
      %v798 = vld [vmem:[%s313 + $0x18] sm:$0xff]
      %v799 = vld [vmem:[%s313 + $0x20] sm:$0xff]
      %v800 = vld [vmem:[%s313 + $0x30] sm:$0xff]
      %v801 = vld [vmem:[%s313 + $0x38] sm:$0xff]
      %v802 = vld [vmem:[%s313 + $0x48] sm:$0xff]
      %v803 = vld [vmem:[%s313 + $0x50] sm:$0xff]
      %v804 = vld [vmem:[%s313 + $0x60] sm:$0xff]
      %v805 = vld [vmem:[%s313 + $0x68] sm:$0xff]
      %v806 = vld [vmem:[%s313 + $0x78] sm:$0xff]
      %v807 = vld [vmem:[%s313 + $0x80] sm:$0xff]
      %v808 = vld [vmem:[%s313 + $0x90] sm:$0xff]
      %v809 = vld [vmem:[%s313 + $0x98] sm:$0xff]
      %v810 = vld [vmem:[%s313 + $0xa8] sm:$0xff]
      %v811 = vld [vmem:[%s313 + $0xb0] sm:$0xff]
      %v812 = vld [vmem:[%s313 + $0xc0] sm:$0xff]
      %v813 = vld [vmem:[%s313 + $0xc8] sm:$0xff]
      %v814 = vld [vmem:[%s313 + $0xd8] sm:$0xff]
      %v815 = vld [vmem:[%s313 + $0xe0] sm:$0xff]
      %v816 = vld [vmem:[%s313 + $0xf0] sm:$0xff]
      %v817 = vld [vmem:[%s313 + $0xf8] sm:$0xff]
      %v818 = vld [vmem:[%s313 + $0x108] sm:$0xff]
      %v819 = vld [vmem:[%s313 + $0x110] sm:$0xff]
      %v820 = vld [vmem:[%s313 + $0x120] sm:$0xff]
      %v821 = vld [vmem:[%s313 + $0x128] sm:$0xff]
      %v822 = vld [vmem:[%s313 + $0x138] sm:$0xff]
      %v823 = vld [vmem:[%s313 + $0x140] sm:$0xff]
      %v824 = vld [vmem:[%s313 + $0x150] sm:$0xff]
      %v825 = vld [vmem:[%s313 + $0x158] sm:$0xff]
      %v826 = vld [vmem:[%s313 + $0x168] sm:$0xff]
      %v827 = vld [vmem:[%s313 + $0x170] sm:$0xff]
      %860 = vrot.lane.b32.xlu0 %v796, 12
      %v861 = vpop.permute.xlu0 %860
      %862 = vrot.lane.b32.xlu0 %v797, 12
      %v863 = vpop.permute.xlu0 %862
      %864 = vrot.lane.b32.xlu0 %v798, 12
      %v865 = vpop.permute.xlu0 %864
      %866 = vrot.lane.b32.xlu0 %v799, 12
      %v867 = vpop.permute.xlu0 %866
      %868 = vrot.lane.b32.xlu0 %v800, 12
      %v869 = vpop.permute.xlu0 %868
      %870 = vrot.lane.b32.xlu0 %v801, 12
      %v871 = vpop.permute.xlu0 %870
      %872 = vrot.lane.b32.xlu0 %v802, 12
      %v873 = vpop.permute.xlu0 %872
      %874 = vrot.lane.b32.xlu0 %v803, 12
      %v875 = vpop.permute.xlu0 %874
      %876 = vrot.lane.b32.xlu0 %v804, 12
      %v877 = vpop.permute.xlu0 %876
      %878 = vrot.lane.b32.xlu0 %v805, 12
      %v879 = vpop.permute.xlu0 %878
      %880 = vrot.lane.b32.xlu0 %v806, 12
      %v881 = vpop.permute.xlu0 %880
      %882 = vrot.lane.b32.xlu0 %v807, 12
      %v883 = vpop.permute.xlu0 %882
      %884 = vrot.lane.b32.xlu0 %v808, 12
      %v885 = vpop.permute.xlu0 %884
      %886 = vrot.lane.b32.xlu0 %v809, 12
      %v887 = vpop.permute.xlu0 %886
      %888 = vrot.lane.b32.xlu0 %v810, 12
      %v889 = vpop.permute.xlu0 %888
      %890 = vrot.lane.b32.xlu0 %v811, 12
      %v891 = vpop.permute.xlu0 %890
      %892 = vrot.lane.b32.xlu0 %v812, 12
      %v893 = vpop.permute.xlu0 %892
      %894 = vrot.lane.b32.xlu0 %v813, 12
      %v895 = vpop.permute.xlu0 %894
      %896 = vrot.lane.b32.xlu0 %v814, 12
      %v897 = vpop.permute.xlu0 %896
      %898 = vrot.lane.b32.xlu0 %v815, 12
      %v899 = vpop.permute.xlu0 %898
      %900 = vrot.lane.b32.xlu0 %v816, 12
      %v901 = vpop.permute.xlu0 %900
      %902 = vrot.lane.b32.xlu0 %v817, 12
      %v903 = vpop.permute.xlu0 %902
      %904 = vrot.lane.b32.xlu0 %v818, 12
      %v905 = vpop.permute.xlu0 %904
      %906 = vrot.lane.b32.xlu0 %v819, 12
      %v907 = vpop.permute.xlu0 %906
      %908 = vrot.lane.b32.xlu0 %v820, 12
      %v909 = vpop.permute.xlu0 %908
      %910 = vrot.lane.b32.xlu0 %v821, 12
      %v911 = vpop.permute.xlu0 %910
      %912 = vrot.lane.b32.xlu0 %v822, 12
      %v913 = vpop.permute.xlu0 %912
      %914 = vrot.lane.b32.xlu0 %v823, 12
      %v915 = vpop.permute.xlu0 %914
      %916 = vrot.lane.b32.xlu0 %v824, 12
      %v917 = vpop.permute.xlu0 %916
      %918 = vrot.lane.b32.xlu0 %v825, 12
      %v919 = vpop.permute.xlu0 %918
      %920 = vrot.lane.b32.xlu0 %v826, 12
      %v921 = vpop.permute.xlu0 %920
      %922 = vrot.lane.b32.xlu0 %v827, 12
      %v923 = vpop.permute.xlu0 %922
      %vm956 = vcmask 130144
      %957 = vst.msk [vmem:[#allocation3] sm:$0xff] %vm956, %v861
      %958 = vst.msk [vmem:[#allocation3 + $0x8] sm:$0xff] %vm956, %v863
      %959 = vst.msk [vmem:[#allocation3 + $0x10] sm:$0xff] %vm956, %v865
      %960 = vst.msk [vmem:[#allocation3 + $0x18] sm:$0xff] %vm956, %v867
      %961 = vst.msk [vmem:[#allocation3 + $0x20] sm:$0xff] %vm956, %v869
      %962 = vst.msk [vmem:[#allocation3 + $0x28] sm:$0xff] %vm956, %v871
      %963 = vst.msk [vmem:[#allocation3 + $0x30] sm:$0xff] %vm956, %v873
      %964 = vst.msk [vmem:[#allocation3 + $0x38] sm:$0xff] %vm956, %v875
      %965 = vst.msk [vmem:[#allocation3 + $0x40] sm:$0xff] %vm956, %v877
      %966 = vst.msk [vmem:[#allocation3 + $0x48] sm:$0xff] %vm956, %v879
      %967 = vst.msk [vmem:[#allocation3 + $0x50] sm:$0xff] %vm956, %v881
      %968 = vst.msk [vmem:[#allocation3 + $0x58] sm:$0xff] %vm956, %v883
      %969 = vst.msk [vmem:[#allocation3 + $0x60] sm:$0xff] %vm956, %v885
      %970 = vst.msk [vmem:[#allocation3 + $0x68] sm:$0xff] %vm956, %v887
      %971 = vst.msk [vmem:[#allocation3 + $0x70] sm:$0xff] %vm956, %v889
      %972 = vst.msk [vmem:[#allocation3 + $0x78] sm:$0xff] %vm956, %v891
      %973 = vst.msk [vmem:[#allocation3 + $0x80] sm:$0xff] %vm956, %v893
      %974 = vst.msk [vmem:[#allocation3 + $0x88] sm:$0xff] %vm956, %v895
      %975 = vst.msk [vmem:[#allocation3 + $0x90] sm:$0xff] %vm956, %v897
      %976 = vst.msk [vmem:[#allocation3 + $0x98] sm:$0xff] %vm956, %v899
      %977 = vst.msk [vmem:[#allocation3 + $0xa0] sm:$0xff] %vm956, %v901
      %978 = vst.msk [vmem:[#allocation3 + $0xa8] sm:$0xff] %vm956, %v903
      %979 = vst.msk [vmem:[#allocation3 + $0xb0] sm:$0xff] %vm956, %v905
      %980 = vst.msk [vmem:[#allocation3 + $0xb8] sm:$0xff] %vm956, %v907
      %981 = vst.msk [vmem:[#allocation3 + $0xc0] sm:$0xff] %vm956, %v909
      %982 = vst.msk [vmem:[#allocation3 + $0xc8] sm:$0xff] %vm956, %v911
      %983 = vst.msk [vmem:[#allocation3 + $0xd0] sm:$0xff] %vm956, %v913
      %984 = vst.msk [vmem:[#allocation3 + $0xd8] sm:$0xff] %vm956, %v915
      %985 = vst.msk [vmem:[#allocation3 + $0xe0] sm:$0xff] %vm956, %v917
      %986 = vst.msk [vmem:[#allocation3 + $0xe8] sm:$0xff] %vm956, %v919
      %987 = vst.msk [vmem:[#allocation3 + $0xf0] sm:$0xff] %vm956, %v921
      %988 = vst.msk [vmem:[#allocation3 + $0xf8] sm:$0xff] %vm956, %v923
      %v989 = vld [vmem:[%s313 + $0x1] sm:$0xff]
      %v990 = vld [vmem:[%s313 + $0x9] sm:$0xff]
      %v991 = vld [vmem:[%s313 + $0x19] sm:$0xff]
      %v992 = vld [vmem:[%s313 + $0x21] sm:$0xff]
      %v993 = vld [vmem:[%s313 + $0x31] sm:$0xff]
      %v994 = vld [vmem:[%s313 + $0x39] sm:$0xff]
      %v995 = vld [vmem:[%s313 + $0x49] sm:$0xff]
      %v996 = vld [vmem:[%s313 + $0x51] sm:$0xff]
      %v997 = vld [vmem:[%s313 + $0x61] sm:$0xff]
      %v998 = vld [vmem:[%s313 + $0x69] sm:$0xff]
      %v999 = vld [vmem:[%s313 + $0x79] sm:$0xff]
      %v1000 = vld [vmem:[%s313 + $0x81] sm:$0xff]
      %v1001 = vld [vmem:[%s313 + $0x91] sm:$0xff]
      %v1002 = vld [vmem:[%s313 + $0x99] sm:$0xff]
      %v1003 = vld [vmem:[%s313 + $0xa9] sm:$0xff]
      %v1004 = vld [vmem:[%s313 + $0xb1] sm:$0xff]
      %v1005 = vld [vmem:[%s313 + $0xc1] sm:$0xff]
      %v1006 = vld [vmem:[%s313 + $0xc9] sm:$0xff]
      %v1007 = vld [vmem:[%s313 + $0xd9] sm:$0xff]
      %v1008 = vld [vmem:[%s313 + $0xe1] sm:$0xff]
      %v1009 = vld [vmem:[%s313 + $0xf1] sm:$0xff]
      %v1010 = vld [vmem:[%s313 + $0xf9] sm:$0xff]
      %v1011 = vld [vmem:[%s313 + $0x109] sm:$0xff]
      %v1012 = vld [vmem:[%s313 + $0x111] sm:$0xff]
      %v1013 = vld [vmem:[%s313 + $0x121] sm:$0xff]
      %v1014 = vld [vmem:[%s313 + $0x129] sm:$0xff]
      %v1015 = vld [vmem:[%s313 + $0x139] sm:$0xff]
      %v1016 = vld [vmem:[%s313 + $0x141] sm:$0xff]
      %v1017 = vld [vmem:[%s313 + $0x151] sm:$0xff]
      %v1018 = vld [vmem:[%s313 + $0x159] sm:$0xff]
      %v1019 = vld [vmem:[%s313 + $0x169] sm:$0xff]
      %v1020 = vld [vmem:[%s313 + $0x171] sm:$0xff]
      %1053 = vrot.lane.b32.xlu0 %v989, 16
      %v1054 = vpop.permute.xlu0 %1053
      %1055 = vrot.lane.b32.xlu0 %v990, 16
      %v1056 = vpop.permute.xlu0 %1055
      %1057 = vrot.lane.b32.xlu0 %v991, 16
      %v1058 = vpop.permute.xlu0 %1057
      %1059 = vrot.lane.b32.xlu0 %v992, 16
      %v1060 = vpop.permute.xlu0 %1059
      %1061 = vrot.lane.b32.xlu0 %v993, 16
      %v1062 = vpop.permute.xlu0 %1061
      %1063 = vrot.lane.b32.xlu0 %v994, 16
      %v1064 = vpop.permute.xlu0 %1063
      %1065 = vrot.lane.b32.xlu0 %v995, 16
      %v1066 = vpop.permute.xlu0 %1065
      %1067 = vrot.lane.b32.xlu0 %v996, 16
      %v1068 = vpop.permute.xlu0 %1067
      %1069 = vrot.lane.b32.xlu0 %v997, 16
      %v1070 = vpop.permute.xlu0 %1069
      %1071 = vrot.lane.b32.xlu0 %v998, 16
      %v1072 = vpop.permute.xlu0 %1071
      %1073 = vrot.lane.b32.xlu0 %v999, 16
      %v1074 = vpop.permute.xlu0 %1073
      %1075 = vrot.lane.b32.xlu0 %v1000, 16
      %v1076 = vpop.permute.xlu0 %1075
      %1077 = vrot.lane.b32.xlu0 %v1001, 16
      %v1078 = vpop.permute.xlu0 %1077
      %1079 = vrot.lane.b32.xlu0 %v1002, 16
      %v1080 = vpop.permute.xlu0 %1079
      %1081 = vrot.lane.b32.xlu0 %v1003, 16
      %v1082 = vpop.permute.xlu0 %1081
      %1083 = vrot.lane.b32.xlu0 %v1004, 16
      %v1084 = vpop.permute.xlu0 %1083
      %1085 = vrot.lane.b32.xlu0 %v1005, 16
      %v1086 = vpop.permute.xlu0 %1085
      %1087 = vrot.lane.b32.xlu0 %v1006, 16
      %v1088 = vpop.permute.xlu0 %1087
      %1089 = vrot.lane.b32.xlu0 %v1007, 16
      %v1090 = vpop.permute.xlu0 %1089
      %1091 = vrot.lane.b32.xlu0 %v1008, 16
      %v1092 = vpop.permute.xlu0 %1091
      %1093 = vrot.lane.b32.xlu0 %v1009, 16
      %v1094 = vpop.permute.xlu0 %1093
      %1095 = vrot.lane.b32.xlu0 %v1010, 16
      %v1096 = vpop.permute.xlu0 %1095
      %1097 = vrot.lane.b32.xlu0 %v1011, 16
      %v1098 = vpop.permute.xlu0 %1097
      %1099 = vrot.lane.b32.xlu0 %v1012, 16
      %v1100 = vpop.permute.xlu0 %1099
      %1101 = vrot.lane.b32.xlu0 %v1013, 16
      %v1102 = vpop.permute.xlu0 %1101
      %1103 = vrot.lane.b32.xlu0 %v1014, 16
      %v1104 = vpop.permute.xlu0 %1103
      %1105 = vrot.lane.b32.xlu0 %v1015, 16
      %v1106 = vpop.permute.xlu0 %1105
      %1107 = vrot.lane.b32.xlu0 %v1016, 16
      %v1108 = vpop.permute.xlu0 %1107
      %1109 = vrot.lane.b32.xlu0 %v1017, 16
      %v1110 = vpop.permute.xlu0 %1109
      %1111 = vrot.lane.b32.xlu0 %v1018, 16
      %v1112 = vpop.permute.xlu0 %1111
      %1113 = vrot.lane.b32.xlu0 %v1019, 16
      %v1114 = vpop.permute.xlu0 %1113
      %1115 = vrot.lane.b32.xlu0 %v1020, 16
      %v1116 = vpop.permute.xlu0 %1115
      %vm1149 = vcmask 162944
      %1150 = vst.msk [vmem:[#allocation3] sm:$0xff] %vm1149, %v1054
      %1151 = vst.msk [vmem:[#allocation3 + $0x8] sm:$0xff] %vm1149, %v1056
      %1152 = vst.msk [vmem:[#allocation3 + $0x10] sm:$0xff] %vm1149, %v1058
      %1153 = vst.msk [vmem:[#allocation3 + $0x18] sm:$0xff] %vm1149, %v1060
      %1154 = vst.msk [vmem:[#allocation3 + $0x20] sm:$0xff] %vm1149, %v1062
      %1155 = vst.msk [vmem:[#allocation3 + $0x28] sm:$0xff] %vm1149, %v1064
      %1156 = vst.msk [vmem:[#allocation3 + $0x30] sm:$0xff] %vm1149, %v1066
      %1157 = vst.msk [vmem:[#allocation3 + $0x38] sm:$0xff] %vm1149, %v1068
      %1158 = vst.msk [vmem:[#allocation3 + $0x40] sm:$0xff] %vm1149, %v1070
      %1159 = vst.msk [vmem:[#allocation3 + $0x48] sm:$0xff] %vm1149, %v1072
      %1160 = vst.msk [vmem:[#allocation3 + $0x50] sm:$0xff] %vm1149, %v1074
      %1161 = vst.msk [vmem:[#allocation3 + $0x58] sm:$0xff] %vm1149, %v1076
      %1162 = vst.msk [vmem:[#allocation3 + $0x60] sm:$0xff] %vm1149, %v1078
      %1163 = vst.msk [vmem:[#allocation3 + $0x68] sm:$0xff] %vm1149, %v1080
      %1164 = vst.msk [vmem:[#allocation3 + $0x70] sm:$0xff] %vm1149, %v1082
      %1165 = vst.msk [vmem:[#allocation3 + $0x78] sm:$0xff] %vm1149, %v1084
      %1166 = vst.msk [vmem:[#allocation3 + $0x80] sm:$0xff] %vm1149, %v1086
      %1167 = vst.msk [vmem:[#allocation3 + $0x88] sm:$0xff] %vm1149, %v1088
      %1168 = vst.msk [vmem:[#allocation3 + $0x90] sm:$0xff] %vm1149, %v1090
      %1169 = vst.msk [vmem:[#allocation3 + $0x98] sm:$0xff] %vm1149, %v1092
      %1170 = vst.msk [vmem:[#allocation3 + $0xa0] sm:$0xff] %vm1149, %v1094
      %1171 = vst.msk [vmem:[#allocation3 + $0xa8] sm:$0xff] %vm1149, %v1096
      %1172 = vst.msk [vmem:[#allocation3 + $0xb0] sm:$0xff] %vm1149, %v1098
      %1173 = vst.msk [vmem:[#allocation3 + $0xb8] sm:$0xff] %vm1149, %v1100
      %1174 = vst.msk [vmem:[#allocation3 + $0xc0] sm:$0xff] %vm1149, %v1102
      %1175 = vst.msk [vmem:[#allocation3 + $0xc8] sm:$0xff] %vm1149, %v1104
      %1176 = vst.msk [vmem:[#allocation3 + $0xd0] sm:$0xff] %vm1149, %v1106
      %1177 = vst.msk [vmem:[#allocation3 + $0xd8] sm:$0xff] %vm1149, %v1108
      %1178 = vst.msk [vmem:[#allocation3 + $0xe0] sm:$0xff] %vm1149, %v1110
      %1179 = vst.msk [vmem:[#allocation3 + $0xe8] sm:$0xff] %vm1149, %v1112
      %1180 = vst.msk [vmem:[#allocation3 + $0xf0] sm:$0xff] %vm1149, %v1114
      %1181 = vst.msk [vmem:[#allocation3 + $0xf8] sm:$0xff] %vm1149, %v1116
      %v1182 = vld [vmem:[%s313 + $0x2] sm:$0xff]
      %v1183 = vld [vmem:[%s313 + $0xa] sm:$0xff]
      %v1184 = vld [vmem:[%s313 + $0x1a] sm:$0xff]
      %v1185 = vld [vmem:[%s313 + $0x22] sm:$0xff]
      %v1186 = vld [vmem:[%s313 + $0x32] sm:$0xff]
      %v1187 = vld [vmem:[%s313 + $0x3a] sm:$0xff]
      %v1188 = vld [vmem:[%s313 + $0x4a] sm:$0xff]
      %v1189 = vld [vmem:[%s313 + $0x52] sm:$0xff]
      %v1190 = vld [vmem:[%s313 + $0x62] sm:$0xff]
      %v1191 = vld [vmem:[%s313 + $0x6a] sm:$0xff]
      %v1192 = vld [vmem:[%s313 + $0x7a] sm:$0xff]
      %v1193 = vld [vmem:[%s313 + $0x82] sm:$0xff]
      %v1194 = vld [vmem:[%s313 + $0x92] sm:$0xff]
      %v1195 = vld [vmem:[%s313 + $0x9a] sm:$0xff]
      %v1196 = vld [vmem:[%s313 + $0xaa] sm:$0xff]
      %v1197 = vld [vmem:[%s313 + $0xb2] sm:$0xff]
      %v1198 = vld [vmem:[%s313 + $0xc2] sm:$0xff]
      %v1199 = vld [vmem:[%s313 + $0xca] sm:$0xff]
      %v1200 = vld [vmem:[%s313 + $0xda] sm:$0xff]
      %v1201 = vld [vmem:[%s313 + $0xe2] sm:$0xff]
      %v1202 = vld [vmem:[%s313 + $0xf2] sm:$0xff]
      %v1203 = vld [vmem:[%s313 + $0xfa] sm:$0xff]
      %v1204 = vld [vmem:[%s313 + $0x10a] sm:$0xff]
      %v1205 = vld [vmem:[%s313 + $0x112] sm:$0xff]
      %v1206 = vld [vmem:[%s313 + $0x122] sm:$0xff]
      %v1207 = vld [vmem:[%s313 + $0x12a] sm:$0xff]
      %v1208 = vld [vmem:[%s313 + $0x13a] sm:$0xff]
      %v1209 = vld [vmem:[%s313 + $0x142] sm:$0xff]
      %v1210 = vld [vmem:[%s313 + $0x152] sm:$0xff]
      %v1211 = vld [vmem:[%s313 + $0x15a] sm:$0xff]
      %v1212 = vld [vmem:[%s313 + $0x16a] sm:$0xff]
      %v1213 = vld [vmem:[%s313 + $0x172] sm:$0xff]
      %1246 = vrot.lane.b32.xlu0 %v1182, 20
      %v1247 = vpop.permute.xlu0 %1246
      %1248 = vrot.lane.b32.xlu0 %v1183, 20
      %v1249 = vpop.permute.xlu0 %1248
      %1250 = vrot.lane.b32.xlu0 %v1184, 20
      %v1251 = vpop.permute.xlu0 %1250
      %1252 = vrot.lane.b32.xlu0 %v1185, 20
      %v1253 = vpop.permute.xlu0 %1252
      %1254 = vrot.lane.b32.xlu0 %v1186, 20
      %v1255 = vpop.permute.xlu0 %1254
      %1256 = vrot.lane.b32.xlu0 %v1187, 20
      %v1257 = vpop.permute.xlu0 %1256
      %1258 = vrot.lane.b32.xlu0 %v1188, 20
      %v1259 = vpop.permute.xlu0 %1258
      %1260 = vrot.lane.b32.xlu0 %v1189, 20
      %v1261 = vpop.permute.xlu0 %1260
      %1262 = vrot.lane.b32.xlu0 %v1190, 20
      %v1263 = vpop.permute.xlu0 %1262
      %1264 = vrot.lane.b32.xlu0 %v1191, 20
      %v1265 = vpop.permute.xlu0 %1264
      %1266 = vrot.lane.b32.xlu0 %v1192, 20
      %v1267 = vpop.permute.xlu0 %1266
      %1268 = vrot.lane.b32.xlu0 %v1193, 20
      %v1269 = vpop.permute.xlu0 %1268
      %1270 = vrot.lane.b32.xlu0 %v1194, 20
      %v1271 = vpop.permute.xlu0 %1270
      %1272 = vrot.lane.b32.xlu0 %v1195, 20
      %v1273 = vpop.permute.xlu0 %1272
      %1274 = vrot.lane.b32.xlu0 %v1196, 20
      %v1275 = vpop.permute.xlu0 %1274
      %1276 = vrot.lane.b32.xlu0 %v1197, 20
      %v1277 = vpop.permute.xlu0 %1276
      %1278 = vrot.lane.b32.xlu0 %v1198, 20
      %v1279 = vpop.permute.xlu0 %1278
      %1280 = vrot.lane.b32.xlu0 %v1199, 20
      %v1281 = vpop.permute.xlu0 %1280
      %1282 = vrot.lane.b32.xlu0 %v1200, 20
      %v1283 = vpop.permute.xlu0 %1282
      %1284 = vrot.lane.b32.xlu0 %v1201, 20
      %v1285 = vpop.permute.xlu0 %1284
      %1286 = vrot.lane.b32.xlu0 %v1202, 20
      %v1287 = vpop.permute.xlu0 %1286
      %1288 = vrot.lane.b32.xlu0 %v1203, 20
      %v1289 = vpop.permute.xlu0 %1288
      %1290 = vrot.lane.b32.xlu0 %v1204, 20
      %v1291 = vpop.permute.xlu0 %1290
      %1292 = vrot.lane.b32.xlu0 %v1205, 20
      %v1293 = vpop.permute.xlu0 %1292
      %1294 = vrot.lane.b32.xlu0 %v1206, 20
      %v1295 = vpop.permute.xlu0 %1294
      %1296 = vrot.lane.b32.xlu0 %v1207, 20
      %v1297 = vpop.permute.xlu0 %1296
      %1298 = vrot.lane.b32.xlu0 %v1208, 20
      %v1299 = vpop.permute.xlu0 %1298
      %1300 = vrot.lane.b32.xlu0 %v1209, 20
      %v1301 = vpop.permute.xlu0 %1300
      %1302 = vrot.lane.b32.xlu0 %v1210, 20
      %v1303 = vpop.permute.xlu0 %1302
      %1304 = vrot.lane.b32.xlu0 %v1211, 20
      %v1305 = vpop.permute.xlu0 %1304
      %1306 = vrot.lane.b32.xlu0 %v1212, 20
      %v1307 = vpop.permute.xlu0 %1306
      %1308 = vrot.lane.b32.xlu0 %v1213, 20
      %v1309 = vpop.permute.xlu0 %1308
      %vm1342 = vcmask 195744
      %1343 = vst.msk [vmem:[#allocation3] sm:$0xff] %vm1342, %v1247
      %1344 = vst.msk [vmem:[#allocation3 + $0x8] sm:$0xff] %vm1342, %v1249
      %1345 = vst.msk [vmem:[#allocation3 + $0x10] sm:$0xff] %vm1342, %v1251
      %1346 = vst.msk [vmem:[#allocation3 + $0x18] sm:$0xff] %vm1342, %v1253
      %1347 = vst.msk [vmem:[#allocation3 + $0x20] sm:$0xff] %vm1342, %v1255
      %1348 = vst.msk [vmem:[#allocation3 + $0x28] sm:$0xff] %vm1342, %v1257
      %1349 = vst.msk [vmem:[#allocation3 + $0x30] sm:$0xff] %vm1342, %v1259
      %1350 = vst.msk [vmem:[#allocation3 + $0x38] sm:$0xff] %vm1342, %v1261
      %1351 = vst.msk [vmem:[#allocation3 + $0x40] sm:$0xff] %vm1342, %v1263
      %1352 = vst.msk [vmem:[#allocation3 + $0x48] sm:$0xff] %vm1342, %v1265
      %1353 = vst.msk [vmem:[#allocation3 + $0x50] sm:$0xff] %vm1342, %v1267
      %1354 = vst.msk [vmem:[#allocation3 + $0x58] sm:$0xff] %vm1342, %v1269
      %1355 = vst.msk [vmem:[#allocation3 + $0x60] sm:$0xff] %vm1342, %v1271
      %1356 = vst.msk [vmem:[#allocation3 + $0x68] sm:$0xff] %vm1342, %v1273
      %1357 = vst.msk [vmem:[#allocation3 + $0x70] sm:$0xff] %vm1342, %v1275
      %1358 = vst.msk [vmem:[#allocation3 + $0x78] sm:$0xff] %vm1342, %v1277
      %1359 = vst.msk [vmem:[#allocation3 + $0x80] sm:$0xff] %vm1342, %v1279
      %1360 = vst.msk [vmem:[#allocation3 + $0x88] sm:$0xff] %vm1342, %v1281
      %1361 = vst.msk [vmem:[#allocation3 + $0x90] sm:$0xff] %vm1342, %v1283
      %1362 = vst.msk [vmem:[#allocation3 + $0x98] sm:$0xff] %vm1342, %v1285
      %1363 = vst.msk [vmem:[#allocation3 + $0xa0] sm:$0xff] %vm1342, %v1287
      %1364 = vst.msk [vmem:[#allocation3 + $0xa8] sm:$0xff] %vm1342, %v1289
      %1365 = vst.msk [vmem:[#allocation3 + $0xb0] sm:$0xff] %vm1342, %v1291
      %1366 = vst.msk [vmem:[#allocation3 + $0xb8] sm:$0xff] %vm1342, %v1293
      %1367 = vst.msk [vmem:[#allocation3 + $0xc0] sm:$0xff] %vm1342, %v1295
      %1368 = vst.msk [vmem:[#allocation3 + $0xc8] sm:$0xff] %vm1342, %v1297
      %1369 = vst.msk [vmem:[#allocation3 + $0xd0] sm:$0xff] %vm1342, %v1299
      %1370 = vst.msk [vmem:[#allocation3 + $0xd8] sm:$0xff] %vm1342, %v1301
      %1371 = vst.msk [vmem:[#allocation3 + $0xe0] sm:$0xff] %vm1342, %v1303
      %1372 = vst.msk [vmem:[#allocation3 + $0xe8] sm:$0xff] %vm1342, %v1305
      %1373 = vst.msk [vmem:[#allocation3 + $0xf0] sm:$0xff] %vm1342, %v1307
      %1374 = vst.msk [vmem:[#allocation3 + $0xf8] sm:$0xff] %vm1342, %v1309
      %s1375 = scalar_lea.vmem [#allocation2], 48
      %v1376 = vld [vmem:[%s1375] sm:$0xff]
      %v1377 = vld [vmem:[%s1375 + $0x8] sm:$0xff]
      %v1378 = vld [vmem:[%s1375 + $0x18] sm:$0xff]
      %v1379 = vld [vmem:[%s1375 + $0x20] sm:$0xff]
      %v1380 = vld [vmem:[%s1375 + $0x30] sm:$0xff]
      %v1381 = vld [vmem:[%s1375 + $0x38] sm:$0xff]
      %v1382 = vld [vmem:[%s1375 + $0x48] sm:$0xff]
      %v1383 = vld [vmem:[%s1375 + $0x50] sm:$0xff]
      %v1384 = vld [vmem:[%s1375 + $0x60] sm:$0xff]
      %v1385 = vld [vmem:[%s1375 + $0x68] sm:$0xff]
      %v1386 = vld [vmem:[%s1375 + $0x78] sm:$0xff]
      %v1387 = vld [vmem:[%s1375 + $0x80] sm:$0xff]
      %v1388 = vld [vmem:[%s1375 + $0x90] sm:$0xff]
      %v1389 = vld [vmem:[%s1375 + $0x98] sm:$0xff]
      %v1390 = vld [vmem:[%s1375 + $0xa8] sm:$0xff]
      %v1391 = vld [vmem:[%s1375 + $0xb0] sm:$0xff]
      %v1392 = vld [vmem:[%s1375 + $0xc0] sm:$0xff]
      %v1393 = vld [vmem:[%s1375 + $0xc8] sm:$0xff]
      %v1394 = vld [vmem:[%s1375 + $0xd8] sm:$0xff]
      %v1395 = vld [vmem:[%s1375 + $0xe0] sm:$0xff]
      %v1396 = vld [vmem:[%s1375 + $0xf0] sm:$0xff]
      %v1397 = vld [vmem:[%s1375 + $0xf8] sm:$0xff]
      %v1398 = vld [vmem:[%s1375 + $0x108] sm:$0xff]
      %v1399 = vld [vmem:[%s1375 + $0x110] sm:$0xff]
      %v1400 = vld [vmem:[%s1375 + $0x120] sm:$0xff]
      %v1401 = vld [vmem:[%s1375 + $0x128] sm:$0xff]
      %v1402 = vld [vmem:[%s1375 + $0x138] sm:$0xff]
      %v1403 = vld [vmem:[%s1375 + $0x140] sm:$0xff]
      %v1404 = vld [vmem:[%s1375 + $0x150] sm:$0xff]
      %v1405 = vld [vmem:[%s1375 + $0x158] sm:$0xff]
      %v1406 = vld [vmem:[%s1375 + $0x168] sm:$0xff]
      %v1407 = vld [vmem:[%s1375 + $0x170] sm:$0xff]
      %1440 = vrot.lane.b32.xlu0 %v1376, 24
      %v1441 = vpop.permute.xlu0 %1440
      %1442 = vrot.lane.b32.xlu0 %v1377, 24
      %v1443 = vpop.permute.xlu0 %1442
      %1444 = vrot.lane.b32.xlu0 %v1378, 24
      %v1445 = vpop.permute.xlu0 %1444
      %1446 = vrot.lane.b32.xlu0 %v1379, 24
      %v1447 = vpop.permute.xlu0 %1446
      %1448 = vrot.lane.b32.xlu0 %v1380, 24
      %v1449 = vpop.permute.xlu0 %1448
      %1450 = vrot.lane.b32.xlu0 %v1381, 24
      %v1451 = vpop.permute.xlu0 %1450
      %1452 = vrot.lane.b32.xlu0 %v1382, 24
      %v1453 = vpop.permute.xlu0 %1452
      %1454 = vrot.lane.b32.xlu0 %v1383, 24
      %v1455 = vpop.permute.xlu0 %1454
      %1456 = vrot.lane.b32.xlu0 %v1384, 24
      %v1457 = vpop.permute.xlu0 %1456
      %1458 = vrot.lane.b32.xlu0 %v1385, 24
      %v1459 = vpop.permute.xlu0 %1458
      %1460 = vrot.lane.b32.xlu0 %v1386, 24
      %v1461 = vpop.permute.xlu0 %1460
      %1462 = vrot.lane.b32.xlu0 %v1387, 24
      %v1463 = vpop.permute.xlu0 %1462
      %1464 = vrot.lane.b32.xlu0 %v1388, 24
      %v1465 = vpop.permute.xlu0 %1464
      %1466 = vrot.lane.b32.xlu0 %v1389, 24
      %v1467 = vpop.permute.xlu0 %1466
      %1468 = vrot.lane.b32.xlu0 %v1390, 24
      %v1469 = vpop.permute.xlu0 %1468
      %1470 = vrot.lane.b32.xlu0 %v1391, 24
      %v1471 = vpop.permute.xlu0 %1470
      %1472 = vrot.lane.b32.xlu0 %v1392, 24
      %v1473 = vpop.permute.xlu0 %1472
      %1474 = vrot.lane.b32.xlu0 %v1393, 24
      %v1475 = vpop.permute.xlu0 %1474
      %1476 = vrot.lane.b32.xlu0 %v1394, 24
      %v1477 = vpop.permute.xlu0 %1476
      %1478 = vrot.lane.b32.xlu0 %v1395, 24
      %v1479 = vpop.permute.xlu0 %1478
      %1480 = vrot.lane.b32.xlu0 %v1396, 24
      %v1481 = vpop.permute.xlu0 %1480
      %1482 = vrot.lane.b32.xlu0 %v1397, 24
      %v1483 = vpop.permute.xlu0 %1482
      %1484 = vrot.lane.b32.xlu0 %v1398, 24
      %v1485 = vpop.permute.xlu0 %1484
      %1486 = vrot.lane.b32.xlu0 %v1399, 24
      %v1487 = vpop.permute.xlu0 %1486
      %1488 = vrot.lane.b32.xlu0 %v1400, 24
      %v1489 = vpop.permute.xlu0 %1488
      %1490 = vrot.lane.b32.xlu0 %v1401, 24
      %v1491 = vpop.permute.xlu0 %1490
      %1492 = vrot.lane.b32.xlu0 %v1402, 24
      %v1493 = vpop.permute.xlu0 %1492
      %1494 = vrot.lane.b32.xlu0 %v1403, 24
      %v1495 = vpop.permute.xlu0 %1494
      %1496 = vrot.lane.b32.xlu0 %v1404, 24
      %v1497 = vpop.permute.xlu0 %1496
      %1498 = vrot.lane.b32.xlu0 %v1405, 24
      %v1499 = vpop.permute.xlu0 %1498
      %1500 = vrot.lane.b32.xlu0 %v1406, 24
      %v1501 = vpop.permute.xlu0 %1500
      %1502 = vrot.lane.b32.xlu0 %v1407, 24
      %v1503 = vpop.permute.xlu0 %1502
      %vm1536 = vcmask 228544
      %1537 = vst.msk [vmem:[#allocation3] sm:$0xff] %vm1536, %v1441
      %1538 = vst.msk [vmem:[#allocation3 + $0x8] sm:$0xff] %vm1536, %v1443
      %1539 = vst.msk [vmem:[#allocation3 + $0x10] sm:$0xff] %vm1536, %v1445
      %1540 = vst.msk [vmem:[#allocation3 + $0x18] sm:$0xff] %vm1536, %v1447
      %1541 = vst.msk [vmem:[#allocation3 + $0x20] sm:$0xff] %vm1536, %v1449
      %1542 = vst.msk [vmem:[#allocation3 + $0x28] sm:$0xff] %vm1536, %v1451
      %1543 = vst.msk [vmem:[#allocation3 + $0x30] sm:$0xff] %vm1536, %v1453
      %1544 = vst.msk [vmem:[#allocation3 + $0x38] sm:$0xff] %vm1536, %v1455
      %1545 = vst.msk [vmem:[#allocation3 + $0x40] sm:$0xff] %vm1536, %v1457
      %1546 = vst.msk [vmem:[#allocation3 + $0x48] sm:$0xff] %vm1536, %v1459
      %1547 = vst.msk [vmem:[#allocation3 + $0x50] sm:$0xff] %vm1536, %v1461
      %1548 = vst.msk [vmem:[#allocation3 + $0x58] sm:$0xff] %vm1536, %v1463
      %1549 = vst.msk [vmem:[#allocation3 + $0x60] sm:$0xff] %vm1536, %v1465
      %1550 = vst.msk [vmem:[#allocation3 + $0x68] sm:$0xff] %vm1536, %v1467
      %1551 = vst.msk [vmem:[#allocation3 + $0x70] sm:$0xff] %vm1536, %v1469
      %1552 = vst.msk [vmem:[#allocation3 + $0x78] sm:$0xff] %vm1536, %v1471
      %1553 = vst.msk [vmem:[#allocation3 + $0x80] sm:$0xff] %vm1536, %v1473
      %1554 = vst.msk [vmem:[#allocation3 + $0x88] sm:$0xff] %vm1536, %v1475
      %1555 = vst.msk [vmem:[#allocation3 + $0x90] sm:$0xff] %vm1536, %v1477
      %1556 = vst.msk [vmem:[#allocation3 + $0x98] sm:$0xff] %vm1536, %v1479
      %1557 = vst.msk [vmem:[#allocation3 + $0xa0] sm:$0xff] %vm1536, %v1481
      %1558 = vst.msk [vmem:[#allocation3 + $0xa8] sm:$0xff] %vm1536, %v1483
      %1559 = vst.msk [vmem:[#allocation3 + $0xb0] sm:$0xff] %vm1536, %v1485
      %1560 = vst.msk [vmem:[#allocation3 + $0xb8] sm:$0xff] %vm1536, %v1487
      %1561 = vst.msk [vmem:[#allocation3 + $0xc0] sm:$0xff] %vm1536, %v1489
      %1562 = vst.msk [vmem:[#allocation3 + $0xc8] sm:$0xff] %vm1536, %v1491
      %1563 = vst.msk [vmem:[#allocation3 + $0xd0] sm:$0xff] %vm1536, %v1493
      %1564 = vst.msk [vmem:[#allocation3 + $0xd8] sm:$0xff] %vm1536, %v1495
      %1565 = vst.msk [vmem:[#allocation3 + $0xe0] sm:$0xff] %vm1536, %v1497
      %1566 = vst.msk [vmem:[#allocation3 + $0xe8] sm:$0xff] %vm1536, %v1499
      %1567 = vst.msk [vmem:[#allocation3 + $0xf0] sm:$0xff] %vm1536, %v1501
      %1568 = vst.msk [vmem:[#allocation3 + $0xf8] sm:$0xff] %vm1536, %v1503
      %v1569 = vld [vmem:[%s1375 + $0x1] sm:$0xff]
      %v1570 = vld [vmem:[%s1375 + $0x9] sm:$0xff]
      %v1571 = vld [vmem:[%s1375 + $0x19] sm:$0xff]
      %v1572 = vld [vmem:[%s1375 + $0x21] sm:$0xff]
      %v1573 = vld [vmem:[%s1375 + $0x31] sm:$0xff]
      %v1574 = vld [vmem:[%s1375 + $0x39] sm:$0xff]
      %v1575 = vld [vmem:[%s1375 + $0x49] sm:$0xff]
      %v1576 = vld [vmem:[%s1375 + $0x51] sm:$0xff]
      %v1577 = vld [vmem:[%s1375 + $0x61] sm:$0xff]
      %v1578 = vld [vmem:[%s1375 + $0x69] sm:$0xff]
      %v1579 = vld [vmem:[%s1375 + $0x79] sm:$0xff]
      %v1580 = vld [vmem:[%s1375 + $0x81] sm:$0xff]
      %v1581 = vld [vmem:[%s1375 + $0x91] sm:$0xff]
      %v1582 = vld [vmem:[%s1375 + $0x99] sm:$0xff]
      %v1583 = vld [vmem:[%s1375 + $0xa9] sm:$0xff]
      %v1584 = vld [vmem:[%s1375 + $0xb1] sm:$0xff]
      %v1585 = vld [vmem:[%s1375 + $0xc1] sm:$0xff]
      %v1586 = vld [vmem:[%s1375 + $0xc9] sm:$0xff]
      %v1587 = vld [vmem:[%s1375 + $0xd9] sm:$0xff]
      %v1588 = vld [vmem:[%s1375 + $0xe1] sm:$0xff]
      %v1589 = vld [vmem:[%s1375 + $0xf1] sm:$0xff]
      %v1590 = vld [vmem:[%s1375 + $0xf9] sm:$0xff]
      %v1591 = vld [vmem:[%s1375 + $0x109] sm:$0xff]
      %v1592 = vld [vmem:[%s1375 + $0x111] sm:$0xff]
      %v1593 = vld [vmem:[%s1375 + $0x121] sm:$0xff]
      %v1594 = vld [vmem:[%s1375 + $0x129] sm:$0xff]
      %v1595 = vld [vmem:[%s1375 + $0x139] sm:$0xff]
      %v1596 = vld [vmem:[%s1375 + $0x141] sm:$0xff]
      %v1597 = vld [vmem:[%s1375 + $0x151] sm:$0xff]
      %v1598 = vld [vmem:[%s1375 + $0x159] sm:$0xff]
      %v1599 = vld [vmem:[%s1375 + $0x169] sm:$0xff]
      %v1600 = vld [vmem:[%s1375 + $0x171] sm:$0xff]
      %1633 = vrot.lane.b32.xlu0 %v1569, 28
      %v1634 = vpop.permute.xlu0 %1633
      %1635 = vrot.lane.b32.xlu0 %v1570, 28
      %v1636 = vpop.permute.xlu0 %1635
      %1637 = vrot.lane.b32.xlu0 %v1571, 28
      %v1638 = vpop.permute.xlu0 %1637
      %1639 = vrot.lane.b32.xlu0 %v1572, 28
      %v1640 = vpop.permute.xlu0 %1639
      %1641 = vrot.lane.b32.xlu0 %v1573, 28
      %v1642 = vpop.permute.xlu0 %1641
      %1643 = vrot.lane.b32.xlu0 %v1574, 28
      %v1644 = vpop.permute.xlu0 %1643
      %1645 = vrot.lane.b32.xlu0 %v1575, 28
      %v1646 = vpop.permute.xlu0 %1645
      %1647 = vrot.lane.b32.xlu0 %v1576, 28
      %v1648 = vpop.permute.xlu0 %1647
      %1649 = vrot.lane.b32.xlu0 %v1577, 28
      %v1650 = vpop.permute.xlu0 %1649
      %1651 = vrot.lane.b32.xlu0 %v1578, 28
      %v1652 = vpop.permute.xlu0 %1651
      %1653 = vrot.lane.b32.xlu0 %v1579, 28
      %v1654 = vpop.permute.xlu0 %1653
      %1655 = vrot.lane.b32.xlu0 %v1580, 28
      %v1656 = vpop.permute.xlu0 %1655
      %1657 = vrot.lane.b32.xlu0 %v1581, 28
      %v1658 = vpop.permute.xlu0 %1657
      %1659 = vrot.lane.b32.xlu0 %v1582, 28
      %v1660 = vpop.permute.xlu0 %1659
      %1661 = vrot.lane.b32.xlu0 %v1583, 28
      %v1662 = vpop.permute.xlu0 %1661
      %1663 = vrot.lane.b32.xlu0 %v1584, 28
      %v1664 = vpop.permute.xlu0 %1663
      %1665 = vrot.lane.b32.xlu0 %v1585, 28
      %v1666 = vpop.permute.xlu0 %1665
      %1667 = vrot.lane.b32.xlu0 %v1586, 28
      %v1668 = vpop.permute.xlu0 %1667
      %1669 = vrot.lane.b32.xlu0 %v1587, 28
      %v1670 = vpop.permute.xlu0 %1669
      %1671 = vrot.lane.b32.xlu0 %v1588, 28
      %v1672 = vpop.permute.xlu0 %1671
      %1673 = vrot.lane.b32.xlu0 %v1589, 28
      %v1674 = vpop.permute.xlu0 %1673
      %1675 = vrot.lane.b32.xlu0 %v1590, 28
      %v1676 = vpop.permute.xlu0 %1675
      %1677 = vrot.lane.b32.xlu0 %v1591, 28
      %v1678 = vpop.permute.xlu0 %1677
      %1679 = vrot.lane.b32.xlu0 %v1592, 28
      %v1680 = vpop.permute.xlu0 %1679
      %1681 = vrot.lane.b32.xlu0 %v1593, 28
      %v1682 = vpop.permute.xlu0 %1681
      %1683 = vrot.lane.b32.xlu0 %v1594, 28
      %v1684 = vpop.permute.xlu0 %1683
      %1685 = vrot.lane.b32.xlu0 %v1595, 28
      %v1686 = vpop.permute.xlu0 %1685
      %1687 = vrot.lane.b32.xlu0 %v1596, 28
      %v1688 = vpop.permute.xlu0 %1687
      %1689 = vrot.lane.b32.xlu0 %v1597, 28
      %v1690 = vpop.permute.xlu0 %1689
      %1691 = vrot.lane.b32.xlu0 %v1598, 28
      %v1692 = vpop.permute.xlu0 %1691
      %1693 = vrot.lane.b32.xlu0 %v1599, 28
      %v1694 = vpop.permute.xlu0 %1693
      %1695 = vrot.lane.b32.xlu0 %v1600, 28
      %v1696 = vpop.permute.xlu0 %1695
      %vm1729 = vcmask 261344
      %1730 = vst.msk [vmem:[#allocation3] sm:$0xff] %vm1729, %v1634
      %1731 = vst.msk [vmem:[#allocation3 + $0x8] sm:$0xff] %vm1729, %v1636
      %1732 = vst.msk [vmem:[#allocation3 + $0x10] sm:$0xff] %vm1729, %v1638
      %1733 = vst.msk [vmem:[#allocation3 + $0x18] sm:$0xff] %vm1729, %v1640
      %1734 = vst.msk [vmem:[#allocation3 + $0x20] sm:$0xff] %vm1729, %v1642
      %1735 = vst.msk [vmem:[#allocation3 + $0x28] sm:$0xff] %vm1729, %v1644
      %1736 = vst.msk [vmem:[#allocation3 + $0x30] sm:$0xff] %vm1729, %v1646
      %1737 = vst.msk [vmem:[#allocation3 + $0x38] sm:$0xff] %vm1729, %v1648
      %1738 = vst.msk [vmem:[#allocation3 + $0x40] sm:$0xff] %vm1729, %v1650
      %1739 = vst.msk [vmem:[#allocation3 + $0x48] sm:$0xff] %vm1729, %v1652
      %1740 = vst.msk [vmem:[#allocation3 + $0x50] sm:$0xff] %vm1729, %v1654
      %1741 = vst.msk [vmem:[#allocation3 + $0x58] sm:$0xff] %vm1729, %v1656
      %1742 = vst.msk [vmem:[#allocation3 + $0x60] sm:$0xff] %vm1729, %v1658
      %1743 = vst.msk [vmem:[#allocation3 + $0x68] sm:$0xff] %vm1729, %v1660
      %1744 = vst.msk [vmem:[#allocation3 + $0x70] sm:$0xff] %vm1729, %v1662
      %1745 = vst.msk [vmem:[#allocation3 + $0x78] sm:$0xff] %vm1729, %v1664
      %1746 = vst.msk [vmem:[#allocation3 + $0x80] sm:$0xff] %vm1729, %v1666
      %1747 = vst.msk [vmem:[#allocation3 + $0x88] sm:$0xff] %vm1729, %v1668
      %1748 = vst.msk [vmem:[#allocation3 + $0x90] sm:$0xff] %vm1729, %v1670
      %1749 = vst.msk [vmem:[#allocation3 + $0x98] sm:$0xff] %vm1729, %v1672
      %1750 = vst.msk [vmem:[#allocation3 + $0xa0] sm:$0xff] %vm1729, %v1674
      %1751 = vst.msk [vmem:[#allocation3 + $0xa8] sm:$0xff] %vm1729, %v1676
      %1752 = vst.msk [vmem:[#allocation3 + $0xb0] sm:$0xff] %vm1729, %v1678
      %1753 = vst.msk [vmem:[#allocation3 + $0xb8] sm:$0xff] %vm1729, %v1680
      %1754 = vst.msk [vmem:[#allocation3 + $0xc0] sm:$0xff] %vm1729, %v1682
      %1755 = vst.msk [vmem:[#allocation3 + $0xc8] sm:$0xff] %vm1729, %v1684
      %1756 = vst.msk [vmem:[#allocation3 + $0xd0] sm:$0xff] %vm1729, %v1686
      %1757 = vst.msk [vmem:[#allocation3 + $0xd8] sm:$0xff] %vm1729, %v1688
      %1758 = vst.msk [vmem:[#allocation3 + $0xe0] sm:$0xff] %vm1729, %v1690
      %1759 = vst.msk [vmem:[#allocation3 + $0xe8] sm:$0xff] %vm1729, %v1692
      %1760 = vst.msk [vmem:[#allocation3 + $0xf0] sm:$0xff] %vm1729, %v1694
      %1761 = vst.msk [vmem:[#allocation3 + $0xf8] sm:$0xff] %vm1729, %v1696
      %v1762 = vld [vmem:[%s1375 + $0x2] sm:$0xff]
      %v1763 = vld [vmem:[%s1375 + $0xa] sm:$0xff]
      %v1764 = vld [vmem:[%s1375 + $0x1a] sm:$0xff]
      %v1765 = vld [vmem:[%s1375 + $0x22] sm:$0xff]
      %v1766 = vld [vmem:[%s1375 + $0x32] sm:$0xff]
      %v1767 = vld [vmem:[%s1375 + $0x3a] sm:$0xff]
      %v1768 = vld [vmem:[%s1375 + $0x4a] sm:$0xff]
      %v1769 = vld [vmem:[%s1375 + $0x52] sm:$0xff]
      %v1770 = vld [vmem:[%s1375 + $0x62] sm:$0xff]
      %v1771 = vld [vmem:[%s1375 + $0x6a] sm:$0xff]
      %v1772 = vld [vmem:[%s1375 + $0x7a] sm:$0xff]
      %v1773 = vld [vmem:[%s1375 + $0x82] sm:$0xff]
      %v1774 = vld [vmem:[%s1375 + $0x92] sm:$0xff]
      %v1775 = vld [vmem:[%s1375 + $0x9a] sm:$0xff]
      %v1776 = vld [vmem:[%s1375 + $0xaa] sm:$0xff]
      %v1777 = vld [vmem:[%s1375 + $0xb2] sm:$0xff]
      %v1778 = vld [vmem:[%s1375 + $0xc2] sm:$0xff]
      %v1779 = vld [vmem:[%s1375 + $0xca] sm:$0xff]
      %v1780 = vld [vmem:[%s1375 + $0xda] sm:$0xff]
      %v1781 = vld [vmem:[%s1375 + $0xe2] sm:$0xff]
      %v1782 = vld [vmem:[%s1375 + $0xf2] sm:$0xff]
      %v1783 = vld [vmem:[%s1375 + $0xfa] sm:$0xff]
      %v1784 = vld [vmem:[%s1375 + $0x10a] sm:$0xff]
      %v1785 = vld [vmem:[%s1375 + $0x112] sm:$0xff]
      %v1786 = vld [vmem:[%s1375 + $0x122] sm:$0xff]
      %v1787 = vld [vmem:[%s1375 + $0x12a] sm:$0xff]
      %v1788 = vld [vmem:[%s1375 + $0x13a] sm:$0xff]
      %v1789 = vld [vmem:[%s1375 + $0x142] sm:$0xff]
      %v1790 = vld [vmem:[%s1375 + $0x152] sm:$0xff]
      %v1791 = vld [vmem:[%s1375 + $0x15a] sm:$0xff]
      %v1792 = vld [vmem:[%s1375 + $0x16a] sm:$0xff]
      %v1793 = vld [vmem:[%s1375 + $0x172] sm:$0xff]
      %1826 = vrot.lane.b32.xlu0 %v1762, 32
      %v1827 = vpop.permute.xlu0 %1826
      %1828 = vrot.lane.b32.xlu0 %v1763, 32
      %v1829 = vpop.permute.xlu0 %1828
      %1830 = vrot.lane.b32.xlu0 %v1764, 32
      %v1831 = vpop.permute.xlu0 %1830
      %1832 = vrot.lane.b32.xlu0 %v1765, 32
      %v1833 = vpop.permute.xlu0 %1832
      %1834 = vrot.lane.b32.xlu0 %v1766, 32
      %v1835 = vpop.permute.xlu0 %1834
      %1836 = vrot.lane.b32.xlu0 %v1767, 32
      %v1837 = vpop.permute.xlu0 %1836
      %1838 = vrot.lane.b32.xlu0 %v1768, 32
      %v1839 = vpop.permute.xlu0 %1838
      %1840 = vrot.lane.b32.xlu0 %v1769, 32
      %v1841 = vpop.permute.xlu0 %1840
      %1842 = vrot.lane.b32.xlu0 %v1770, 32
      %v1843 = vpop.permute.xlu0 %1842
      %1844 = vrot.lane.b32.xlu0 %v1771, 32
      %v1845 = vpop.permute.xlu0 %1844
      %1846 = vrot.lane.b32.xlu0 %v1772, 32
      %v1847 = vpop.permute.xlu0 %1846
      %1848 = vrot.lane.b32.xlu0 %v1773, 32
      %v1849 = vpop.permute.xlu0 %1848
      %1850 = vrot.lane.b32.xlu0 %v1774, 32
      %v1851 = vpop.permute.xlu0 %1850
      %1852 = vrot.lane.b32.xlu0 %v1775, 32
      %v1853 = vpop.permute.xlu0 %1852
      %1854 = vrot.lane.b32.xlu0 %v1776, 32
      %v1855 = vpop.permute.xlu0 %1854
      %1856 = vrot.lane.b32.xlu0 %v1777, 32
      %v1857 = vpop.permute.xlu0 %1856
      %1858 = vrot.lane.b32.xlu0 %v1778, 32
      %v1859 = vpop.permute.xlu0 %1858
      %1860 = vrot.lane.b32.xlu0 %v1779, 32
      %v1861 = vpop.permute.xlu0 %1860
      %1862 = vrot.lane.b32.xlu0 %v1780, 32
      %v1863 = vpop.permute.xlu0 %1862
      %1864 = vrot.lane.b32.xlu0 %v1781, 32
      %v1865 = vpop.permute.xlu0 %1864
      %1866 = vrot.lane.b32.xlu0 %v1782, 32
      %v1867 = vpop.permute.xlu0 %1866
      %1868 = vrot.lane.b32.xlu0 %v1783, 32
      %v1869 = vpop.permute.xlu0 %1868
      %1870 = vrot.lane.b32.xlu0 %v1784, 32
      %v1871 = vpop.permute.xlu0 %1870
      %1872 = vrot.lane.b32.xlu0 %v1785, 32
      %v1873 = vpop.permute.xlu0 %1872
      %1874 = vrot.lane.b32.xlu0 %v1786, 32
      %v1875 = vpop.permute.xlu0 %1874
      %1876 = vrot.lane.b32.xlu0 %v1787, 32
      %v1877 = vpop.permute.xlu0 %1876
      %1878 = vrot.lane.b32.xlu0 %v1788, 32
      %v1879 = vpop.permute.xlu0 %1878
      %1880 = vrot.lane.b32.xlu0 %v1789, 32
      %v1881 = vpop.permute.xlu0 %1880
      %1882 = vrot.lane.b32.xlu0 %v1790, 32
      %v1883 = vpop.permute.xlu0 %1882
      %1884 = vrot.lane.b32.xlu0 %v1791, 32
      %v1885 = vpop.permute.xlu0 %1884
      %1886 = vrot.lane.b32.xlu0 %v1792, 32
      %v1887 = vpop.permute.xlu0 %1886
      %1888 = vrot.lane.b32.xlu0 %v1793, 32
      %v1889 = vpop.permute.xlu0 %1888
      %vm1922 = vcmask 294144
      %1923 = vst.msk [vmem:[#allocation3] sm:$0xff] %vm1922, %v1827
      %1924 = vst.msk [vmem:[#allocation3 + $0x8] sm:$0xff] %vm1922, %v1829
      %1925 = vst.msk [vmem:[#allocation3 + $0x10] sm:$0xff] %vm1922, %v1831
      %1926 = vst.msk [vmem:[#allocation3 + $0x18] sm:$0xff] %vm1922, %v1833
      %1927 = vst.msk [vmem:[#allocation3 + $0x20] sm:$0xff] %vm1922, %v1835
      %1928 = vst.msk [vmem:[#allocation3 + $0x28] sm:$0xff] %vm1922, %v1837
      %1929 = vst.msk [vmem:[#allocation3 + $0x30] sm:$0xff] %vm1922, %v1839
      %1930 = vst.msk [vmem:[#allocation3 + $0x38] sm:$0xff] %vm1922, %v1841
      %1931 = vst.msk [vmem:[#allocation3 + $0x40] sm:$0xff] %vm1922, %v1843
      %1932 = vst.msk [vmem:[#allocation3 + $0x48] sm:$0xff] %vm1922, %v1845
      %1933 = vst.msk [vmem:[#allocation3 + $0x50] sm:$0xff] %vm1922, %v1847
      %1934 = vst.msk [vmem:[#allocation3 + $0x58] sm:$0xff] %vm1922, %v1849
      %1935 = vst.msk [vmem:[#allocation3 + $0x60] sm:$0xff] %vm1922, %v1851
      %1936 = vst.msk [vmem:[#allocation3 + $0x68] sm:$0xff] %vm1922, %v1853
      %1937 = vst.msk [vmem:[#allocation3 + $0x70] sm:$0xff] %vm1922, %v1855
      %1938 = vst.msk [vmem:[#allocation3 + $0x78] sm:$0xff] %vm1922, %v1857
      %1939 = vst.msk [vmem:[#allocation3 + $0x80] sm:$0xff] %vm1922, %v1859
      %1940 = vst.msk [vmem:[#allocation3 + $0x88] sm:$0xff] %vm1922, %v1861
      %1941 = vst.msk [vmem:[#allocation3 + $0x90] sm:$0xff] %vm1922, %v1863
      %1942 = vst.msk [vmem:[#allocation3 + $0x98] sm:$0xff] %vm1922, %v1865
      %1943 = vst.msk [vmem:[#allocation3 + $0xa0] sm:$0xff] %vm1922, %v1867
      %1944 = vst.msk [vmem:[#allocation3 + $0xa8] sm:$0xff] %vm1922, %v1869
      %1945 = vst.msk [vmem:[#allocation3 + $0xb0] sm:$0xff] %vm1922, %v1871
      %1946 = vst.msk [vmem:[#allocation3 + $0xb8] sm:$0xff] %vm1922, %v1873
      %1947 = vst.msk [vmem:[#allocation3 + $0xc0] sm:$0xff] %vm1922, %v1875
      %1948 = vst.msk [vmem:[#allocation3 + $0xc8] sm:$0xff] %vm1922, %v1877
      %1949 = vst.msk [vmem:[#allocation3 + $0xd0] sm:$0xff] %vm1922, %v1879
      %1950 = vst.msk [vmem:[#allocation3 + $0xd8] sm:$0xff] %vm1922, %v1881
      %1951 = vst.msk [vmem:[#allocation3 + $0xe0] sm:$0xff] %vm1922, %v1883
      %1952 = vst.msk [vmem:[#allocation3 + $0xe8] sm:$0xff] %vm1922, %v1885
      %1953 = vst.msk [vmem:[#allocation3 + $0xf0] sm:$0xff] %vm1922, %v1887
      %1954 = vst.msk [vmem:[#allocation3 + $0xf8] sm:$0xff] %vm1922, %v1889
      %v1955 = vld [vmem:[#allocation3] sm:$0xff]
      %v1956 = vld [vmem:[#allocation3 + $0x8] sm:$0xff]
      %v1957 = vld [vmem:[#allocation3 + $0x10] sm:$0xff]
      %v1958 = vld [vmem:[#allocation3 + $0x18] sm:$0xff]
      %v1959 = vld [vmem:[#allocation3 + $0x20] sm:$0xff]
      %v1960 = vld [vmem:[#allocation3 + $0x28] sm:$0xff]
      %v1961 = vld [vmem:[#allocation3 + $0x30] sm:$0xff]
      %v1962 = vld [vmem:[#allocation3 + $0x38] sm:$0xff]
      %v1963 = vld [vmem:[#allocation3 + $0x40] sm:$0xff]
      %v1964 = vld [vmem:[#allocation3 + $0x48] sm:$0xff]
      %v1965 = vld [vmem:[#allocation3 + $0x50] sm:$0xff]
      %v1966 = vld [vmem:[#allocation3 + $0x58] sm:$0xff]
      %v1967 = vld [vmem:[#allocation3 + $0x60] sm:$0xff]
      %v1968 = vld [vmem:[#allocation3 + $0x68] sm:$0xff]
      %v1969 = vld [vmem:[#allocation3 + $0x70] sm:$0xff]
      %v1970 = vld [vmem:[#allocation3 + $0x78] sm:$0xff]
      %v1971 = vld [vmem:[#allocation3 + $0x80] sm:$0xff]
      %v1972 = vld [vmem:[#allocation3 + $0x88] sm:$0xff]
      %v1973 = vld [vmem:[#allocation3 + $0x90] sm:$0xff]
      %v1974 = vld [vmem:[#allocation3 + $0x98] sm:$0xff]
      %v1975 = vld [vmem:[#allocation3 + $0xa0] sm:$0xff]
      %v1976 = vld [vmem:[#allocation3 + $0xa8] sm:$0xff]
      %v1977 = vld [vmem:[#allocation3 + $0xb0] sm:$0xff]
      %v1978 = vld [vmem:[#allocation3 + $0xb8] sm:$0xff]
      %v1979 = vld [vmem:[#allocation3 + $0xc0] sm:$0xff]
      %v1980 = vld [vmem:[#allocation3 + $0xc8] sm:$0xff]
      %v1981 = vld [vmem:[#allocation3 + $0xd0] sm:$0xff]
      %v1982 = vld [vmem:[#allocation3 + $0xd8] sm:$0xff]
      %v1983 = vld [vmem:[#allocation3 + $0xe0] sm:$0xff]
      %v1984 = vld [vmem:[#allocation3 + $0xe8] sm:$0xff]
      %v1985 = vld [vmem:[#allocation3 + $0xf0] sm:$0xff]
      %v1986 = vld [vmem:[#allocation3 + $0xf8] sm:$0xff]
      %v1987 = vld [vmem:[%s1] sm:$0xff]
      %v1988 = vld [vmem:[%s1 + $0x8] sm:$0xff]
      %v1989 = vld [vmem:[%s1 + $0x10] sm:$0xff]
      %v1990 = vld [vmem:[%s1 + $0x18] sm:$0xff]
      %v1991 = vld [vmem:[%s1 + $0x20] sm:$0xf]
      %v1992 = vld [vmem:[%s2] sm:$0x1]
      %v1994 = vlaneseq
      %v1995 = vshrl.u32 %v1994, 7
      %v1996 = vsub.s32 0, %v1995
      %v1997 = vrot.slane %v1992, %v1996
      %vm1999 = vcmask 293888
      %v2001 = vsel %vm1999, %v1955, 0
      %v2004 = vsel %vm1999, %v1956, 0
      %v2007 = vsel %vm1999, %v1957, 0
      %v2010 = vsel %vm1999, %v1958, 0
      %v2013 = vsel %vm1999, %v1959, 0
      %v2016 = vsel %vm1999, %v1960, 0
      %v2019 = vsel %vm1999, %v1961, 0
      %v2022 = vsel %vm1999, %v1962, 0
      %v2025 = vsel %vm1999, %v1963, 0
      %v2028 = vsel %vm1999, %v1964, 0
      %v2031 = vsel %vm1999, %v1965, 0
      %v2034 = vsel %vm1999, %v1966, 0
      %v2037 = vsel %vm1999, %v1967, 0
      %v2040 = vsel %vm1999, %v1968, 0
      %v2043 = vsel %vm1999, %v1969, 0
      %v2046 = vsel %vm1999, %v1970, 0
      %v2049 = vsel %vm1999, %v1971, 0
      %v2052 = vsel %vm1999, %v1972, 0
      %v2055 = vsel %vm1999, %v1973, 0
      %v2058 = vsel %vm1999, %v1974, 0
      %v2061 = vsel %vm1999, %v1975, 0
      %v2064 = vsel %vm1999, %v1976, 0
      %v2067 = vsel %vm1999, %v1977, 0
      %v2070 = vsel %vm1999, %v1978, 0
      %v2073 = vsel %vm1999, %v1979, 0
      %v2076 = vsel %vm1999, %v1980, 0
      %v2079 = vsel %vm1999, %v1981, 0
      %v2082 = vsel %vm1999, %v1982, 0
      %v2085 = vsel %vm1999, %v1983, 0
      %v2088 = vsel %vm1999, %v1984, 0
      %v2091 = vsel %vm1999, %v1985, 0
      %v2094 = vsel %vm1999, %v1986, 0
      %vm2096 = vcmask 1043456
      %v2098 = vsel %vm2096, %v1991, 0
      %2100 = vmatprep.subr.mxu0 0.0
      %2101 = vmatpush1.msra.mxu0 %v1987
      %2102 = vmatprep.subr.mxu0 0.0
      %2103 = vmatpush1.msra.mxu0 %v1988
      %2104 = vmatprep.subr.mxu0 0.0
      %2105 = vmatpush1.msra.mxu0 %v1989
      %2106 = vmatprep.subr.mxu0 0.0
      %2107 = vmatpush1.msra.mxu0 %v1990
      %2108 = vmatprep.subr.mxu0 0.0
      %2109 = vmatpush1.msra.mxu0 %v2098
      %2110 = vmatprep.subr.mxu0 0.0
      %2111 = vmatpush1.msra.mxu0 0.0
      %2112 = vmatprep.subr.mxu0 0.0
      %2113 = vmatpush1.msra.mxu0 0.0
      %2114 = vmatprep.subr.mxu0 0.0
      %2115 = vmatpush1.msra.mxu0 0.0
      %2116 = vmatprep.subr.mxu0 0.0
      %2117 = vmatpush1.msra.mxu0 0.0
      %2118 = vmatprep.subr.mxu0 0.0
      %2119 = vmatpush1.msra.mxu0 0.0
      %2120 = vmatprep.subr.mxu0 0.0
      %2121 = vmatpush1.msra.mxu0 0.0
      %2122 = vmatprep.subr.mxu0 0.0
      %2123 = vmatpush1.msra.mxu0 0.0
      %2124 = vmatprep.subr.mxu0 0.0
      %2125 = vmatpush1.msra.mxu0 0.0
      %2126 = vmatprep.subr.mxu0 0.0
      %2127 = vmatpush1.msra.mxu0 0.0
      %2128 = vmatprep.subr.mxu0 0.0
      %2129 = vmatpush1.msra.mxu0 0.0
      %2130 = vmatprep.subr.mxu0 0.0
      %2131 = vmatpush1.msra.mxu0 0.0
      %2132 = vmatprep.subr.mxu0 0.0
      %2133 = vmatpush1.msra.mxu0 0.0
      %2134 = vmatprep.subr.mxu0 0.0
      %2135 = vmatpush1.msra.mxu0 0.0
      %2136 = vmatprep.subr.mxu0 0.0
      %2137 = vmatpush1.msra.mxu0 0.0
      %2138 = vmatprep.subr.mxu0 0.0
      %2139 = vmatpush1.msra.mxu0 0.0
      %2140 = vmatprep.subr.mxu0 0.0
      %2141 = vmatpush1.msra.mxu0 0.0
      %2142 = vmatprep.subr.mxu0 0.0
      %2143 = vmatpush1.msra.mxu0 0.0
      %2144 = vmatprep.subr.mxu0 0.0
      %2145 = vmatpush1.msra.mxu0 0.0
      %2146 = vmatprep.subr.mxu0 0.0
      %2147 = vmatpush1.msra.mxu0 0.0
      %2148 = vmatprep.subr.mxu0 0.0
      %2149 = vmatpush1.msra.mxu0 0.0
      %2150 = vmatprep.subr.mxu0 0.0
      %2151 = vmatpush1.msra.mxu0 0.0
      %2152 = vmatprep.subr.mxu0 0.0
      %2153 = vmatpush1.msra.mxu0 0.0
      %2154 = vmatprep.subr.mxu0 0.0
      %2155 = vmatpush1.msra.mxu0 0.0
      %2156 = vmatprep.subr.mxu0 0.0
      %2157 = vmatpush1.msra.mxu0 0.0
      %2158 = vmatprep.subr.mxu0 0.0
      %2159 = vmatpush1.msra.mxu0 0.0
      %2160 = vmatprep.subr.mxu0 0.0
      %2161 = vmatpush1.msra.mxu0 0.0
      %2162 = vmatprep.subr.mxu0 0.0
      %2163 = vmatpush1.msra.mxu0 0.0
      %2164 = vmatprep.mubr.f32.mxu0 0.0
      %2165 = vmatmul.mubr.f32.gmra.mrb[0].mxu0 %v2001
      %v2166 = vpop.f32.mrb[0].mxu0
      %v2167 = vadd.f32 %v1997, %v2166
      %v2168 = vpop.f32.mrb[0].mxu0
      %2169 = vmatprep.mubr.f32.mxu0 0.0
      %2170 = vmatmul.mubr.f32.gmra.mrb[0].mxu0 %v2004
      %v2171 = vpop.f32.mrb[0].mxu0
      %v2172 = vadd.f32 %v1997, %v2171
      %v2173 = vpop.f32.mrb[0].mxu0
      %2174 = vmatprep.mubr.f32.mxu0 0.0
      %2175 = vmatmul.mubr.f32.gmra.mrb[0].mxu0 %v2007
      %v2176 = vpop.f32.mrb[0].mxu0
      %v2177 = vadd.f32 %v1997, %v2176
      %v2178 = vpop.f32.mrb[0].mxu0
      %2179 = vmatprep.mubr.f32.mxu0 0.0
      %2180 = vmatmul.mubr.f32.gmra.mrb[0].mxu0 %v2010
      %v2181 = vpop.f32.mrb[0].mxu0
      %v2182 = vadd.f32 %v1997, %v2181
      %v2183 = vpop.f32.mrb[0].mxu0
      %2184 = vmatprep.mubr.f32.mxu0 0.0
      %2185 = vmatmul.mubr.f32.gmra.mrb[0].mxu0 %v2013
      %v2186 = vpop.f32.mrb[0].mxu0
      %v2187 = vadd.f32 %v1997, %v2186
      %v2188 = vpop.f32.mrb[0].mxu0
      %2189 = vmatprep.mubr.f32.mxu0 0.0
      %2190 = vmatmul.mubr.f32.gmra.mrb[0].mxu0 %v2016
      %v2191 = vpop.f32.mrb[0].mxu0
      %v2192 = vadd.f32 %v1997, %v2191
      %v2193 = vpop.f32.mrb[0].mxu0
      %2194 = vmatprep.mubr.f32.mxu0 0.0
      %2195 = vmatmul.mubr.f32.gmra.mrb[0].mxu0 %v2019
      %v2196 = vpop.f32.mrb[0].mxu0
      %v2197 = vadd.f32 %v1997, %v2196
      %v2198 = vpop.f32.mrb[0].mxu0
      %2199 = vmatprep.mubr.f32.mxu0 0.0
      %2200 = vmatmul.mubr.f32.gmra.mrb[0].mxu0 %v2022
      %v2201 = vpop.f32.mrb[0].mxu0
      %v2202 = vadd.f32 %v1997, %v2201
      %v2203 = vpop.f32.mrb[0].mxu0
      %2204 = vmatprep.mubr.f32.mxu0 0.0
      %2205 = vmatmul.mubr.f32.gmra.mrb[0].mxu0 %v2025
      %v2206 = vpop.f32.mrb[0].mxu0
      %v2207 = vadd.f32 %v1997, %v2206
      %v2208 = vpop.f32.mrb[0].mxu0
      %2209 = vmatprep.mubr.f32.mxu0 0.0
      %2210 = vmatmul.mubr.f32.gmra.mrb[0].mxu0 %v2028
      %v2211 = vpop.f32.mrb[0].mxu0
      %v2212 = vadd.f32 %v1997, %v2211
      %v2213 = vpop.f32.mrb[0].mxu0
      %2214 = vmatprep.mubr.f32.mxu0 0.0
      %2215 = vmatmul.mubr.f32.gmra.mrb[0].mxu0 %v2031
      %v2216 = vpop.f32.mrb[0].mxu0
      %v2217 = vadd.f32 %v1997, %v2216
      %v2218 = vpop.f32.mrb[0].mxu0
      %2219 = vmatprep.mubr.f32.mxu0 0.0
      %2220 = vmatmul.mubr.f32.gmra.mrb[0].mxu0 %v2034
      %v2221 = vpop.f32.mrb[0].mxu0
      %v2222 = vadd.f32 %v1997, %v2221
      %v2223 = vpop.f32.mrb[0].mxu0
      %2224 = vmatprep.mubr.f32.mxu0 0.0
      %2225 = vmatmul.mubr.f32.gmra.mrb[0].mxu0 %v2037
      %v2226 = vpop.f32.mrb[0].mxu0
      %v2227 = vadd.f32 %v1997, %v2226
      %v2228 = vpop.f32.mrb[0].mxu0
      %2229 = vmatprep.mubr.f32.mxu0 0.0
      %2230 = vmatmul.mubr.f32.gmra.mrb[0].mxu0 %v2040
      %v2231 = vpop.f32.mrb[0].mxu0
      %v2232 = vadd.f32 %v1997, %v2231
      %v2233 = vpop.f32.mrb[0].mxu0
      %2234 = vmatprep.mubr.f32.mxu0 0.0
      %2235 = vmatmul.mubr.f32.gmra.mrb[0].mxu0 %v2043
      %v2236 = vpop.f32.mrb[0].mxu0
      %v2237 = vadd.f32 %v1997, %v2236
      %v2238 = vpop.f32.mrb[0].mxu0
      %2239 = vmatprep.mubr.f32.mxu0 0.0
      %2240 = vmatmul.mubr.f32.gmra.mrb[0].mxu0 %v2046
      %v2241 = vpop.f32.mrb[0].mxu0
      %v2242 = vadd.f32 %v1997, %v2241
      %v2243 = vpop.f32.mrb[0].mxu0
      %2244 = vmatprep.mubr.f32.mxu0 0.0
      %2245 = vmatmul.mubr.f32.gmra.mrb[0].mxu0 %v2049
      %v2246 = vpop.f32.mrb[0].mxu0
      %v2247 = vadd.f32 %v1997, %v2246
      %v2248 = vpop.f32.mrb[0].mxu0
      %2249 = vmatprep.mubr.f32.mxu0 0.0
      %2250 = vmatmul.mubr.f32.gmra.mrb[0].mxu0 %v2052
      %v2251 = vpop.f32.mrb[0].mxu0
      %v2252 = vadd.f32 %v1997, %v2251
      %v2253 = vpop.f32.mrb[0].mxu0
      %2254 = vmatprep.mubr.f32.mxu0 0.0
      %2255 = vmatmul.mubr.f32.gmra.mrb[0].mxu0 %v2055
      %v2256 = vpop.f32.mrb[0].mxu0
      %v2257 = vadd.f32 %v1997, %v2256
      %v2258 = vpop.f32.mrb[0].mxu0
      %2259 = vmatprep.mubr.f32.mxu0 0.0
      %2260 = vmatmul.mubr.f32.gmra.mrb[0].mxu0 %v2058
      %v2261 = vpop.f32.mrb[0].mxu0
      %v2262 = vadd.f32 %v1997, %v2261
      %v2263 = vpop.f32.mrb[0].mxu0
      %2264 = vmatprep.mubr.f32.mxu0 0.0
      %2265 = vmatmul.mubr.f32.gmra.mrb[0].mxu0 %v2061
      %v2266 = vpop.f32.mrb[0].mxu0
      %v2267 = vadd.f32 %v1997, %v2266
      %v2268 = vpop.f32.mrb[0].mxu0
      %2269 = vmatprep.mubr.f32.mxu0 0.0
      %2270 = vmatmul.mubr.f32.gmra.mrb[0].mxu0 %v2064
      %v2271 = vpop.f32.mrb[0].mxu0
      %v2272 = vadd.f32 %v1997, %v2271
      %v2273 = vpop.f32.mrb[0].mxu0
      %2274 = vmatprep.mubr.f32.mxu0 0.0
      %2275 = vmatmul.mubr.f32.gmra.mrb[0].mxu0 %v2067
      %v2276 = vpop.f32.mrb[0].mxu0
      %v2277 = vadd.f32 %v1997, %v2276
      %v2278 = vpop.f32.mrb[0].mxu0
      %2279 = vmatprep.mubr.f32.mxu0 0.0
      %2280 = vmatmul.mubr.f32.gmra.mrb[0].mxu0 %v2070
      %v2281 = vpop.f32.mrb[0].mxu0
      %v2282 = vadd.f32 %v1997, %v2281
      %v2283 = vpop.f32.mrb[0].mxu0
      %2284 = vmatprep.mubr.f32.mxu0 0.0
      %2285 = vmatmul.mubr.f32.gmra.mrb[0].mxu0 %v2073
      %v2286 = vpop.f32.mrb[0].mxu0
      %v2287 = vadd.f32 %v1997, %v2286
      %v2288 = vpop.f32.mrb[0].mxu0
      %2289 = vmatprep.mubr.f32.mxu0 0.0
      %2290 = vmatmul.mubr.f32.gmra.mrb[0].mxu0 %v2076
      %v2291 = vpop.f32.mrb[0].mxu0
      %v2292 = vadd.f32 %v1997, %v2291
      %v2293 = vpop.f32.mrb[0].mxu0
      %2294 = vmatprep.mubr.f32.mxu0 0.0
      %2295 = vmatmul.mubr.f32.gmra.mrb[0].mxu0 %v2079
      %v2296 = vpop.f32.mrb[0].mxu0
      %v2297 = vadd.f32 %v1997, %v2296
      %v2298 = vpop.f32.mrb[0].mxu0
      %2299 = vmatprep.mubr.f32.mxu0 0.0
      %2300 = vmatmul.mubr.f32.gmra.mrb[0].mxu0 %v2082
      %v2301 = vpop.f32.mrb[0].mxu0
      %v2302 = vadd.f32 %v1997, %v2301
      %v2303 = vpop.f32.mrb[0].mxu0
      %2304 = vmatprep.mubr.f32.mxu0 0.0
      %2305 = vmatmul.mubr.f32.gmra.mrb[0].mxu0 %v2085
      %v2306 = vpop.f32.mrb[0].mxu0
      %v2307 = vadd.f32 %v1997, %v2306
      %v2308 = vpop.f32.mrb[0].mxu0
      %2309 = vmatprep.mubr.f32.mxu0 0.0
      %2310 = vmatmul.mubr.f32.gmra.mrb[0].mxu0 %v2088
      %v2311 = vpop.f32.mrb[0].mxu0
      %v2312 = vadd.f32 %v1997, %v2311
      %v2313 = vpop.f32.mrb[0].mxu0
      %2314 = vmatprep.mubr.f32.mxu0 0.0
      %2315 = vmatmul.mubr.f32.gmra.mrb[0].mxu0 %v2091
      %v2316 = vpop.f32.mrb[0].mxu0
      %v2317 = vadd.f32 %v1997, %v2316
      %v2318 = vpop.f32.mrb[0].mxu0
      %2319 = vmatprep.mubr.f32.mxu0 0.0
      %2320 = vmatmul.mubr.f32.gmra.mrb[0].mxu0 %v2094
      %v2321 = vpop.f32.mrb[0].mxu0
      %v2322 = vadd.f32 %v1997, %v2321
      %v2323 = vpop.f32.mrb[0].mxu0
      %2324 = vdwg.mxu0
      %v2325 = vmax.f32 %v2167, 0.0
      %v2326 = vmax.f32 %v2172, 0.0
      %v2327 = vmax.f32 %v2177, 0.0
      %v2328 = vmax.f32 %v2182, 0.0
      %v2329 = vmax.f32 %v2187, 0.0
      %v2330 = vmax.f32 %v2192, 0.0
      %v2331 = vmax.f32 %v2197, 0.0
      %v2332 = vmax.f32 %v2202, 0.0
      %v2333 = vmax.f32 %v2207, 0.0
      %v2334 = vmax.f32 %v2212, 0.0
      %v2335 = vmax.f32 %v2217, 0.0
      %v2336 = vmax.f32 %v2222, 0.0
      %v2337 = vmax.f32 %v2227, 0.0
      %v2338 = vmax.f32 %v2232, 0.0
      %v2339 = vmax.f32 %v2237, 0.0
      %v2340 = vmax.f32 %v2242, 0.0
      %v2341 = vmax.f32 %v2247, 0.0
      %v2342 = vmax.f32 %v2252, 0.0
      %v2343 = vmax.f32 %v2257, 0.0
      %v2344 = vmax.f32 %v2262, 0.0
      %v2345 = vmax.f32 %v2267, 0.0
      %v2346 = vmax.f32 %v2272, 0.0
      %v2347 = vmax.f32 %v2277, 0.0
      %v2348 = vmax.f32 %v2282, 0.0
      %v2349 = vmax.f32 %v2287, 0.0
      %v2350 = vmax.f32 %v2292, 0.0
      %v2351 = vmax.f32 %v2297, 0.0
      %v2352 = vmax.f32 %v2302, 0.0
      %v2353 = vmax.f32 %v2307, 0.0
      %v2354 = vmax.f32 %v2312, 0.0
      %v2355 = vmax.f32 %v2317, 0.0
      %v2356 = vmax.f32 %v2322, 0.0
      %2357 = vst.msk [vmem:[%s313 + $0x1] sm:$0xff] %vm225, %v2325
      %2358 = vst.msk [vmem:[%s313 + $0x9] sm:$0xff] %vm225, %v2326
      %2359 = vst.msk [vmem:[%s313 + $0x19] sm:$0xff] %vm225, %v2327
      %2360 = vst.msk [vmem:[%s313 + $0x21] sm:$0xff] %vm225, %v2328
      %2361 = vst.msk [vmem:[%s313 + $0x31] sm:$0xff] %vm225, %v2329
      %2362 = vst.msk [vmem:[%s313 + $0x39] sm:$0xff] %vm225, %v2330
      %2363 = vst.msk [vmem:[%s313 + $0x49] sm:$0xff] %vm225, %v2331
      %2364 = vst.msk [vmem:[%s313 + $0x51] sm:$0xff] %vm225, %v2332
      %2365 = vst.msk [vmem:[%s313 + $0x61] sm:$0xff] %vm225, %v2333
      %2366 = vst.msk [vmem:[%s313 + $0x69] sm:$0xff] %vm225, %v2334
      %2367 = vst.msk [vmem:[%s313 + $0x79] sm:$0xff] %vm225, %v2335
      %2368 = vst.msk [vmem:[%s313 + $0x81] sm:$0xff] %vm225, %v2336
      %2369 = vst.msk [vmem:[%s313 + $0x91] sm:$0xff] %vm225, %v2337
      %2370 = vst.msk [vmem:[%s313 + $0x99] sm:$0xff] %vm225, %v2338
      %2371 = vst.msk [vmem:[%s313 + $0xa9] sm:$0xff] %vm225, %v2339
      %2372 = vst.msk [vmem:[%s313 + $0xb1] sm:$0xff] %vm225, %v2340
      %2373 = vst.msk [vmem:[%s313 + $0xc1] sm:$0xff] %vm225, %v2341
      %2374 = vst.msk [vmem:[%s313 + $0xc9] sm:$0xff] %vm225, %v2342
      %2375 = vst.msk [vmem:[%s313 + $0xd9] sm:$0xff] %vm225, %v2343
      %2376 = vst.msk [vmem:[%s313 + $0xe1] sm:$0xff] %vm225, %v2344
      %2377 = vst.msk [vmem:[%s313 + $0xf1] sm:$0xff] %vm225, %v2345
      %2378 = vst.msk [vmem:[%s313 + $0xf9] sm:$0xff] %vm225, %v2346
      %2379 = vst.msk [vmem:[%s313 + $0x109] sm:$0xff] %vm225, %v2347
      %2380 = vst.msk [vmem:[%s313 + $0x111] sm:$0xff] %vm225, %v2348
      %2381 = vst.msk [vmem:[%s313 + $0x121] sm:$0xff] %vm225, %v2349
      %2382 = vst.msk [vmem:[%s313 + $0x129] sm:$0xff] %vm225, %v2350
      %2383 = vst.msk [vmem:[%s313 + $0x139] sm:$0xff] %vm225, %v2351
      %2384 = vst.msk [vmem:[%s313 + $0x141] sm:$0xff] %vm225, %v2352
      %2385 = vst.msk [vmem:[%s313 + $0x151] sm:$0xff] %vm225, %v2353
      %2386 = vst.msk [vmem:[%s313 + $0x159] sm:$0xff] %vm225, %v2354
      %2387 = vst.msk [vmem:[%s313 + $0x169] sm:$0xff] %vm225, %v2355
      %2388 = vst.msk [vmem:[%s313 + $0x171] sm:$0xff] %vm225, %v2356
      %v2389 = vld [vmem:[#allocation2] sm:$0xff]
      %v2390 = vld [vmem:[#allocation2 + $0x8] sm:$0xff]
      %v2391 = vld [vmem:[#allocation2 + $0x18] sm:$0xff]
      %v2392 = vld [vmem:[#allocation2 + $0x20] sm:$0xff]
      %v2393 = vld [vmem:[#allocation2 + $0x30] sm:$0xff]
      %v2394 = vld [vmem:[#allocation2 + $0x38] sm:$0xff]
      %v2395 = vld [vmem:[#allocation2 + $0x48] sm:$0xff]
      %v2396 = vld [vmem:[#allocation2 + $0x50] sm:$0xff]
      %v2397 = vld [vmem:[#allocation2 + $0x60] sm:$0xff]
      %v2398 = vld [vmem:[#allocation2 + $0x68] sm:$0xff]
      %v2399 = vld [vmem:[#allocation2 + $0x78] sm:$0xff]
      %v2400 = vld [vmem:[#allocation2 + $0x80] sm:$0xff]
      %v2401 = vld [vmem:[#allocation2 + $0x90] sm:$0xff]
      %v2402 = vld [vmem:[#allocation2 + $0x98] sm:$0xff]
      %v2403 = vld [vmem:[#allocation2 + $0xa8] sm:$0xff]
      %v2404 = vld [vmem:[#allocation2 + $0xb0] sm:$0xff]
      %v2405 = vld [vmem:[#allocation2 + $0xc0] sm:$0xff]
      %v2406 = vld [vmem:[#allocation2 + $0xc8] sm:$0xff]
      %v2407 = vld [vmem:[#allocation2 + $0xd8] sm:$0xff]
      %v2408 = vld [vmem:[#allocation2 + $0xe0] sm:$0xff]
      %v2409 = vld [vmem:[#allocation2 + $0xf0] sm:$0xff]
      %v2410 = vld [vmem:[#allocation2 + $0xf8] sm:$0xff]
      %v2411 = vld [vmem:[#allocation2 + $0x108] sm:$0xff]
      %v2412 = vld [vmem:[#allocation2 + $0x110] sm:$0xff]
      %v2413 = vld [vmem:[#allocation2 + $0x120] sm:$0xff]
      %v2414 = vld [vmem:[#allocation2 + $0x128] sm:$0xff]
      %v2415 = vld [vmem:[#allocation2 + $0x138] sm:$0xff]
      %v2416 = vld [vmem:[#allocation2 + $0x140] sm:$0xff]
      %v2417 = vld [vmem:[#allocation2 + $0x150] sm:$0xff]
      %v2418 = vld [vmem:[#allocation2 + $0x158] sm:$0xff]
      %v2419 = vld [vmem:[#allocation2 + $0x168] sm:$0xff]
      %v2420 = vld [vmem:[#allocation2 + $0x170] sm:$0xff]
      %2421 = vst.msk [vmem:[#allocation3] sm:$0xff] %vm225, %v2389
      %2422 = vst.msk [vmem:[#allocation3 + $0x8] sm:$0xff] %vm225, %v2390
      %2423 = vst.msk [vmem:[#allocation3 + $0x10] sm:$0xff] %vm225, %v2391
      %2424 = vst.msk [vmem:[#allocation3 + $0x18] sm:$0xff] %vm225, %v2392
      %2425 = vst.msk [vmem:[#allocation3 + $0x20] sm:$0xff] %vm225, %v2393
      %2426 = vst.msk [vmem:[#allocation3 + $0x28] sm:$0xff] %vm225, %v2394
      %2427 = vst.msk [vmem:[#allocation3 + $0x30] sm:$0xff] %vm225, %v2395
      %2428 = vst.msk [vmem:[#allocation3 + $0x38] sm:$0xff] %vm225, %v2396
      %2429 = vst.msk [vmem:[#allocation3 + $0x40] sm:$0xff] %vm225, %v2397
      %2430 = vst.msk [vmem:[#allocation3 + $0x48] sm:$0xff] %vm225, %v2398
      %2431 = vst.msk [vmem:[#allocation3 + $0x50] sm:$0xff] %vm225, %v2399
      %2432 = vst.msk [vmem:[#allocation3 + $0x58] sm:$0xff] %vm225, %v2400
      %2433 = vst.msk [vmem:[#allocation3 + $0x60] sm:$0xff] %vm225, %v2401
      %2434 = vst.msk [vmem:[#allocation3 + $0x68] sm:$0xff] %vm225, %v2402
      %2435 = vst.msk [vmem:[#allocation3 + $0x70] sm:$0xff] %vm225, %v2403
      %2436 = vst.msk [vmem:[#allocation3 + $0x78] sm:$0xff] %vm225, %v2404
      %2437 = vst.msk [vmem:[#allocation3 + $0x80] sm:$0xff] %vm225, %v2405
      %2438 = vst.msk [vmem:[#allocation3 + $0x88] sm:$0xff] %vm225, %v2406
      %2439 = vst.msk [vmem:[#allocation3 + $0x90] sm:$0xff] %vm225, %v2407
      %2440 = vst.msk [vmem:[#allocation3 + $0x98] sm:$0xff] %vm225, %v2408
      %2441 = vst.msk [vmem:[#allocation3 + $0xa0] sm:$0xff] %vm225, %v2409
      %2442 = vst.msk [vmem:[#allocation3 + $0xa8] sm:$0xff] %vm225, %v2410
      %2443 = vst.msk [vmem:[#allocation3 + $0xb0] sm:$0xff] %vm225, %v2411
      %2444 = vst.msk [vmem:[#allocation3 + $0xb8] sm:$0xff] %vm225, %v2412
      %2445 = vst.msk [vmem:[#allocation3 + $0xc0] sm:$0xff] %vm225, %v2413
      %2446 = vst.msk [vmem:[#allocation3 + $0xc8] sm:$0xff] %vm225, %v2414
      %2447 = vst.msk [vmem:[#allocation3 + $0xd0] sm:$0xff] %vm225, %v2415
      %2448 = vst.msk [vmem:[#allocation3 + $0xd8] sm:$0xff] %vm225, %v2416
      %2449 = vst.msk [vmem:[#allocation3 + $0xe0] sm:$0xff] %vm225, %v2417
      %2450 = vst.msk [vmem:[#allocation3 + $0xe8] sm:$0xff] %vm225, %v2418
      %2451 = vst.msk [vmem:[#allocation3 + $0xf0] sm:$0xff] %vm225, %v2419
      %2452 = vst.msk [vmem:[#allocation3 + $0xf8] sm:$0xff] %vm225, %v2420
      %v2453 = vld [vmem:[#allocation2 + $0x1] sm:$0xff]
      %v2454 = vld [vmem:[#allocation2 + $0x9] sm:$0xff]
      %v2455 = vld [vmem:[#allocation2 + $0x19] sm:$0xff]
      %v2456 = vld [vmem:[#allocation2 + $0x21] sm:$0xff]
      %v2457 = vld [vmem:[#allocation2 + $0x31] sm:$0xff]
      %v2458 = vld [vmem:[#allocation2 + $0x39] sm:$0xff]
      %v2459 = vld [vmem:[#allocation2 + $0x49] sm:$0xff]
      %v2460 = vld [vmem:[#allocation2 + $0x51] sm:$0xff]
      %v2461 = vld [vmem:[#allocation2 + $0x61] sm:$0xff]
      %v2462 = vld [vmem:[#allocation2 + $0x69] sm:$0xff]
      %v2463 = vld [vmem:[#allocation2 + $0x79] sm:$0xff]
      %v2464 = vld [vmem:[#allocation2 + $0x81] sm:$0xff]
      %v2465 = vld [vmem:[#allocation2 + $0x91] sm:$0xff]
      %v2466 = vld [vmem:[#allocation2 + $0x99] sm:$0xff]
      %v2467 = vld [vmem:[#allocation2 + $0xa9] sm:$0xff]
      %v2468 = vld [vmem:[#allocation2 + $0xb1] sm:$0xff]
      %v2469 = vld [vmem:[#allocation2 + $0xc1] sm:$0xff]
      %v2470 = vld [vmem:[#allocation2 + $0xc9] sm:$0xff]
      %v2471 = vld [vmem:[#allocation2 + $0xd9] sm:$0xff]
      %v2472 = vld [vmem:[#allocation2 + $0xe1] sm:$0xff]
      %v2473 = vld [vmem:[#allocation2 + $0xf1] sm:$0xff]
      %v2474 = vld [vmem:[#allocation2 + $0xf9] sm:$0xff]
      %v2475 = vld [vmem:[#allocation2 + $0x109] sm:$0xff]
      %v2476 = vld [vmem:[#allocation2 + $0x111] sm:$0xff]
      %v2477 = vld [vmem:[#allocation2 + $0x121] sm:$0xff]
      %v2478 = vld [vmem:[#allocation2 + $0x129] sm:$0xff]
      %v2479 = vld [vmem:[#allocation2 + $0x139] sm:$0xff]
      %v2480 = vld [vmem:[#allocation2 + $0x141] sm:$0xff]
      %v2481 = vld [vmem:[#allocation2 + $0x151] sm:$0xff]
      %v2482 = vld [vmem:[#allocation2 + $0x159] sm:$0xff]
      %v2483 = vld [vmem:[#allocation2 + $0x169] sm:$0xff]
      %v2484 = vld [vmem:[#allocation2 + $0x171] sm:$0xff]
      %2517 = vrot.lane.b32.xlu0 %v2453, 4
      %v2518 = vpop.permute.xlu0 %2517
      %2519 = vrot.lane.b32.xlu0 %v2454, 4
      %v2520 = vpop.permute.xlu0 %2519
      %2521 = vrot.lane.b32.xlu0 %v2455, 4
      %v2522 = vpop.permute.xlu0 %2521
      %2523 = vrot.lane.b32.xlu0 %v2456, 4
      %v2524 = vpop.permute.xlu0 %2523
      %2525 = vrot.lane.b32.xlu0 %v2457, 4
      %v2526 = vpop.permute.xlu0 %2525
      %2527 = vrot.lane.b32.xlu0 %v2458, 4
      %v2528 = vpop.permute.xlu0 %2527
      %2529 = vrot.lane.b32.xlu0 %v2459, 4
      %v2530 = vpop.permute.xlu0 %2529
      %2531 = vrot.lane.b32.xlu0 %v2460, 4
      %v2532 = vpop.permute.xlu0 %2531
      %2533 = vrot.lane.b32.xlu0 %v2461, 4
      %v2534 = vpop.permute.xlu0 %2533
      %2535 = vrot.lane.b32.xlu0 %v2462, 4
      %v2536 = vpop.permute.xlu0 %2535
      %2537 = vrot.lane.b32.xlu0 %v2463, 4
      %v2538 = vpop.permute.xlu0 %2537
      %2539 = vrot.lane.b32.xlu0 %v2464, 4
      %v2540 = vpop.permute.xlu0 %2539
      %2541 = vrot.lane.b32.xlu0 %v2465, 4
      %v2542 = vpop.permute.xlu0 %2541
      %2543 = vrot.lane.b32.xlu0 %v2466, 4
      %v2544 = vpop.permute.xlu0 %2543
      %2545 = vrot.lane.b32.xlu0 %v2467, 4
      %v2546 = vpop.permute.xlu0 %2545
      %2547 = vrot.lane.b32.xlu0 %v2468, 4
      %v2548 = vpop.permute.xlu0 %2547
      %2549 = vrot.lane.b32.xlu0 %v2469, 4
      %v2550 = vpop.permute.xlu0 %2549
      %2551 = vrot.lane.b32.xlu0 %v2470, 4
      %v2552 = vpop.permute.xlu0 %2551
      %2553 = vrot.lane.b32.xlu0 %v2471, 4
      %v2554 = vpop.permute.xlu0 %2553
      %2555 = vrot.lane.b32.xlu0 %v2472, 4
      %v2556 = vpop.permute.xlu0 %2555
      %2557 = vrot.lane.b32.xlu0 %v2473, 4
      %v2558 = vpop.permute.xlu0 %2557
      %2559 = vrot.lane.b32.xlu0 %v2474, 4
      %v2560 = vpop.permute.xlu0 %2559
      %2561 = vrot.lane.b32.xlu0 %v2475, 4
      %v2562 = vpop.permute.xlu0 %2561
      %2563 = vrot.lane.b32.xlu0 %v2476, 4
      %v2564 = vpop.permute.xlu0 %2563
      %2565 = vrot.lane.b32.xlu0 %v2477, 4
      %v2566 = vpop.permute.xlu0 %2565
      %2567 = vrot.lane.b32.xlu0 %v2478, 4
      %v2568 = vpop.permute.xlu0 %2567
      %2569 = vrot.lane.b32.xlu0 %v2479, 4
      %v2570 = vpop.permute.xlu0 %2569
      %2571 = vrot.lane.b32.xlu0 %v2480, 4
      %v2572 = vpop.permute.xlu0 %2571
      %2573 = vrot.lane.b32.xlu0 %v2481, 4
      %v2574 = vpop.permute.xlu0 %2573
      %2575 = vrot.lane.b32.xlu0 %v2482, 4
      %v2576 = vpop.permute.xlu0 %2575
      %2577 = vrot.lane.b32.xlu0 %v2483, 4
      %v2578 = vpop.permute.xlu0 %2577
      %2579 = vrot.lane.b32.xlu0 %v2484, 4
      %v2580 = vpop.permute.xlu0 %2579
      %2613 = vst.msk [vmem:[#allocation3] sm:$0xff] %vm570, %v2518
      %2614 = vst.msk [vmem:[#allocation3 + $0x8] sm:$0xff] %vm570, %v2520
      %2615 = vst.msk [vmem:[#allocation3 + $0x10] sm:$0xff] %vm570, %v2522
      %2616 = vst.msk [vmem:[#allocation3 + $0x18] sm:$0xff] %vm570, %v2524
      %2617 = vst.msk [vmem:[#allocation3 + $0x20] sm:$0xff] %vm570, %v2526
      %2618 = vst.msk [vmem:[#allocation3 + $0x28] sm:$0xff] %vm570, %v2528
      %2619 = vst.msk [vmem:[#allocation3 + $0x30] sm:$0xff] %vm570, %v2530
      %2620 = vst.msk [vmem:[#allocation3 + $0x38] sm:$0xff] %vm570, %v2532
      %2621 = vst.msk [vmem:[#allocation3 + $0x40] sm:$0xff] %vm570, %v2534
      %2622 = vst.msk [vmem:[#allocation3 + $0x48] sm:$0xff] %vm570, %v2536
      %2623 = vst.msk [vmem:[#allocation3 + $0x50] sm:$0xff] %vm570, %v2538
      %2624 = vst.msk [vmem:[#allocation3 + $0x58] sm:$0xff] %vm570, %v2540
      %2625 = vst.msk [vmem:[#allocation3 + $0x60] sm:$0xff] %vm570, %v2542
      %2626 = vst.msk [vmem:[#allocation3 + $0x68] sm:$0xff] %vm570, %v2544
      %2627 = vst.msk [vmem:[#allocation3 + $0x70] sm:$0xff] %vm570, %v2546
      %2628 = vst.msk [vmem:[#allocation3 + $0x78] sm:$0xff] %vm570, %v2548
      %2629 = vst.msk [vmem:[#allocation3 + $0x80] sm:$0xff] %vm570, %v2550
      %2630 = vst.msk [vmem:[#allocation3 + $0x88] sm:$0xff] %vm570, %v2552
      %2631 = vst.msk [vmem:[#allocation3 + $0x90] sm:$0xff] %vm570, %v2554
      %2632 = vst.msk [vmem:[#allocation3 + $0x98] sm:$0xff] %vm570, %v2556
      %2633 = vst.msk [vmem:[#allocation3 + $0xa0] sm:$0xff] %vm570, %v2558
      %2634 = vst.msk [vmem:[#allocation3 + $0xa8] sm:$0xff] %vm570, %v2560
      %2635 = vst.msk [vmem:[#allocation3 + $0xb0] sm:$0xff] %vm570, %v2562
      %2636 = vst.msk [vmem:[#allocation3 + $0xb8] sm:$0xff] %vm570, %v2564
      %2637 = vst.msk [vmem:[#allocation3 + $0xc0] sm:$0xff] %vm570, %v2566
      %2638 = vst.msk [vmem:[#allocation3 + $0xc8] sm:$0xff] %vm570, %v2568
      %2639 = vst.msk [vmem:[#allocation3 + $0xd0] sm:$0xff] %vm570, %v2570
      %2640 = vst.msk [vmem:[#allocation3 + $0xd8] sm:$0xff] %vm570, %v2572
      %2641 = vst.msk [vmem:[#allocation3 + $0xe0] sm:$0xff] %vm570, %v2574
      %2642 = vst.msk [vmem:[#allocation3 + $0xe8] sm:$0xff] %vm570, %v2576
      %2643 = vst.msk [vmem:[#allocation3 + $0xf0] sm:$0xff] %vm570, %v2578
      %2644 = vst.msk [vmem:[#allocation3 + $0xf8] sm:$0xff] %vm570, %v2580
      %v2645 = vld [vmem:[#allocation2 + $0x2] sm:$0xff]
      %v2646 = vld [vmem:[#allocation2 + $0xa] sm:$0xff]
      %v2647 = vld [vmem:[#allocation2 + $0x1a] sm:$0xff]
      %v2648 = vld [vmem:[#allocation2 + $0x22] sm:$0xff]
      %v2649 = vld [vmem:[#allocation2 + $0x32] sm:$0xff]
      %v2650 = vld [vmem:[#allocation2 + $0x3a] sm:$0xff]
      %v2651 = vld [vmem:[#allocation2 + $0x4a] sm:$0xff]
      %v2652 = vld [vmem:[#allocation2 + $0x52] sm:$0xff]
      %v2653 = vld [vmem:[#allocation2 + $0x62] sm:$0xff]
      %v2654 = vld [vmem:[#allocation2 + $0x6a] sm:$0xff]
      %v2655 = vld [vmem:[#allocation2 + $0x7a] sm:$0xff]
      %v2656 = vld [vmem:[#allocation2 + $0x82] sm:$0xff]
      %v2657 = vld [vmem:[#allocation2 + $0x92] sm:$0xff]
      %v2658 = vld [vmem:[#allocation2 + $0x9a] sm:$0xff]
      %v2659 = vld [vmem:[#allocation2 + $0xaa] sm:$0xff]
      %v2660 = vld [vmem:[#allocation2 + $0xb2] sm:$0xff]
      %v2661 = vld [vmem:[#allocation2 + $0xc2] sm:$0xff]
      %v2662 = vld [vmem:[#allocation2 + $0xca] sm:$0xff]
      %v2663 = vld [vmem:[#allocation2 + $0xda] sm:$0xff]
      %v2664 = vld [vmem:[#allocation2 + $0xe2] sm:$0xff]
      %v2665 = vld [vmem:[#allocation2 + $0xf2] sm:$0xff]
      %v2666 = vld [vmem:[#allocation2 + $0xfa] sm:$0xff]
      %v2667 = vld [vmem:[#allocation2 + $0x10a] sm:$0xff]
      %v2668 = vld [vmem:[#allocation2 + $0x112] sm:$0xff]
      %v2669 = vld [vmem:[#allocation2 + $0x122] sm:$0xff]
      %v2670 = vld [vmem:[#allocation2 + $0x12a] sm:$0xff]
      %v2671 = vld [vmem:[#allocation2 + $0x13a] sm:$0xff]
      %v2672 = vld [vmem:[#allocation2 + $0x142] sm:$0xff]
      %v2673 = vld [vmem:[#allocation2 + $0x152] sm:$0xff]
      %v2674 = vld [vmem:[#allocation2 + $0x15a] sm:$0xff]
      %v2675 = vld [vmem:[#allocation2 + $0x16a] sm:$0xff]
      %v2676 = vld [vmem:[#allocation2 + $0x172] sm:$0xff]
      %2709 = vrot.lane.b32.xlu0 %v2645, 8
      %v2710 = vpop.permute.xlu0 %2709
      %2711 = vrot.lane.b32.xlu0 %v2646, 8
      %v2712 = vpop.permute.xlu0 %2711
      %2713 = vrot.lane.b32.xlu0 %v2647, 8
      %v2714 = vpop.permute.xlu0 %2713
      %2715 = vrot.lane.b32.xlu0 %v2648, 8
      %v2716 = vpop.permute.xlu0 %2715
      %2717 = vrot.lane.b32.xlu0 %v2649, 8
      %v2718 = vpop.permute.xlu0 %2717
      %2719 = vrot.lane.b32.xlu0 %v2650, 8
      %v2720 = vpop.permute.xlu0 %2719
      %2721 = vrot.lane.b32.xlu0 %v2651, 8
      %v2722 = vpop.permute.xlu0 %2721
      %2723 = vrot.lane.b32.xlu0 %v2652, 8
      %v2724 = vpop.permute.xlu0 %2723
      %2725 = vrot.lane.b32.xlu0 %v2653, 8
      %v2726 = vpop.permute.xlu0 %2725
      %2727 = vrot.lane.b32.xlu0 %v2654, 8
      %v2728 = vpop.permute.xlu0 %2727
      %2729 = vrot.lane.b32.xlu0 %v2655, 8
      %v2730 = vpop.permute.xlu0 %2729
      %2731 = vrot.lane.b32.xlu0 %v2656, 8
      %v2732 = vpop.permute.xlu0 %2731
      %2733 = vrot.lane.b32.xlu0 %v2657, 8
      %v2734 = vpop.permute.xlu0 %2733
      %2735 = vrot.lane.b32.xlu0 %v2658, 8
      %v2736 = vpop.permute.xlu0 %2735
      %2737 = vrot.lane.b32.xlu0 %v2659, 8
      %v2738 = vpop.permute.xlu0 %2737
      %2739 = vrot.lane.b32.xlu0 %v2660, 8
      %v2740 = vpop.permute.xlu0 %2739
      %2741 = vrot.lane.b32.xlu0 %v2661, 8
      %v2742 = vpop.permute.xlu0 %2741
      %2743 = vrot.lane.b32.xlu0 %v2662, 8
      %v2744 = vpop.permute.xlu0 %2743
      %2745 = vrot.lane.b32.xlu0 %v2663, 8
      %v2746 = vpop.permute.xlu0 %2745
      %2747 = vrot.lane.b32.xlu0 %v2664, 8
      %v2748 = vpop.permute.xlu0 %2747
      %2749 = vrot.lane.b32.xlu0 %v2665, 8
      %v2750 = vpop.permute.xlu0 %2749
      %2751 = vrot.lane.b32.xlu0 %v2666, 8
      %v2752 = vpop.permute.xlu0 %2751
      %2753 = vrot.lane.b32.xlu0 %v2667, 8
      %v2754 = vpop.permute.xlu0 %2753
      %2755 = vrot.lane.b32.xlu0 %v2668, 8
      %v2756 = vpop.permute.xlu0 %2755
      %2757 = vrot.lane.b32.xlu0 %v2669, 8
      %v2758 = vpop.permute.xlu0 %2757
      %2759 = vrot.lane.b32.xlu0 %v2670, 8
      %v2760 = vpop.permute.xlu0 %2759
      %2761 = vrot.lane.b32.xlu0 %v2671, 8
      %v2762 = vpop.permute.xlu0 %2761
      %2763 = vrot.lane.b32.xlu0 %v2672, 8
      %v2764 = vpop.permute.xlu0 %2763
      %2765 = vrot.lane.b32.xlu0 %v2673, 8
      %v2766 = vpop.permute.xlu0 %2765
      %2767 = vrot.lane.b32.xlu0 %v2674, 8
      %v2768 = vpop.permute.xlu0 %2767
      %2769 = vrot.lane.b32.xlu0 %v2675, 8
      %v2770 = vpop.permute.xlu0 %2769
      %2771 = vrot.lane.b32.xlu0 %v2676, 8
      %v2772 = vpop.permute.xlu0 %2771
      %2805 = vst.msk [vmem:[#allocation3] sm:$0xff] %vm763, %v2710
      %2806 = vst.msk [vmem:[#allocation3 + $0x8] sm:$0xff] %vm763, %v2712
      %2807 = vst.msk [vmem:[#allocation3 + $0x10] sm:$0xff] %vm763, %v2714
      %2808 = vst.msk [vmem:[#allocation3 + $0x18] sm:$0xff] %vm763, %v2716
      %2809 = vst.msk [vmem:[#allocation3 + $0x20] sm:$0xff] %vm763, %v2718
      %2810 = vst.msk [vmem:[#allocation3 + $0x28] sm:$0xff] %vm763, %v2720
      %2811 = vst.msk [vmem:[#allocation3 + $0x30] sm:$0xff] %vm763, %v2722
      %2812 = vst.msk [vmem:[#allocation3 + $0x38] sm:$0xff] %vm763, %v2724
      %2813 = vst.msk [vmem:[#allocation3 + $0x40] sm:$0xff] %vm763, %v2726
      %2814 = vst.msk [vmem:[#allocation3 + $0x48] sm:$0xff] %vm763, %v2728
      %2815 = vst.msk [vmem:[#allocation3 + $0x50] sm:$0xff] %vm763, %v2730
      %2816 = vst.msk [vmem:[#allocation3 + $0x58] sm:$0xff] %vm763, %v2732
      %2817 = vst.msk [vmem:[#allocation3 + $0x60] sm:$0xff] %vm763, %v2734
      %2818 = vst.msk [vmem:[#allocation3 + $0x68] sm:$0xff] %vm763, %v2736
      %2819 = vst.msk [vmem:[#allocation3 + $0x70] sm:$0xff] %vm763, %v2738
      %2820 = vst.msk [vmem:[#allocation3 + $0x78] sm:$0xff] %vm763, %v2740
      %2821 = vst.msk [vmem:[#allocation3 + $0x80] sm:$0xff] %vm763, %v2742
      %2822 = vst.msk [vmem:[#allocation3 + $0x88] sm:$0xff] %vm763, %v2744
      %2823 = vst.msk [vmem:[#allocation3 + $0x90] sm:$0xff] %vm763, %v2746
      %2824 = vst.msk [vmem:[#allocation3 + $0x98] sm:$0xff] %vm763, %v2748
      %2825 = vst.msk [vmem:[#allocation3 + $0xa0] sm:$0xff] %vm763, %v2750
      %2826 = vst.msk [vmem:[#allocation3 + $0xa8] sm:$0xff] %vm763, %v2752
      %2827 = vst.msk [vmem:[#allocation3 + $0xb0] sm:$0xff] %vm763, %v2754
      %2828 = vst.msk [vmem:[#allocation3 + $0xb8] sm:$0xff] %vm763, %v2756
      %2829 = vst.msk [vmem:[#allocation3 + $0xc0] sm:$0xff] %vm763, %v2758
      %2830 = vst.msk [vmem:[#allocation3 + $0xc8] sm:$0xff] %vm763, %v2760
      %2831 = vst.msk [vmem:[#allocation3 + $0xd0] sm:$0xff] %vm763, %v2762
      %2832 = vst.msk [vmem:[#allocation3 + $0xd8] sm:$0xff] %vm763, %v2764
      %2833 = vst.msk [vmem:[#allocation3 + $0xe0] sm:$0xff] %vm763, %v2766
      %2834 = vst.msk [vmem:[#allocation3 + $0xe8] sm:$0xff] %vm763, %v2768
      %2835 = vst.msk [vmem:[#allocation3 + $0xf0] sm:$0xff] %vm763, %v2770
      %2836 = vst.msk [vmem:[#allocation3 + $0xf8] sm:$0xff] %vm763, %v2772
      %v2837 = vld [vmem:[%s313] sm:$0xff]
      %v2838 = vld [vmem:[%s313 + $0x8] sm:$0xff]
      %v2839 = vld [vmem:[%s313 + $0x18] sm:$0xff]
      %v2840 = vld [vmem:[%s313 + $0x20] sm:$0xff]
      %v2841 = vld [vmem:[%s313 + $0x30] sm:$0xff]
      %v2842 = vld [vmem:[%s313 + $0x38] sm:$0xff]
      %v2843 = vld [vmem:[%s313 + $0x48] sm:$0xff]
      %v2844 = vld [vmem:[%s313 + $0x50] sm:$0xff]
      %v2845 = vld [vmem:[%s313 + $0x60] sm:$0xff]
      %v2846 = vld [vmem:[%s313 + $0x68] sm:$0xff]
      %v2847 = vld [vmem:[%s313 + $0x78] sm:$0xff]
      %v2848 = vld [vmem:[%s313 + $0x80] sm:$0xff]
      %v2849 = vld [vmem:[%s313 + $0x90] sm:$0xff]
      %v2850 = vld [vmem:[%s313 + $0x98] sm:$0xff]
      %v2851 = vld [vmem:[%s313 + $0xa8] sm:$0xff]
      %v2852 = vld [vmem:[%s313 + $0xb0] sm:$0xff]
      %v2853 = vld [vmem:[%s313 + $0xc0] sm:$0xff]
      %v2854 = vld [vmem:[%s313 + $0xc8] sm:$0xff]
      %v2855 = vld [vmem:[%s313 + $0xd8] sm:$0xff]
      %v2856 = vld [vmem:[%s313 + $0xe0] sm:$0xff]
      %v2857 = vld [vmem:[%s313 + $0xf0] sm:$0xff]
      %v2858 = vld [vmem:[%s313 + $0xf8] sm:$0xff]
      %v2859 = vld [vmem:[%s313 + $0x108] sm:$0xff]
      %v2860 = vld [vmem:[%s313 + $0x110] sm:$0xff]
      %v2861 = vld [vmem:[%s313 + $0x120] sm:$0xff]
      %v2862 = vld [vmem:[%s313 + $0x128] sm:$0xff]
      %v2863 = vld [vmem:[%s313 + $0x138] sm:$0xff]
      %v2864 = vld [vmem:[%s313 + $0x140] sm:$0xff]
      %v2865 = vld [vmem:[%s313 + $0x150] sm:$0xff]
      %v2866 = vld [vmem:[%s313 + $0x158] sm:$0xff]
      %v2867 = vld [vmem:[%s313 + $0x168] sm:$0xff]
      %v2868 = vld [vmem:[%s313 + $0x170] sm:$0xff]
      %2901 = vrot.lane.b32.xlu0 %v2837, 12
      %v2902 = vpop.permute.xlu0 %2901
      %2903 = vrot.lane.b32.xlu0 %v2838, 12
      %v2904 = vpop.permute.xlu0 %2903
      %2905 = vrot.lane.b32.xlu0 %v2839, 12
      %v2906 = vpop.permute.xlu0 %2905
      %2907 = vrot.lane.b32.xlu0 %v2840, 12
      %v2908 = vpop.permute.xlu0 %2907
      %2909 = vrot.lane.b32.xlu0 %v2841, 12
      %v2910 = vpop.permute.xlu0 %2909
      %2911 = vrot.lane.b32.xlu0 %v2842, 12
      %v2912 = vpop.permute.xlu0 %2911
      %2913 = vrot.lane.b32.xlu0 %v2843, 12
      %v2914 = vpop.permute.xlu0 %2913
      %2915 = vrot.lane.b32.xlu0 %v2844, 12
      %v2916 = vpop.permute.xlu0 %2915
      %2917 = vrot.lane.b32.xlu0 %v2845, 12
      %v2918 = vpop.permute.xlu0 %2917
      %2919 = vrot.lane.b32.xlu0 %v2846, 12
      %v2920 = vpop.permute.xlu0 %2919
      %2921 = vrot.lane.b32.xlu0 %v2847, 12
      %v2922 = vpop.permute.xlu0 %2921
      %2923 = vrot.lane.b32.xlu0 %v2848, 12
      %v2924 = vpop.permute.xlu0 %2923
      %2925 = vrot.lane.b32.xlu0 %v2849, 12
      %v2926 = vpop.permute.xlu0 %2925
      %2927 = vrot.lane.b32.xlu0 %v2850, 12
      %v2928 = vpop.permute.xlu0 %2927
      %2929 = vrot.lane.b32.xlu0 %v2851, 12
      %v2930 = vpop.permute.xlu0 %2929
      %2931 = vrot.lane.b32.xlu0 %v2852, 12
      %v2932 = vpop.permute.xlu0 %2931
      %2933 = vrot.lane.b32.xlu0 %v2853, 12
      %v2934 = vpop.permute.xlu0 %2933
      %2935 = vrot.lane.b32.xlu0 %v2854, 12
      %v2936 = vpop.permute.xlu0 %2935
      %2937 = vrot.lane.b32.xlu0 %v2855, 12
      %v2938 = vpop.permute.xlu0 %2937
      %2939 = vrot.lane.b32.xlu0 %v2856, 12
      %v2940 = vpop.permute.xlu0 %2939
      %2941 = vrot.lane.b32.xlu0 %v2857, 12
      %v2942 = vpop.permute.xlu0 %2941
      %2943 = vrot.lane.b32.xlu0 %v2858, 12
      %v2944 = vpop.permute.xlu0 %2943
      %2945 = vrot.lane.b32.xlu0 %v2859, 12
      %v2946 = vpop.permute.xlu0 %2945
      %2947 = vrot.lane.b32.xlu0 %v2860, 12
      %v2948 = vpop.permute.xlu0 %2947
      %2949 = vrot.lane.b32.xlu0 %v2861, 12
      %v2950 = vpop.permute.xlu0 %2949
      %2951 = vrot.lane.b32.xlu0 %v2862, 12
      %v2952 = vpop.permute.xlu0 %2951
      %2953 = vrot.lane.b32.xlu0 %v2863, 12
      %v2954 = vpop.permute.xlu0 %2953
      %2955 = vrot.lane.b32.xlu0 %v2864, 12
      %v2956 = vpop.permute.xlu0 %2955
      %2957 = vrot.lane.b32.xlu0 %v2865, 12
      %v2958 = vpop.permute.xlu0 %2957
      %2959 = vrot.lane.b32.xlu0 %v2866, 12
      %v2960 = vpop.permute.xlu0 %2959
      %2961 = vrot.lane.b32.xlu0 %v2867, 12
      %v2962 = vpop.permute.xlu0 %2961
      %2963 = vrot.lane.b32.xlu0 %v2868, 12
      %v2964 = vpop.permute.xlu0 %2963
      %2997 = vst.msk [vmem:[#allocation3] sm:$0xff] %vm956, %v2902
      %2998 = vst.msk [vmem:[#allocation3 + $0x8] sm:$0xff] %vm956, %v2904
      %2999 = vst.msk [vmem:[#allocation3 + $0x10] sm:$0xff] %vm956, %v2906
      %3000 = vst.msk [vmem:[#allocation3 + $0x18] sm:$0xff] %vm956, %v2908
      %3001 = vst.msk [vmem:[#allocation3 + $0x20] sm:$0xff] %vm956, %v2910
      %3002 = vst.msk [vmem:[#allocation3 + $0x28] sm:$0xff] %vm956, %v2912
      %3003 = vst.msk [vmem:[#allocation3 + $0x30] sm:$0xff] %vm956, %v2914
      %3004 = vst.msk [vmem:[#allocation3 + $0x38] sm:$0xff] %vm956, %v2916
      %3005 = vst.msk [vmem:[#allocation3 + $0x40] sm:$0xff] %vm956, %v2918
      %3006 = vst.msk [vmem:[#allocation3 + $0x48] sm:$0xff] %vm956, %v2920
      %3007 = vst.msk [vmem:[#allocation3 + $0x50] sm:$0xff] %vm956, %v2922
      %3008 = vst.msk [vmem:[#allocation3 + $0x58] sm:$0xff] %vm956, %v2924
      %3009 = vst.msk [vmem:[#allocation3 + $0x60] sm:$0xff] %vm956, %v2926
      %3010 = vst.msk [vmem:[#allocation3 + $0x68] sm:$0xff] %vm956, %v2928
      %3011 = vst.msk [vmem:[#allocation3 + $0x70] sm:$0xff] %vm956, %v2930
      %3012 = vst.msk [vmem:[#allocation3 + $0x78] sm:$0xff] %vm956, %v2932
      %3013 = vst.msk [vmem:[#allocation3 + $0x80] sm:$0xff] %vm956, %v2934
      %3014 = vst.msk [vmem:[#allocation3 + $0x88] sm:$0xff] %vm956, %v2936
      %3015 = vst.msk [vmem:[#allocation3 + $0x90] sm:$0xff] %vm956, %v2938
      %3016 = vst.msk [vmem:[#allocation3 + $0x98] sm:$0xff] %vm956, %v2940
      %3017 = vst.msk [vmem:[#allocation3 + $0xa0] sm:$0xff] %vm956, %v2942
      %3018 = vst.msk [vmem:[#allocation3 + $0xa8] sm:$0xff] %vm956, %v2944
      %3019 = vst.msk [vmem:[#allocation3 + $0xb0] sm:$0xff] %vm956, %v2946
      %3020 = vst.msk [vmem:[#allocation3 + $0xb8] sm:$0xff] %vm956, %v2948
      %3021 = vst.msk [vmem:[#allocation3 + $0xc0] sm:$0xff] %vm956, %v2950
      %3022 = vst.msk [vmem:[#allocation3 + $0xc8] sm:$0xff] %vm956, %v2952
      %3023 = vst.msk [vmem:[#allocation3 + $0xd0] sm:$0xff] %vm956, %v2954
      %3024 = vst.msk [vmem:[#allocation3 + $0xd8] sm:$0xff] %vm956, %v2956
      %3025 = vst.msk [vmem:[#allocation3 + $0xe0] sm:$0xff] %vm956, %v2958
      %3026 = vst.msk [vmem:[#allocation3 + $0xe8] sm:$0xff] %vm956, %v2960
      %3027 = vst.msk [vmem:[#allocation3 + $0xf0] sm:$0xff] %vm956, %v2962
      %3028 = vst.msk [vmem:[#allocation3 + $0xf8] sm:$0xff] %vm956, %v2964
      %v3029 = vld [vmem:[%s313 + $0x1] sm:$0xff]
      %v3030 = vld [vmem:[%s313 + $0x9] sm:$0xff]
      %v3031 = vld [vmem:[%s313 + $0x19] sm:$0xff]
      %v3032 = vld [vmem:[%s313 + $0x21] sm:$0xff]
      %v3033 = vld [vmem:[%s313 + $0x31] sm:$0xff]
      %v3034 = vld [vmem:[%s313 + $0x39] sm:$0xff]
      %v3035 = vld [vmem:[%s313 + $0x49] sm:$0xff]
      %v3036 = vld [vmem:[%s313 + $0x51] sm:$0xff]
      %v3037 = vld [vmem:[%s313 + $0x61] sm:$0xff]
      %v3038 = vld [vmem:[%s313 + $0x69] sm:$0xff]
      %v3039 = vld [vmem:[%s313 + $0x79] sm:$0xff]
      %v3040 = vld [vmem:[%s313 + $0x81] sm:$0xff]
      %v3041 = vld [vmem:[%s313 + $0x91] sm:$0xff]
      %v3042 = vld [vmem:[%s313 + $0x99] sm:$0xff]
      %v3043 = vld [vmem:[%s313 + $0xa9] sm:$0xff]
      %v3044 = vld [vmem:[%s313 + $0xb1] sm:$0xff]
      %v3045 = vld [vmem:[%s313 + $0xc1] sm:$0xff]
      %v3046 = vld [vmem:[%s313 + $0xc9] sm:$0xff]
      %v3047 = vld [vmem:[%s313 + $0xd9] sm:$0xff]
      %v3048 = vld [vmem:[%s313 + $0xe1] sm:$0xff]
      %v3049 = vld [vmem:[%s313 + $0xf1] sm:$0xff]
      %v3050 = vld [vmem:[%s313 + $0xf9] sm:$0xff]
      %v3051 = vld [vmem:[%s313 + $0x109] sm:$0xff]
      %v3052 = vld [vmem:[%s313 + $0x111] sm:$0xff]
      %v3053 = vld [vmem:[%s313 + $0x121] sm:$0xff]
      %v3054 = vld [vmem:[%s313 + $0x129] sm:$0xff]
      %v3055 = vld [vmem:[%s313 + $0x139] sm:$0xff]
      %v3056 = vld [vmem:[%s313 + $0x141] sm:$0xff]
      %v3057 = vld [vmem:[%s313 + $0x151] sm:$0xff]
      %v3058 = vld [vmem:[%s313 + $0x159] sm:$0xff]
      %v3059 = vld [vmem:[%s313 + $0x169] sm:$0xff]
      %v3060 = vld [vmem:[%s313 + $0x171] sm:$0xff]
      %3093 = vrot.lane.b32.xlu0 %v3029, 16
      %v3094 = vpop.permute.xlu0 %3093
      %3095 = vrot.lane.b32.xlu0 %v3030, 16
      %v3096 = vpop.permute.xlu0 %3095
      %3097 = vrot.lane.b32.xlu0 %v3031, 16
      %v3098 = vpop.permute.xlu0 %3097
      %3099 = vrot.lane.b32.xlu0 %v3032, 16
      %v3100 = vpop.permute.xlu0 %3099
      %3101 = vrot.lane.b32.xlu0 %v3033, 16
      %v3102 = vpop.permute.xlu0 %3101
      %3103 = vrot.lane.b32.xlu0 %v3034, 16
      %v3104 = vpop.permute.xlu0 %3103
      %3105 = vrot.lane.b32.xlu0 %v3035, 16
      %v3106 = vpop.permute.xlu0 %3105
      %3107 = vrot.lane.b32.xlu0 %v3036, 16
      %v3108 = vpop.permute.xlu0 %3107
      %3109 = vrot.lane.b32.xlu0 %v3037, 16
      %v3110 = vpop.permute.xlu0 %3109
      %3111 = vrot.lane.b32.xlu0 %v3038, 16
      %v3112 = vpop.permute.xlu0 %3111
      %3113 = vrot.lane.b32.xlu0 %v3039, 16
      %v3114 = vpop.permute.xlu0 %3113
      %3115 = vrot.lane.b32.xlu0 %v3040, 16
      %v3116 = vpop.permute.xlu0 %3115
      %3117 = vrot.lane.b32.xlu0 %v3041, 16
      %v3118 = vpop.permute.xlu0 %3117
      %3119 = vrot.lane.b32.xlu0 %v3042, 16
      %v3120 = vpop.permute.xlu0 %3119
      %3121 = vrot.lane.b32.xlu0 %v3043, 16
      %v3122 = vpop.permute.xlu0 %3121
      %3123 = vrot.lane.b32.xlu0 %v3044, 16
      %v3124 = vpop.permute.xlu0 %3123
      %3125 = vrot.lane.b32.xlu0 %v3045, 16
      %v3126 = vpop.permute.xlu0 %3125
      %3127 = vrot.lane.b32.xlu0 %v3046, 16
      %v3128 = vpop.permute.xlu0 %3127
      %3129 = vrot.lane.b32.xlu0 %v3047, 16
      %v3130 = vpop.permute.xlu0 %3129
      %3131 = vrot.lane.b32.xlu0 %v3048, 16
      %v3132 = vpop.permute.xlu0 %3131
      %3133 = vrot.lane.b32.xlu0 %v3049, 16
      %v3134 = vpop.permute.xlu0 %3133
      %3135 = vrot.lane.b32.xlu0 %v3050, 16
      %v3136 = vpop.permute.xlu0 %3135
      %3137 = vrot.lane.b32.xlu0 %v3051, 16
      %v3138 = vpop.permute.xlu0 %3137
      %3139 = vrot.lane.b32.xlu0 %v3052, 16
      %v3140 = vpop.permute.xlu0 %3139
      %3141 = vrot.lane.b32.xlu0 %v3053, 16
      %v3142 = vpop.permute.xlu0 %3141
      %3143 = vrot.lane.b32.xlu0 %v3054, 16
      %v3144 = vpop.permute.xlu0 %3143
      %3145 = vrot.lane.b32.xlu0 %v3055, 16
      %v3146 = vpop.permute.xlu0 %3145
      %3147 = vrot.lane.b32.xlu0 %v3056, 16
      %v3148 = vpop.permute.xlu0 %3147
      %3149 = vrot.lane.b32.xlu0 %v3057, 16
      %v3150 = vpop.permute.xlu0 %3149
      %3151 = vrot.lane.b32.xlu0 %v3058, 16
      %v3152 = vpop.permute.xlu0 %3151
      %3153 = vrot.lane.b32.xlu0 %v3059, 16
      %v3154 = vpop.permute.xlu0 %3153
      %3155 = vrot.lane.b32.xlu0 %v3060, 16
      %v3156 = vpop.permute.xlu0 %3155
      %3189 = vst.msk [vmem:[#allocation3] sm:$0xff] %vm1149, %v3094
      %3190 = vst.msk [vmem:[#allocation3 + $0x8] sm:$0xff] %vm1149, %v3096
      %3191 = vst.msk [vmem:[#allocation3 + $0x10] sm:$0xff] %vm1149, %v3098
      %3192 = vst.msk [vmem:[#allocation3 + $0x18] sm:$0xff] %vm1149, %v3100
      %3193 = vst.msk [vmem:[#allocation3 + $0x20] sm:$0xff] %vm1149, %v3102
      %3194 = vst.msk [vmem:[#allocation3 + $0x28] sm:$0xff] %vm1149, %v3104
      %3195 = vst.msk [vmem:[#allocation3 + $0x30] sm:$0xff] %vm1149, %v3106
      %3196 = vst.msk [vmem:[#allocation3 + $0x38] sm:$0xff] %vm1149, %v3108
      %3197 = vst.msk [vmem:[#allocation3 + $0x40] sm:$0xff] %vm1149, %v3110
      %3198 = vst.msk [vmem:[#allocation3 + $0x48] sm:$0xff] %vm1149, %v3112
      %3199 = vst.msk [vmem:[#allocation3 + $0x50] sm:$0xff] %vm1149, %v3114
      %3200 = vst.msk [vmem:[#allocation3 + $0x58] sm:$0xff] %vm1149, %v3116
      %3201 = vst.msk [vmem:[#allocation3 + $0x60] sm:$0xff] %vm1149, %v3118
      %3202 = vst.msk [vmem:[#allocation3 + $0x68] sm:$0xff] %vm1149, %v3120
      %3203 = vst.msk [vmem:[#allocation3 + $0x70] sm:$0xff] %vm1149, %v3122
      %3204 = vst.msk [vmem:[#allocation3 + $0x78] sm:$0xff] %vm1149, %v3124
      %3205 = vst.msk [vmem:[#allocation3 + $0x80] sm:$0xff] %vm1149, %v3126
      %3206 = vst.msk [vmem:[#allocation3 + $0x88] sm:$0xff] %vm1149, %v3128
      %3207 = vst.msk [vmem:[#allocation3 + $0x90] sm:$0xff] %vm1149, %v3130
      %3208 = vst.msk [vmem:[#allocation3 + $0x98] sm:$0xff] %vm1149, %v3132
      %3209 = vst.msk [vmem:[#allocation3 + $0xa0] sm:$0xff] %vm1149, %v3134
      %3210 = vst.msk [vmem:[#allocation3 + $0xa8] sm:$0xff] %vm1149, %v3136
      %3211 = vst.msk [vmem:[#allocation3 + $0xb0] sm:$0xff] %vm1149, %v3138
      %3212 = vst.msk [vmem:[#allocation3 + $0xb8] sm:$0xff] %vm1149, %v3140
      %3213 = vst.msk [vmem:[#allocation3 + $0xc0] sm:$0xff] %vm1149, %v3142
      %3214 = vst.msk [vmem:[#allocation3 + $0xc8] sm:$0xff] %vm1149, %v3144
      %3215 = vst.msk [vmem:[#allocation3 + $0xd0] sm:$0xff] %vm1149, %v3146
      %3216 = vst.msk [vmem:[#allocation3 + $0xd8] sm:$0xff] %vm1149, %v3148
      %3217 = vst.msk [vmem:[#allocation3 + $0xe0] sm:$0xff] %vm1149, %v3150
      %3218 = vst.msk [vmem:[#allocation3 + $0xe8] sm:$0xff] %vm1149, %v3152
      %3219 = vst.msk [vmem:[#allocation3 + $0xf0] sm:$0xff] %vm1149, %v3154
      %3220 = vst.msk [vmem:[#allocation3 + $0xf8] sm:$0xff] %vm1149, %v3156
      %v3221 = vld [vmem:[%s313 + $0x2] sm:$0xff]
      %v3222 = vld [vmem:[%s313 + $0xa] sm:$0xff]
      %v3223 = vld [vmem:[%s313 + $0x1a] sm:$0xff]
      %v3224 = vld [vmem:[%s313 + $0x22] sm:$0xff]
      %v3225 = vld [vmem:[%s313 + $0x32] sm:$0xff]
      %v3226 = vld [vmem:[%s313 + $0x3a] sm:$0xff]
      %v3227 = vld [vmem:[%s313 + $0x4a] sm:$0xff]
      %v3228 = vld [vmem:[%s313 + $0x52] sm:$0xff]
      %v3229 = vld [vmem:[%s313 + $0x62] sm:$0xff]
      %v3230 = vld [vmem:[%s313 + $0x6a] sm:$0xff]
      %v3231 = vld [vmem:[%s313 + $0x7a] sm:$0xff]
      %v3232 = vld [vmem:[%s313 + $0x82] sm:$0xff]
      %v3233 = vld [vmem:[%s313 + $0x92] sm:$0xff]
      %v3234 = vld [vmem:[%s313 + $0x9a] sm:$0xff]
      %v3235 = vld [vmem:[%s313 + $0xaa] sm:$0xff]
      %v3236 = vld [vmem:[%s313 + $0xb2] sm:$0xff]
      %v3237 = vld [vmem:[%s313 + $0xc2] sm:$0xff]
      %v3238 = vld [vmem:[%s313 + $0xca] sm:$0xff]
      %v3239 = vld [vmem:[%s313 + $0xda] sm:$0xff]
      %v3240 = vld [vmem:[%s313 + $0xe2] sm:$0xff]
      %v3241 = vld [vmem:[%s313 + $0xf2] sm:$0xff]
      %v3242 = vld [vmem:[%s313 + $0xfa] sm:$0xff]
      %v3243 = vld [vmem:[%s313 + $0x10a] sm:$0xff]
      %v3244 = vld [vmem:[%s313 + $0x112] sm:$0xff]
      %v3245 = vld [vmem:[%s313 + $0x122] sm:$0xff]
      %v3246 = vld [vmem:[%s313 + $0x12a] sm:$0xff]
      %v3247 = vld [vmem:[%s313 + $0x13a] sm:$0xff]
      %v3248 = vld [vmem:[%s313 + $0x142] sm:$0xff]
      %v3249 = vld [vmem:[%s313 + $0x152] sm:$0xff]
      %v3250 = vld [vmem:[%s313 + $0x15a] sm:$0xff]
      %v3251 = vld [vmem:[%s313 + $0x16a] sm:$0xff]
      %v3252 = vld [vmem:[%s313 + $0x172] sm:$0xff]
      %3285 = vrot.lane.b32.xlu0 %v3221, 20
      %v3286 = vpop.permute.xlu0 %3285
      %3287 = vrot.lane.b32.xlu0 %v3222, 20
      %v3288 = vpop.permute.xlu0 %3287
      %3289 = vrot.lane.b32.xlu0 %v3223, 20
      %v3290 = vpop.permute.xlu0 %3289
      %3291 = vrot.lane.b32.xlu0 %v3224, 20
      %v3292 = vpop.permute.xlu0 %3291
      %3293 = vrot.lane.b32.xlu0 %v3225, 20
      %v3294 = vpop.permute.xlu0 %3293
      %3295 = vrot.lane.b32.xlu0 %v3226, 20
      %v3296 = vpop.permute.xlu0 %3295
      %3297 = vrot.lane.b32.xlu0 %v3227, 20
      %v3298 = vpop.permute.xlu0 %3297
      %3299 = vrot.lane.b32.xlu0 %v3228, 20
      %v3300 = vpop.permute.xlu0 %3299
      %3301 = vrot.lane.b32.xlu0 %v3229, 20
      %v3302 = vpop.permute.xlu0 %3301
      %3303 = vrot.lane.b32.xlu0 %v3230, 20
      %v3304 = vpop.permute.xlu0 %3303
      %3305 = vrot.lane.b32.xlu0 %v3231, 20
      %v3306 = vpop.permute.xlu0 %3305
      %3307 = vrot.lane.b32.xlu0 %v3232, 20
      %v3308 = vpop.permute.xlu0 %3307
      %3309 = vrot.lane.b32.xlu0 %v3233, 20
      %v3310 = vpop.permute.xlu0 %3309
      %3311 = vrot.lane.b32.xlu0 %v3234, 20
      %v3312 = vpop.permute.xlu0 %3311
      %3313 = vrot.lane.b32.xlu0 %v3235, 20
      %v3314 = vpop.permute.xlu0 %3313
      %3315 = vrot.lane.b32.xlu0 %v3236, 20
      %v3316 = vpop.permute.xlu0 %3315
      %3317 = vrot.lane.b32.xlu0 %v3237, 20
      %v3318 = vpop.permute.xlu0 %3317
      %3319 = vrot.lane.b32.xlu0 %v3238, 20
      %v3320 = vpop.permute.xlu0 %3319
      %3321 = vrot.lane.b32.xlu0 %v3239, 20
      %v3322 = vpop.permute.xlu0 %3321
      %3323 = vrot.lane.b32.xlu0 %v3240, 20
      %v3324 = vpop.permute.xlu0 %3323
      %3325 = vrot.lane.b32.xlu0 %v3241, 20
      %v3326 = vpop.permute.xlu0 %3325
      %3327 = vrot.lane.b32.xlu0 %v3242, 20
      %v3328 = vpop.permute.xlu0 %3327
      %3329 = vrot.lane.b32.xlu0 %v3243, 20
      %v3330 = vpop.permute.xlu0 %3329
      %3331 = vrot.lane.b32.xlu0 %v3244, 20
      %v3332 = vpop.permute.xlu0 %3331
      %3333 = vrot.lane.b32.xlu0 %v3245, 20
      %v3334 = vpop.permute.xlu0 %3333
      %3335 = vrot.lane.b32.xlu0 %v3246, 20
      %v3336 = vpop.permute.xlu0 %3335
      %3337 = vrot.lane.b32.xlu0 %v3247, 20
      %v3338 = vpop.permute.xlu0 %3337
      %3339 = vrot.lane.b32.xlu0 %v3248, 20
      %v3340 = vpop.permute.xlu0 %3339
      %3341 = vrot.lane.b32.xlu0 %v3249, 20
      %v3342 = vpop.permute.xlu0 %3341
      %3343 = vrot.lane.b32.xlu0 %v3250, 20
      %v3344 = vpop.permute.xlu0 %3343
      %3345 = vrot.lane.b32.xlu0 %v3251, 20
      %v3346 = vpop.permute.xlu0 %3345
      %3347 = vrot.lane.b32.xlu0 %v3252, 20
      %v3348 = vpop.permute.xlu0 %3347
      %3381 = vst.msk [vmem:[#allocation3] sm:$0xff] %vm1342, %v3286
      %3382 = vst.msk [vmem:[#allocation3 + $0x8] sm:$0xff] %vm1342, %v3288
      %3383 = vst.msk [vmem:[#allocation3 + $0x10] sm:$0xff] %vm1342, %v3290
      %3384 = vst.msk [vmem:[#allocation3 + $0x18] sm:$0xff] %vm1342, %v3292
      %3385 = vst.msk [vmem:[#allocation3 + $0x20] sm:$0xff] %vm1342, %v3294
      %3386 = vst.msk [vmem:[#allocation3 + $0x28] sm:$0xff] %vm1342, %v3296
      %3387 = vst.msk [vmem:[#allocation3 + $0x30] sm:$0xff] %vm1342, %v3298
      %3388 = vst.msk [vmem:[#allocation3 + $0x38] sm:$0xff] %vm1342, %v3300
      %3389 = vst.msk [vmem:[#allocation3 + $0x40] sm:$0xff] %vm1342, %v3302
      %3390 = vst.msk [vmem:[#allocation3 + $0x48] sm:$0xff] %vm1342, %v3304
      %3391 = vst.msk [vmem:[#allocation3 + $0x50] sm:$0xff] %vm1342, %v3306
      %3392 = vst.msk [vmem:[#allocation3 + $0x58] sm:$0xff] %vm1342, %v3308
      %3393 = vst.msk [vmem:[#allocation3 + $0x60] sm:$0xff] %vm1342, %v3310
      %3394 = vst.msk [vmem:[#allocation3 + $0x68] sm:$0xff] %vm1342, %v3312
      %3395 = vst.msk [vmem:[#allocation3 + $0x70] sm:$0xff] %vm1342, %v3314
      %3396 = vst.msk [vmem:[#allocation3 + $0x78] sm:$0xff] %vm1342, %v3316
      %3397 = vst.msk [vmem:[#allocation3 + $0x80] sm:$0xff] %vm1342, %v3318
      %3398 = vst.msk [vmem:[#allocation3 + $0x88] sm:$0xff] %vm1342, %v3320
      %3399 = vst.msk [vmem:[#allocation3 + $0x90] sm:$0xff] %vm1342, %v3322
      %3400 = vst.msk [vmem:[#allocation3 + $0x98] sm:$0xff] %vm1342, %v3324
      %3401 = vst.msk [vmem:[#allocation3 + $0xa0] sm:$0xff] %vm1342, %v3326
      %3402 = vst.msk [vmem:[#allocation3 + $0xa8] sm:$0xff] %vm1342, %v3328
      %3403 = vst.msk [vmem:[#allocation3 + $0xb0] sm:$0xff] %vm1342, %v3330
      %3404 = vst.msk [vmem:[#allocation3 + $0xb8] sm:$0xff] %vm1342, %v3332
      %3405 = vst.msk [vmem:[#allocation3 + $0xc0] sm:$0xff] %vm1342, %v3334
      %3406 = vst.msk [vmem:[#allocation3 + $0xc8] sm:$0xff] %vm1342, %v3336
      %3407 = vst.msk [vmem:[#allocation3 + $0xd0] sm:$0xff] %vm1342, %v3338
      %3408 = vst.msk [vmem:[#allocation3 + $0xd8] sm:$0xff] %vm1342, %v3340
      %3409 = vst.msk [vmem:[#allocation3 + $0xe0] sm:$0xff] %vm1342, %v3342
      %3410 = vst.msk [vmem:[#allocation3 + $0xe8] sm:$0xff] %vm1342, %v3344
      %3411 = vst.msk [vmem:[#allocation3 + $0xf0] sm:$0xff] %vm1342, %v3346
      %3412 = vst.msk [vmem:[#allocation3 + $0xf8] sm:$0xff] %vm1342, %v3348
      %v3413 = vld [vmem:[%s1375] sm:$0xff]
      %v3414 = vld [vmem:[%s1375 + $0x8] sm:$0xff]
      %v3415 = vld [vmem:[%s1375 + $0x18] sm:$0xff]
      %v3416 = vld [vmem:[%s1375 + $0x20] sm:$0xff]
      %v3417 = vld [vmem:[%s1375 + $0x30] sm:$0xff]
      %v3418 = vld [vmem:[%s1375 + $0x38] sm:$0xff]
      %v3419 = vld [vmem:[%s1375 + $0x48] sm:$0xff]
      %v3420 = vld [vmem:[%s1375 + $0x50] sm:$0xff]
      %v3421 = vld [vmem:[%s1375 + $0x60] sm:$0xff]
      %v3422 = vld [vmem:[%s1375 + $0x68] sm:$0xff]
      %v3423 = vld [vmem:[%s1375 + $0x78] sm:$0xff]
      %v3424 = vld [vmem:[%s1375 + $0x80] sm:$0xff]
      %v3425 = vld [vmem:[%s1375 + $0x90] sm:$0xff]
      %v3426 = vld [vmem:[%s1375 + $0x98] sm:$0xff]
      %v3427 = vld [vmem:[%s1375 + $0xa8] sm:$0xff]
      %v3428 = vld [vmem:[%s1375 + $0xb0] sm:$0xff]
      %v3429 = vld [vmem:[%s1375 + $0xc0] sm:$0xff]
      %v3430 = vld [vmem:[%s1375 + $0xc8] sm:$0xff]
      %v3431 = vld [vmem:[%s1375 + $0xd8] sm:$0xff]
      %v3432 = vld [vmem:[%s1375 + $0xe0] sm:$0xff]
      %v3433 = vld [vmem:[%s1375 + $0xf0] sm:$0xff]
      %v3434 = vld [vmem:[%s1375 + $0xf8] sm:$0xff]
      %v3435 = vld [vmem:[%s1375 + $0x108] sm:$0xff]
      %v3436 = vld [vmem:[%s1375 + $0x110] sm:$0xff]
      %v3437 = vld [vmem:[%s1375 + $0x120] sm:$0xff]
      %v3438 = vld [vmem:[%s1375 + $0x128] sm:$0xff]
      %v3439 = vld [vmem:[%s1375 + $0x138] sm:$0xff]
      %v3440 = vld [vmem:[%s1375 + $0x140] sm:$0xff]
      %v3441 = vld [vmem:[%s1375 + $0x150] sm:$0xff]
      %v3442 = vld [vmem:[%s1375 + $0x158] sm:$0xff]
      %v3443 = vld [vmem:[%s1375 + $0x168] sm:$0xff]
      %v3444 = vld [vmem:[%s1375 + $0x170] sm:$0xff]
      %3477 = vrot.lane.b32.xlu0 %v3413, 24
      %v3478 = vpop.permute.xlu0 %3477
      %3479 = vrot.lane.b32.xlu0 %v3414, 24
      %v3480 = vpop.permute.xlu0 %3479
      %3481 = vrot.lane.b32.xlu0 %v3415, 24
      %v3482 = vpop.permute.xlu0 %3481
      %3483 = vrot.lane.b32.xlu0 %v3416, 24
      %v3484 = vpop.permute.xlu0 %3483
      %3485 = vrot.lane.b32.xlu0 %v3417, 24
      %v3486 = vpop.permute.xlu0 %3485
      %3487 = vrot.lane.b32.xlu0 %v3418, 24
      %v3488 = vpop.permute.xlu0 %3487
      %3489 = vrot.lane.b32.xlu0 %v3419, 24
      %v3490 = vpop.permute.xlu0 %3489
      %3491 = vrot.lane.b32.xlu0 %v3420, 24
      %v3492 = vpop.permute.xlu0 %3491
      %3493 = vrot.lane.b32.xlu0 %v3421, 24
      %v3494 = vpop.permute.xlu0 %3493
      %3495 = vrot.lane.b32.xlu0 %v3422, 24
      %v3496 = vpop.permute.xlu0 %3495
      %3497 = vrot.lane.b32.xlu0 %v3423, 24
      %v3498 = vpop.permute.xlu0 %3497
      %3499 = vrot.lane.b32.xlu0 %v3424, 24
      %v3500 = vpop.permute.xlu0 %3499
      %3501 = vrot.lane.b32.xlu0 %v3425, 24
      %v3502 = vpop.permute.xlu0 %3501
      %3503 = vrot.lane.b32.xlu0 %v3426, 24
      %v3504 = vpop.permute.xlu0 %3503
      %3505 = vrot.lane.b32.xlu0 %v3427, 24
      %v3506 = vpop.permute.xlu0 %3505
      %3507 = vrot.lane.b32.xlu0 %v3428, 24
      %v3508 = vpop.permute.xlu0 %3507
      %3509 = vrot.lane.b32.xlu0 %v3429, 24
      %v3510 = vpop.permute.xlu0 %3509
      %3511 = vrot.lane.b32.xlu0 %v3430, 24
      %v3512 = vpop.permute.xlu0 %3511
      %3513 = vrot.lane.b32.xlu0 %v3431, 24
      %v3514 = vpop.permute.xlu0 %3513
      %3515 = vrot.lane.b32.xlu0 %v3432, 24
      %v3516 = vpop.permute.xlu0 %3515
      %3517 = vrot.lane.b32.xlu0 %v3433, 24
      %v3518 = vpop.permute.xlu0 %3517
      %3519 = vrot.lane.b32.xlu0 %v3434, 24
      %v3520 = vpop.permute.xlu0 %3519
      %3521 = vrot.lane.b32.xlu0 %v3435, 24
      %v3522 = vpop.permute.xlu0 %3521
      %3523 = vrot.lane.b32.xlu0 %v3436, 24
      %v3524 = vpop.permute.xlu0 %3523
      %3525 = vrot.lane.b32.xlu0 %v3437, 24
      %v3526 = vpop.permute.xlu0 %3525
      %3527 = vrot.lane.b32.xlu0 %v3438, 24
      %v3528 = vpop.permute.xlu0 %3527
      %3529 = vrot.lane.b32.xlu0 %v3439, 24
      %v3530 = vpop.permute.xlu0 %3529
      %3531 = vrot.lane.b32.xlu0 %v3440, 24
      %v3532 = vpop.permute.xlu0 %3531
      %3533 = vrot.lane.b32.xlu0 %v3441, 24
      %v3534 = vpop.permute.xlu0 %3533
      %3535 = vrot.lane.b32.xlu0 %v3442, 24
      %v3536 = vpop.permute.xlu0 %3535
      %3537 = vrot.lane.b32.xlu0 %v3443, 24
      %v3538 = vpop.permute.xlu0 %3537
      %3539 = vrot.lane.b32.xlu0 %v3444, 24
      %v3540 = vpop.permute.xlu0 %3539
      %3573 = vst.msk [vmem:[#allocation3] sm:$0xff] %vm1536, %v3478
      %3574 = vst.msk [vmem:[#allocation3 + $0x8] sm:$0xff] %vm1536, %v3480
      %3575 = vst.msk [vmem:[#allocation3 + $0x10] sm:$0xff] %vm1536, %v3482
      %3576 = vst.msk [vmem:[#allocation3 + $0x18] sm:$0xff] %vm1536, %v3484
      %3577 = vst.msk [vmem:[#allocation3 + $0x20] sm:$0xff] %vm1536, %v3486
      %3578 = vst.msk [vmem:[#allocation3 + $0x28] sm:$0xff] %vm1536, %v3488
      %3579 = vst.msk [vmem:[#allocation3 + $0x30] sm:$0xff] %vm1536, %v3490
      %3580 = vst.msk [vmem:[#allocation3 + $0x38] sm:$0xff] %vm1536, %v3492
      %3581 = vst.msk [vmem:[#allocation3 + $0x40] sm:$0xff] %vm1536, %v3494
      %3582 = vst.msk [vmem:[#allocation3 + $0x48] sm:$0xff] %vm1536, %v3496
      %3583 = vst.msk [vmem:[#allocation3 + $0x50] sm:$0xff] %vm1536, %v3498
      %3584 = vst.msk [vmem:[#allocation3 + $0x58] sm:$0xff] %vm1536, %v3500
      %3585 = vst.msk [vmem:[#allocation3 + $0x60] sm:$0xff] %vm1536, %v3502
      %3586 = vst.msk [vmem:[#allocation3 + $0x68] sm:$0xff] %vm1536, %v3504
      %3587 = vst.msk [vmem:[#allocation3 + $0x70] sm:$0xff] %vm1536, %v3506
      %3588 = vst.msk [vmem:[#allocation3 + $0x78] sm:$0xff] %vm1536, %v3508
      %3589 = vst.msk [vmem:[#allocation3 + $0x80] sm:$0xff] %vm1536, %v3510
      %3590 = vst.msk [vmem:[#allocation3 + $0x88] sm:$0xff] %vm1536, %v3512
      %3591 = vst.msk [vmem:[#allocation3 + $0x90] sm:$0xff] %vm1536, %v3514
      %3592 = vst.msk [vmem:[#allocation3 + $0x98] sm:$0xff] %vm1536, %v3516
      %3593 = vst.msk [vmem:[#allocation3 + $0xa0] sm:$0xff] %vm1536, %v3518
      %3594 = vst.msk [vmem:[#allocation3 + $0xa8] sm:$0xff] %vm1536, %v3520
      %3595 = vst.msk [vmem:[#allocation3 + $0xb0] sm:$0xff] %vm1536, %v3522
      %3596 = vst.msk [vmem:[#allocation3 + $0xb8] sm:$0xff] %vm1536, %v3524
      %3597 = vst.msk [vmem:[#allocation3 + $0xc0] sm:$0xff] %vm1536, %v3526
      %3598 = vst.msk [vmem:[#allocation3 + $0xc8] sm:$0xff] %vm1536, %v3528
      %3599 = vst.msk [vmem:[#allocation3 + $0xd0] sm:$0xff] %vm1536, %v3530
      %3600 = vst.msk [vmem:[#allocation3 + $0xd8] sm:$0xff] %vm1536, %v3532
      %3601 = vst.msk [vmem:[#allocation3 + $0xe0] sm:$0xff] %vm1536, %v3534
      %3602 = vst.msk [vmem:[#allocation3 + $0xe8] sm:$0xff] %vm1536, %v3536
      %3603 = vst.msk [vmem:[#allocation3 + $0xf0] sm:$0xff] %vm1536, %v3538
      %3604 = vst.msk [vmem:[#allocation3 + $0xf8] sm:$0xff] %vm1536, %v3540
      %v3605 = vld [vmem:[%s1375 + $0x1] sm:$0xff]
      %v3606 = vld [vmem:[%s1375 + $0x9] sm:$0xff]
      %v3607 = vld [vmem:[%s1375 + $0x19] sm:$0xff]
      %v3608 = vld [vmem:[%s1375 + $0x21] sm:$0xff]
      %v3609 = vld [vmem:[%s1375 + $0x31] sm:$0xff]
      %v3610 = vld [vmem:[%s1375 + $0x39] sm:$0xff]
      %v3611 = vld [vmem:[%s1375 + $0x49] sm:$0xff]
      %v3612 = vld [vmem:[%s1375 + $0x51] sm:$0xff]
      %v3613 = vld [vmem:[%s1375 + $0x61] sm:$0xff]
      %v3614 = vld [vmem:[%s1375 + $0x69] sm:$0xff]
      %v3615 = vld [vmem:[%s1375 + $0x79] sm:$0xff]
      %v3616 = vld [vmem:[%s1375 + $0x81] sm:$0xff]
      %v3617 = vld [vmem:[%s1375 + $0x91] sm:$0xff]
      %v3618 = vld [vmem:[%s1375 + $0x99] sm:$0xff]
      %v3619 = vld [vmem:[%s1375 + $0xa9] sm:$0xff]
      %v3620 = vld [vmem:[%s1375 + $0xb1] sm:$0xff]
      %v3621 = vld [vmem:[%s1375 + $0xc1] sm:$0xff]
      %v3622 = vld [vmem:[%s1375 + $0xc9] sm:$0xff]
      %v3623 = vld [vmem:[%s1375 + $0xd9] sm:$0xff]
      %v3624 = vld [vmem:[%s1375 + $0xe1] sm:$0xff]
      %v3625 = vld [vmem:[%s1375 + $0xf1] sm:$0xff]
      %v3626 = vld [vmem:[%s1375 + $0xf9] sm:$0xff]
      %v3627 = vld [vmem:[%s1375 + $0x109] sm:$0xff]
      %v3628 = vld [vmem:[%s1375 + $0x111] sm:$0xff]
      %v3629 = vld [vmem:[%s1375 + $0x121] sm:$0xff]
      %v3630 = vld [vmem:[%s1375 + $0x129] sm:$0xff]
      %v3631 = vld [vmem:[%s1375 + $0x139] sm:$0xff]
      %v3632 = vld [vmem:[%s1375 + $0x141] sm:$0xff]
      %v3633 = vld [vmem:[%s1375 + $0x151] sm:$0xff]
      %v3634 = vld [vmem:[%s1375 + $0x159] sm:$0xff]
      %v3635 = vld [vmem:[%s1375 + $0x169] sm:$0xff]
      %v3636 = vld [vmem:[%s1375 + $0x171] sm:$0xff]
      %3669 = vrot.lane.b32.xlu0 %v3605, 28
      %v3670 = vpop.permute.xlu0 %3669
      %3671 = vrot.lane.b32.xlu0 %v3606, 28
      %v3672 = vpop.permute.xlu0 %3671
      %3673 = vrot.lane.b32.xlu0 %v3607, 28
      %v3674 = vpop.permute.xlu0 %3673
      %3675 = vrot.lane.b32.xlu0 %v3608, 28
      %v3676 = vpop.permute.xlu0 %3675
      %3677 = vrot.lane.b32.xlu0 %v3609, 28
      %v3678 = vpop.permute.xlu0 %3677
      %3679 = vrot.lane.b32.xlu0 %v3610, 28
      %v3680 = vpop.permute.xlu0 %3679
      %3681 = vrot.lane.b32.xlu0 %v3611, 28
      %v3682 = vpop.permute.xlu0 %3681
      %3683 = vrot.lane.b32.xlu0 %v3612, 28
      %v3684 = vpop.permute.xlu0 %3683
      %3685 = vrot.lane.b32.xlu0 %v3613, 28
      %v3686 = vpop.permute.xlu0 %3685
      %3687 = vrot.lane.b32.xlu0 %v3614, 28
      %v3688 = vpop.permute.xlu0 %3687
      %3689 = vrot.lane.b32.xlu0 %v3615, 28
      %v3690 = vpop.permute.xlu0 %3689
      %3691 = vrot.lane.b32.xlu0 %v3616, 28
      %v3692 = vpop.permute.xlu0 %3691
      %3693 = vrot.lane.b32.xlu0 %v3617, 28
      %v3694 = vpop.permute.xlu0 %3693
      %3695 = vrot.lane.b32.xlu0 %v3618, 28
      %v3696 = vpop.permute.xlu0 %3695
      %3697 = vrot.lane.b32.xlu0 %v3619, 28
      %v3698 = vpop.permute.xlu0 %3697
      %3699 = vrot.lane.b32.xlu0 %v3620, 28
      %v3700 = vpop.permute.xlu0 %3699
      %3701 = vrot.lane.b32.xlu0 %v3621, 28
      %v3702 = vpop.permute.xlu0 %3701
      %3703 = vrot.lane.b32.xlu0 %v3622, 28
      %v3704 = vpop.permute.xlu0 %3703
      %3705 = vrot.lane.b32.xlu0 %v3623, 28
      %v3706 = vpop.permute.xlu0 %3705
      %3707 = vrot.lane.b32.xlu0 %v3624, 28
      %v3708 = vpop.permute.xlu0 %3707
      %3709 = vrot.lane.b32.xlu0 %v3625, 28
      %v3710 = vpop.permute.xlu0 %3709
      %3711 = vrot.lane.b32.xlu0 %v3626, 28
      %v3712 = vpop.permute.xlu0 %3711
      %3713 = vrot.lane.b32.xlu0 %v3627, 28
      %v3714 = vpop.permute.xlu0 %3713
      %3715 = vrot.lane.b32.xlu0 %v3628, 28
      %v3716 = vpop.permute.xlu0 %3715
      %3717 = vrot.lane.b32.xlu0 %v3629, 28
      %v3718 = vpop.permute.xlu0 %3717
      %3719 = vrot.lane.b32.xlu0 %v3630, 28
      %v3720 = vpop.permute.xlu0 %3719
      %3721 = vrot.lane.b32.xlu0 %v3631, 28
      %v3722 = vpop.permute.xlu0 %3721
      %3723 = vrot.lane.b32.xlu0 %v3632, 28
      %v3724 = vpop.permute.xlu0 %3723
      %3725 = vrot.lane.b32.xlu0 %v3633, 28
      %v3726 = vpop.permute.xlu0 %3725
      %3727 = vrot.lane.b32.xlu0 %v3634, 28
      %v3728 = vpop.permute.xlu0 %3727
      %3729 = vrot.lane.b32.xlu0 %v3635, 28
      %v3730 = vpop.permute.xlu0 %3729
      %3731 = vrot.lane.b32.xlu0 %v3636, 28
      %v3732 = vpop.permute.xlu0 %3731
      %3765 = vst.msk [vmem:[#allocation3] sm:$0xff] %vm1729, %v3670
      %3766 = vst.msk [vmem:[#allocation3 + $0x8] sm:$0xff] %vm1729, %v3672
      %3767 = vst.msk [vmem:[#allocation3 + $0x10] sm:$0xff] %vm1729, %v3674
      %3768 = vst.msk [vmem:[#allocation3 + $0x18] sm:$0xff] %vm1729, %v3676
      %3769 = vst.msk [vmem:[#allocation3 + $0x20] sm:$0xff] %vm1729, %v3678
      %3770 = vst.msk [vmem:[#allocation3 + $0x28] sm:$0xff] %vm1729, %v3680
      %3771 = vst.msk [vmem:[#allocation3 + $0x30] sm:$0xff] %vm1729, %v3682
      %3772 = vst.msk [vmem:[#allocation3 + $0x38] sm:$0xff] %vm1729, %v3684
      %3773 = vst.msk [vmem:[#allocation3 + $0x40] sm:$0xff] %vm1729, %v3686
      %3774 = vst.msk [vmem:[#allocation3 + $0x48] sm:$0xff] %vm1729, %v3688
      %3775 = vst.msk [vmem:[#allocation3 + $0x50] sm:$0xff] %vm1729, %v3690
      %3776 = vst.msk [vmem:[#allocation3 + $0x58] sm:$0xff] %vm1729, %v3692
      %3777 = vst.msk [vmem:[#allocation3 + $0x60] sm:$0xff] %vm1729, %v3694
      %3778 = vst.msk [vmem:[#allocation3 + $0x68] sm:$0xff] %vm1729, %v3696
      %3779 = vst.msk [vmem:[#allocation3 + $0x70] sm:$0xff] %vm1729, %v3698
      %3780 = vst.msk [vmem:[#allocation3 + $0x78] sm:$0xff] %vm1729, %v3700
      %3781 = vst.msk [vmem:[#allocation3 + $0x80] sm:$0xff] %vm1729, %v3702
      %3782 = vst.msk [vmem:[#allocation3 + $0x88] sm:$0xff] %vm1729, %v3704
      %3783 = vst.msk [vmem:[#allocation3 + $0x90] sm:$0xff] %vm1729, %v3706
      %3784 = vst.msk [vmem:[#allocation3 + $0x98] sm:$0xff] %vm1729, %v3708
      %3785 = vst.msk [vmem:[#allocation3 + $0xa0] sm:$0xff] %vm1729, %v3710
      %3786 = vst.msk [vmem:[#allocation3 + $0xa8] sm:$0xff] %vm1729, %v3712
      %3787 = vst.msk [vmem:[#allocation3 + $0xb0] sm:$0xff] %vm1729, %v3714
      %3788 = vst.msk [vmem:[#allocation3 + $0xb8] sm:$0xff] %vm1729, %v3716
      %3789 = vst.msk [vmem:[#allocation3 + $0xc0] sm:$0xff] %vm1729, %v3718
      %3790 = vst.msk [vmem:[#allocation3 + $0xc8] sm:$0xff] %vm1729, %v3720
      %3791 = vst.msk [vmem:[#allocation3 + $0xd0] sm:$0xff] %vm1729, %v3722
      %3792 = vst.msk [vmem:[#allocation3 + $0xd8] sm:$0xff] %vm1729, %v3724
      %3793 = vst.msk [vmem:[#allocation3 + $0xe0] sm:$0xff] %vm1729, %v3726
      %3794 = vst.msk [vmem:[#allocation3 + $0xe8] sm:$0xff] %vm1729, %v3728
      %3795 = vst.msk [vmem:[#allocation3 + $0xf0] sm:$0xff] %vm1729, %v3730
      %3796 = vst.msk [vmem:[#allocation3 + $0xf8] sm:$0xff] %vm1729, %v3732
      %v3797 = vld [vmem:[%s1375 + $0x2] sm:$0xff]
      %v3798 = vld [vmem:[%s1375 + $0xa] sm:$0xff]
      %v3799 = vld [vmem:[%s1375 + $0x1a] sm:$0xff]
      %v3800 = vld [vmem:[%s1375 + $0x22] sm:$0xff]
      %v3801 = vld [vmem:[%s1375 + $0x32] sm:$0xff]
      %v3802 = vld [vmem:[%s1375 + $0x3a] sm:$0xff]
      %v3803 = vld [vmem:[%s1375 + $0x4a] sm:$0xff]
      %v3804 = vld [vmem:[%s1375 + $0x52] sm:$0xff]
      %v3805 = vld [vmem:[%s1375 + $0x62] sm:$0xff]
      %v3806 = vld [vmem:[%s1375 + $0x6a] sm:$0xff]
      %v3807 = vld [vmem:[%s1375 + $0x7a] sm:$0xff]
      %v3808 = vld [vmem:[%s1375 + $0x82] sm:$0xff]
      %v3809 = vld [vmem:[%s1375 + $0x92] sm:$0xff]
      %v3810 = vld [vmem:[%s1375 + $0x9a] sm:$0xff]
      %v3811 = vld [vmem:[%s1375 + $0xaa] sm:$0xff]
      %v3812 = vld [vmem:[%s1375 + $0xb2] sm:$0xff]
      %v3813 = vld [vmem:[%s1375 + $0xc2] sm:$0xff]
      %v3814 = vld [vmem:[%s1375 + $0xca] sm:$0xff]
      %v3815 = vld [vmem:[%s1375 + $0xda] sm:$0xff]
      %v3816 = vld [vmem:[%s1375 + $0xe2] sm:$0xff]
      %v3817 = vld [vmem:[%s1375 + $0xf2] sm:$0xff]
      %v3818 = vld [vmem:[%s1375 + $0xfa] sm:$0xff]
      %v3819 = vld [vmem:[%s1375 + $0x10a] sm:$0xff]
      %v3820 = vld [vmem:[%s1375 + $0x112] sm:$0xff]
      %v3821 = vld [vmem:[%s1375 + $0x122] sm:$0xff]
      %v3822 = vld [vmem:[%s1375 + $0x12a] sm:$0xff]
      %v3823 = vld [vmem:[%s1375 + $0x13a] sm:$0xff]
      %v3824 = vld [vmem:[%s1375 + $0x142] sm:$0xff]
      %v3825 = vld [vmem:[%s1375 + $0x152] sm:$0xff]
      %v3826 = vld [vmem:[%s1375 + $0x15a] sm:$0xff]
      %v3827 = vld [vmem:[%s1375 + $0x16a] sm:$0xff]
      %v3828 = vld [vmem:[%s1375 + $0x172] sm:$0xff]
      %3861 = vrot.lane.b32.xlu0 %v3797, 32
      %v3862 = vpop.permute.xlu0 %3861
      %3863 = vrot.lane.b32.xlu0 %v3798, 32
      %v3864 = vpop.permute.xlu0 %3863
      %3865 = vrot.lane.b32.xlu0 %v3799, 32
      %v3866 = vpop.permute.xlu0 %3865
      %3867 = vrot.lane.b32.xlu0 %v3800, 32
      %v3868 = vpop.permute.xlu0 %3867
      %3869 = vrot.lane.b32.xlu0 %v3801, 32
      %v3870 = vpop.permute.xlu0 %3869
      %3871 = vrot.lane.b32.xlu0 %v3802, 32
      %v3872 = vpop.permute.xlu0 %3871
      %3873 = vrot.lane.b32.xlu0 %v3803, 32
      %v3874 = vpop.permute.xlu0 %3873
      %3875 = vrot.lane.b32.xlu0 %v3804, 32
      %v3876 = vpop.permute.xlu0 %3875
      %3877 = vrot.lane.b32.xlu0 %v3805, 32
      %v3878 = vpop.permute.xlu0 %3877
      %3879 = vrot.lane.b32.xlu0 %v3806, 32
      %v3880 = vpop.permute.xlu0 %3879
      %3881 = vrot.lane.b32.xlu0 %v3807, 32
      %v3882 = vpop.permute.xlu0 %3881
      %3883 = vrot.lane.b32.xlu0 %v3808, 32
      %v3884 = vpop.permute.xlu0 %3883
      %3885 = vrot.lane.b32.xlu0 %v3809, 32
      %v3886 = vpop.permute.xlu0 %3885
      %3887 = vrot.lane.b32.xlu0 %v3810, 32
      %v3888 = vpop.permute.xlu0 %3887
      %3889 = vrot.lane.b32.xlu0 %v3811, 32
      %v3890 = vpop.permute.xlu0 %3889
      %3891 = vrot.lane.b32.xlu0 %v3812, 32
      %v3892 = vpop.permute.xlu0 %3891
      %3893 = vrot.lane.b32.xlu0 %v3813, 32
      %v3894 = vpop.permute.xlu0 %3893
      %3895 = vrot.lane.b32.xlu0 %v3814, 32
      %v3896 = vpop.permute.xlu0 %3895
      %3897 = vrot.lane.b32.xlu0 %v3815, 32
      %v3898 = vpop.permute.xlu0 %3897
      %3899 = vrot.lane.b32.xlu0 %v3816, 32
      %v3900 = vpop.permute.xlu0 %3899
      %3901 = vrot.lane.b32.xlu0 %v3817, 32
      %v3902 = vpop.permute.xlu0 %3901
      %3903 = vrot.lane.b32.xlu0 %v3818, 32
      %v3904 = vpop.permute.xlu0 %3903
      %3905 = vrot.lane.b32.xlu0 %v3819, 32
      %v3906 = vpop.permute.xlu0 %3905
      %3907 = vrot.lane.b32.xlu0 %v3820, 32
      %v3908 = vpop.permute.xlu0 %3907
      %3909 = vrot.lane.b32.xlu0 %v3821, 32
      %v3910 = vpop.permute.xlu0 %3909
      %3911 = vrot.lane.b32.xlu0 %v3822, 32
      %v3912 = vpop.permute.xlu0 %3911
      %3913 = vrot.lane.b32.xlu0 %v3823, 32
      %v3914 = vpop.permute.xlu0 %3913
      %3915 = vrot.lane.b32.xlu0 %v3824, 32
      %v3916 = vpop.permute.xlu0 %3915
      %3917 = vrot.lane.b32.xlu0 %v3825, 32
      %v3918 = vpop.permute.xlu0 %3917
      %3919 = vrot.lane.b32.xlu0 %v3826, 32
      %v3920 = vpop.permute.xlu0 %3919
      %3921 = vrot.lane.b32.xlu0 %v3827, 32
      %v3922 = vpop.permute.xlu0 %3921
      %3923 = vrot.lane.b32.xlu0 %v3828, 32
      %v3924 = vpop.permute.xlu0 %3923
      %3957 = vst.msk [vmem:[#allocation3] sm:$0xff] %vm1922, %v3862
      %3958 = vst.msk [vmem:[#allocation3 + $0x8] sm:$0xff] %vm1922, %v3864
      %3959 = vst.msk [vmem:[#allocation3 + $0x10] sm:$0xff] %vm1922, %v3866
      %3960 = vst.msk [vmem:[#allocation3 + $0x18] sm:$0xff] %vm1922, %v3868
      %3961 = vst.msk [vmem:[#allocation3 + $0x20] sm:$0xff] %vm1922, %v3870
      %3962 = vst.msk [vmem:[#allocation3 + $0x28] sm:$0xff] %vm1922, %v3872
      %3963 = vst.msk [vmem:[#allocation3 + $0x30] sm:$0xff] %vm1922, %v3874
      %3964 = vst.msk [vmem:[#allocation3 + $0x38] sm:$0xff] %vm1922, %v3876
      %3965 = vst.msk [vmem:[#allocation3 + $0x40] sm:$0xff] %vm1922, %v3878
      %3966 = vst.msk [vmem:[#allocation3 + $0x48] sm:$0xff] %vm1922, %v3880
      %3967 = vst.msk [vmem:[#allocation3 + $0x50] sm:$0xff] %vm1922, %v3882
      %3968 = vst.msk [vmem:[#allocation3 + $0x58] sm:$0xff] %vm1922, %v3884
      %3969 = vst.msk [vmem:[#allocation3 + $0x60] sm:$0xff] %vm1922, %v3886
      %3970 = vst.msk [vmem:[#allocation3 + $0x68] sm:$0xff] %vm1922, %v3888
      %3971 = vst.msk [vmem:[#allocation3 + $0x70] sm:$0xff] %vm1922, %v3890
      %3972 = vst.msk [vmem:[#allocation3 + $0x78] sm:$0xff] %vm1922, %v3892
      %3973 = vst.msk [vmem:[#allocation3 + $0x80] sm:$0xff] %vm1922, %v3894
      %3974 = vst.msk [vmem:[#allocation3 + $0x88] sm:$0xff] %vm1922, %v3896
      %3975 = vst.msk [vmem:[#allocation3 + $0x90] sm:$0xff] %vm1922, %v3898
      %3976 = vst.msk [vmem:[#allocation3 + $0x98] sm:$0xff] %vm1922, %v3900
      %3977 = vst.msk [vmem:[#allocation3 + $0xa0] sm:$0xff] %vm1922, %v3902
      %3978 = vst.msk [vmem:[#allocation3 + $0xa8] sm:$0xff] %vm1922, %v3904
      %3979 = vst.msk [vmem:[#allocation3 + $0xb0] sm:$0xff] %vm1922, %v3906
      %3980 = vst.msk [vmem:[#allocation3 + $0xb8] sm:$0xff] %vm1922, %v3908
      %3981 = vst.msk [vmem:[#allocation3 + $0xc0] sm:$0xff] %vm1922, %v3910
      %3982 = vst.msk [vmem:[#allocation3 + $0xc8] sm:$0xff] %vm1922, %v3912
      %3983 = vst.msk [vmem:[#allocation3 + $0xd0] sm:$0xff] %vm1922, %v3914
      %3984 = vst.msk [vmem:[#allocation3 + $0xd8] sm:$0xff] %vm1922, %v3916
      %3985 = vst.msk [vmem:[#allocation3 + $0xe0] sm:$0xff] %vm1922, %v3918
      %3986 = vst.msk [vmem:[#allocation3 + $0xe8] sm:$0xff] %vm1922, %v3920
      %3987 = vst.msk [vmem:[#allocation3 + $0xf0] sm:$0xff] %vm1922, %v3922
      %3988 = vst.msk [vmem:[#allocation3 + $0xf8] sm:$0xff] %vm1922, %v3924
      %v3989 = vld [vmem:[#allocation3] sm:$0xff]
      %v3990 = vld [vmem:[#allocation3 + $0x8] sm:$0xff]
      %v3991 = vld [vmem:[#allocation3 + $0x10] sm:$0xff]
      %v3992 = vld [vmem:[#allocation3 + $0x18] sm:$0xff]
      %v3993 = vld [vmem:[#allocation3 + $0x20] sm:$0xff]
      %v3994 = vld [vmem:[#allocation3 + $0x28] sm:$0xff]
      %v3995 = vld [vmem:[#allocation3 + $0x30] sm:$0xff]
      %v3996 = vld [vmem:[#allocation3 + $0x38] sm:$0xff]
      %v3997 = vld [vmem:[#allocation3 + $0x40] sm:$0xff]
      %v3998 = vld [vmem:[#allocation3 + $0x48] sm:$0xff]
      %v3999 = vld [vmem:[#allocation3 + $0x50] sm:$0xff]
      %v4000 = vld [vmem:[#allocation3 + $0x58] sm:$0xff]
      %v4001 = vld [vmem:[#allocation3 + $0x60] sm:$0xff]
      %v4002 = vld [vmem:[#allocation3 + $0x68] sm:$0xff]
      %v4003 = vld [vmem:[#allocation3 + $0x70] sm:$0xff]
      %v4004 = vld [vmem:[#allocation3 + $0x78] sm:$0xff]
      %v4005 = vld [vmem:[#allocation3 + $0x80] sm:$0xff]
      %v4006 = vld [vmem:[#allocation3 + $0x88] sm:$0xff]
      %v4007 = vld [vmem:[#allocation3 + $0x90] sm:$0xff]
      %v4008 = vld [vmem:[#allocation3 + $0x98] sm:$0xff]
      %v4009 = vld [vmem:[#allocation3 + $0xa0] sm:$0xff]
      %v4010 = vld [vmem:[#allocation3 + $0xa8] sm:$0xff]
      %v4011 = vld [vmem:[#allocation3 + $0xb0] sm:$0xff]
      %v4012 = vld [vmem:[#allocation3 + $0xb8] sm:$0xff]
      %v4013 = vld [vmem:[#allocation3 + $0xc0] sm:$0xff]
      %v4014 = vld [vmem:[#allocation3 + $0xc8] sm:$0xff]
      %v4015 = vld [vmem:[#allocation3 + $0xd0] sm:$0xff]
      %v4016 = vld [vmem:[#allocation3 + $0xd8] sm:$0xff]
      %v4017 = vld [vmem:[#allocation3 + $0xe0] sm:$0xff]
      %v4018 = vld [vmem:[#allocation3 + $0xe8] sm:$0xff]
      %v4019 = vld [vmem:[#allocation3 + $0xf0] sm:$0xff]
      %v4020 = vld [vmem:[#allocation3 + $0xf8] sm:$0xff]
      %v4021 = vld [vmem:[%s3] sm:$0xff]
      %v4022 = vld [vmem:[%s3 + $0x8] sm:$0xff]
      %v4023 = vld [vmem:[%s3 + $0x10] sm:$0xff]
      %v4024 = vld [vmem:[%s3 + $0x18] sm:$0xff]
      %v4025 = vld [vmem:[%s3 + $0x20] sm:$0xf]
      %v4026 = vld [vmem:[%s4] sm:$0x1]
      %v4028 = vlaneseq
      %v4029 = vshrl.u32 %v4028, 7
      %v4030 = vsub.s32 0, %v4029
      %v4031 = vrot.slane %v4026, %v4030
      %v4034 = vsel %vm1999, %v3989, 0
      %v4037 = vsel %vm1999, %v3990, 0
      %v4040 = vsel %vm1999, %v3991, 0
      %v4043 = vsel %vm1999, %v3992, 0
      %v4046 = vsel %vm1999, %v3993, 0
      %v4049 = vsel %vm1999, %v3994, 0
      %v4052 = vsel %vm1999, %v3995, 0
      %v4055 = vsel %vm1999, %v3996, 0
      %v4058 = vsel %vm1999, %v3997, 0
      %v4061 = vsel %vm1999, %v3998, 0
      %v4064 = vsel %vm1999, %v3999, 0
      %v4067 = vsel %vm1999, %v4000, 0
      %v4070 = vsel %vm1999, %v4001, 0
      %v4073 = vsel %vm1999, %v4002, 0
      %v4076 = vsel %vm1999, %v4003, 0
      %v4079 = vsel %vm1999, %v4004, 0
      %v4082 = vsel %vm1999, %v4005, 0
      %v4085 = vsel %vm1999, %v4006, 0
      %v4088 = vsel %vm1999, %v4007, 0
      %v4091 = vsel %vm1999, %v4008, 0
      %v4094 = vsel %vm1999, %v4009, 0
      %v4097 = vsel %vm1999, %v4010, 0
      %v4100 = vsel %vm1999, %v4011, 0
      %v4103 = vsel %vm1999, %v4012, 0
      %v4106 = vsel %vm1999, %v4013, 0
      %v4109 = vsel %vm1999, %v4014, 0
      %v4112 = vsel %vm1999, %v4015, 0
      %v4115 = vsel %vm1999, %v4016, 0
      %v4118 = vsel %vm1999, %v4017, 0
      %v4121 = vsel %vm1999, %v4018, 0
      %v4124 = vsel %vm1999, %v4019, 0
      %v4127 = vsel %vm1999, %v4020, 0
      %v4130 = vsel %vm2096, %v4025, 0
      %4132 = vmatprep.subr.mxu0 0.0
      %4133 = vmatpush1.msra.mxu0 %v4021
      %4134 = vmatprep.subr.mxu0 0.0
      %4135 = vmatpush1.msra.mxu0 %v4022
      %4136 = vmatprep.subr.mxu0 0.0
      %4137 = vmatpush1.msra.mxu0 %v4023
      %4138 = vmatprep.subr.mxu0 0.0
      %4139 = vmatpush1.msra.mxu0 %v4024
      %4140 = vmatprep.subr.mxu0 0.0
      %4141 = vmatpush1.msra.mxu0 %v4130
      %4142 = vmatprep.subr.mxu0 0.0
      %4143 = vmatpush1.msra.mxu0 0.0
      %4144 = vmatprep.subr.mxu0 0.0
      %4145 = vmatpush1.msra.mxu0 0.0
      %4146 = vmatprep.subr.mxu0 0.0
      %4147 = vmatpush1.msra.mxu0 0.0
      %4148 = vmatprep.subr.mxu0 0.0
      %4149 = vmatpush1.msra.mxu0 0.0
      %4150 = vmatprep.subr.mxu0 0.0
      %4151 = vmatpush1.msra.mxu0 0.0
      %4152 = vmatprep.subr.mxu0 0.0
      %4153 = vmatpush1.msra.mxu0 0.0
      %4154 = vmatprep.subr.mxu0 0.0
      %4155 = vmatpush1.msra.mxu0 0.0
      %4156 = vmatprep.subr.mxu0 0.0
      %4157 = vmatpush1.msra.mxu0 0.0
      %4158 = vmatprep.subr.mxu0 0.0
      %4159 = vmatpush1.msra.mxu0 0.0
      %4160 = vmatprep.subr.mxu0 0.0
      %4161 = vmatpush1.msra.mxu0 0.0
      %4162 = vmatprep.subr.mxu0 0.0
      %4163 = vmatpush1.msra.mxu0 0.0
      %4164 = vmatprep.subr.mxu0 0.0
      %4165 = vmatpush1.msra.mxu0 0.0
      %4166 = vmatprep.subr.mxu0 0.0
      %4167 = vmatpush1.msra.mxu0 0.0
      %4168 = vmatprep.subr.mxu0 0.0
      %4169 = vmatpush1.msra.mxu0 0.0
      %4170 = vmatprep.subr.mxu0 0.0
      %4171 = vmatpush1.msra.mxu0 0.0
      %4172 = vmatprep.subr.mxu0 0.0
      %4173 = vmatpush1.msra.mxu0 0.0
      %4174 = vmatprep.subr.mxu0 0.0
      %4175 = vmatpush1.msra.mxu0 0.0
      %4176 = vmatprep.subr.mxu0 0.0
      %4177 = vmatpush1.msra.mxu0 0.0
      %4178 = vmatprep.subr.mxu0 0.0
      %4179 = vmatpush1.msra.mxu0 0.0
      %4180 = vmatprep.subr.mxu0 0.0
      %4181 = vmatpush1.msra.mxu0 0.0
      %4182 = vmatprep.subr.mxu0 0.0
      %4183 = vmatpush1.msra.mxu0 0.0
      %4184 = vmatprep.subr.mxu0 0.0
      %4185 = vmatpush1.msra.mxu0 0.0
      %4186 = vmatprep.subr.mxu0 0.0
      %4187 = vmatpush1.msra.mxu0 0.0
      %4188 = vmatprep.subr.mxu0 0.0
      %4189 = vmatpush1.msra.mxu0 0.0
      %4190 = vmatprep.subr.mxu0 0.0
      %4191 = vmatpush1.msra.mxu0 0.0
      %4192 = vmatprep.subr.mxu0 0.0
      %4193 = vmatpush1.msra.mxu0 0.0
      %4194 = vmatprep.subr.mxu0 0.0
      %4195 = vmatpush1.msra.mxu0 0.0
      %4196 = vmatprep.mubr.f32.mxu0 0.0
      %4197 = vmatmul.mubr.f32.gmra.mrb[0].mxu0 %v4034
      %v4198 = vpop.f32.mrb[0].mxu0
      %v4199 = vadd.f32 %v4031, %v4198
      %v4200 = vpop.f32.mrb[0].mxu0
      %4201 = vmatprep.mubr.f32.mxu0 0.0
      %4202 = vmatmul.mubr.f32.gmra.mrb[0].mxu0 %v4037
      %v4203 = vpop.f32.mrb[0].mxu0
      %v4204 = vadd.f32 %v4031, %v4203
      %v4205 = vpop.f32.mrb[0].mxu0
      %4206 = vmatprep.mubr.f32.mxu0 0.0
      %4207 = vmatmul.mubr.f32.gmra.mrb[0].mxu0 %v4040
      %v4208 = vpop.f32.mrb[0].mxu0
      %v4209 = vadd.f32 %v4031, %v4208
      %v4210 = vpop.f32.mrb[0].mxu0
      %4211 = vmatprep.mubr.f32.mxu0 0.0
      %4212 = vmatmul.mubr.f32.gmra.mrb[0].mxu0 %v4043
      %v4213 = vpop.f32.mrb[0].mxu0
      %v4214 = vadd.f32 %v4031, %v4213
      %v4215 = vpop.f32.mrb[0].mxu0
      %4216 = vmatprep.mubr.f32.mxu0 0.0
      %4217 = vmatmul.mubr.f32.gmra.mrb[0].mxu0 %v4046
      %v4218 = vpop.f32.mrb[0].mxu0
      %v4219 = vadd.f32 %v4031, %v4218
      %v4220 = vpop.f32.mrb[0].mxu0
      %4221 = vmatprep.mubr.f32.mxu0 0.0
      %4222 = vmatmul.mubr.f32.gmra.mrb[0].mxu0 %v4049
      %v4223 = vpop.f32.mrb[0].mxu0
      %v4224 = vadd.f32 %v4031, %v4223
      %v4225 = vpop.f32.mrb[0].mxu0
      %4226 = vmatprep.mubr.f32.mxu0 0.0
      %4227 = vmatmul.mubr.f32.gmra.mrb[0].mxu0 %v4052
      %v4228 = vpop.f32.mrb[0].mxu0
      %v4229 = vadd.f32 %v4031, %v4228
      %v4230 = vpop.f32.mrb[0].mxu0
      %4231 = vmatprep.mubr.f32.mxu0 0.0
      %4232 = vmatmul.mubr.f32.gmra.mrb[0].mxu0 %v4055
      %v4233 = vpop.f32.mrb[0].mxu0
      %v4234 = vadd.f32 %v4031, %v4233
      %v4235 = vpop.f32.mrb[0].mxu0
      %4236 = vmatprep.mubr.f32.mxu0 0.0
      %4237 = vmatmul.mubr.f32.gmra.mrb[0].mxu0 %v4058
      %v4238 = vpop.f32.mrb[0].mxu0
      %v4239 = vadd.f32 %v4031, %v4238
      %v4240 = vpop.f32.mrb[0].mxu0
      %4241 = vmatprep.mubr.f32.mxu0 0.0
      %4242 = vmatmul.mubr.f32.gmra.mrb[0].mxu0 %v4061
      %v4243 = vpop.f32.mrb[0].mxu0
      %v4244 = vadd.f32 %v4031, %v4243
      %v4245 = vpop.f32.mrb[0].mxu0
      %4246 = vmatprep.mubr.f32.mxu0 0.0
      %4247 = vmatmul.mubr.f32.gmra.mrb[0].mxu0 %v4064
      %v4248 = vpop.f32.mrb[0].mxu0
      %v4249 = vadd.f32 %v4031, %v4248
      %v4250 = vpop.f32.mrb[0].mxu0
      %4251 = vmatprep.mubr.f32.mxu0 0.0
      %4252 = vmatmul.mubr.f32.gmra.mrb[0].mxu0 %v4067
      %v4253 = vpop.f32.mrb[0].mxu0
      %v4254 = vadd.f32 %v4031, %v4253
      %v4255 = vpop.f32.mrb[0].mxu0
      %4256 = vmatprep.mubr.f32.mxu0 0.0
      %4257 = vmatmul.mubr.f32.gmra.mrb[0].mxu0 %v4070
      %v4258 = vpop.f32.mrb[0].mxu0
      %v4259 = vadd.f32 %v4031, %v4258
      %v4260 = vpop.f32.mrb[0].mxu0
      %4261 = vmatprep.mubr.f32.mxu0 0.0
      %4262 = vmatmul.mubr.f32.gmra.mrb[0].mxu0 %v4073
      %v4263 = vpop.f32.mrb[0].mxu0
      %v4264 = vadd.f32 %v4031, %v4263
      %v4265 = vpop.f32.mrb[0].mxu0
      %4266 = vmatprep.mubr.f32.mxu0 0.0
      %4267 = vmatmul.mubr.f32.gmra.mrb[0].mxu0 %v4076
      %v4268 = vpop.f32.mrb[0].mxu0
      %v4269 = vadd.f32 %v4031, %v4268
      %v4270 = vpop.f32.mrb[0].mxu0
      %4271 = vmatprep.mubr.f32.mxu0 0.0
      %4272 = vmatmul.mubr.f32.gmra.mrb[0].mxu0 %v4079
      %v4273 = vpop.f32.mrb[0].mxu0
      %v4274 = vadd.f32 %v4031, %v4273
      %v4275 = vpop.f32.mrb[0].mxu0
      %4276 = vmatprep.mubr.f32.mxu0 0.0
      %4277 = vmatmul.mubr.f32.gmra.mrb[0].mxu0 %v4082
      %v4278 = vpop.f32.mrb[0].mxu0
      %v4279 = vadd.f32 %v4031, %v4278
      %v4280 = vpop.f32.mrb[0].mxu0
      %4281 = vmatprep.mubr.f32.mxu0 0.0
      %4282 = vmatmul.mubr.f32.gmra.mrb[0].mxu0 %v4085
      %v4283 = vpop.f32.mrb[0].mxu0
      %v4284 = vadd.f32 %v4031, %v4283
      %v4285 = vpop.f32.mrb[0].mxu0
      %4286 = vmatprep.mubr.f32.mxu0 0.0
      %4287 = vmatmul.mubr.f32.gmra.mrb[0].mxu0 %v4088
      %v4288 = vpop.f32.mrb[0].mxu0
      %v4289 = vadd.f32 %v4031, %v4288
      %v4290 = vpop.f32.mrb[0].mxu0
      %4291 = vmatprep.mubr.f32.mxu0 0.0
      %4292 = vmatmul.mubr.f32.gmra.mrb[0].mxu0 %v4091
      %v4293 = vpop.f32.mrb[0].mxu0
      %v4294 = vadd.f32 %v4031, %v4293
      %v4295 = vpop.f32.mrb[0].mxu0
      %4296 = vmatprep.mubr.f32.mxu0 0.0
      %4297 = vmatmul.mubr.f32.gmra.mrb[0].mxu0 %v4094
      %v4298 = vpop.f32.mrb[0].mxu0
      %v4299 = vadd.f32 %v4031, %v4298
      %v4300 = vpop.f32.mrb[0].mxu0
      %4301 = vmatprep.mubr.f32.mxu0 0.0
      %4302 = vmatmul.mubr.f32.gmra.mrb[0].mxu0 %v4097
      %v4303 = vpop.f32.mrb[0].mxu0
      %v4304 = vadd.f32 %v4031, %v4303
      %v4305 = vpop.f32.mrb[0].mxu0
      %4306 = vmatprep.mubr.f32.mxu0 0.0
      %4307 = vmatmul.mubr.f32.gmra.mrb[0].mxu0 %v4100
      %v4308 = vpop.f32.mrb[0].mxu0
      %v4309 = vadd.f32 %v4031, %v4308
      %v4310 = vpop.f32.mrb[0].mxu0
      %4311 = vmatprep.mubr.f32.mxu0 0.0
      %4312 = vmatmul.mubr.f32.gmra.mrb[0].mxu0 %v4103
      %v4313 = vpop.f32.mrb[0].mxu0
      %v4314 = vadd.f32 %v4031, %v4313
      %v4315 = vpop.f32.mrb[0].mxu0
      %4316 = vmatprep.mubr.f32.mxu0 0.0
      %4317 = vmatmul.mubr.f32.gmra.mrb[0].mxu0 %v4106
      %v4318 = vpop.f32.mrb[0].mxu0
      %v4319 = vadd.f32 %v4031, %v4318
      %v4320 = vpop.f32.mrb[0].mxu0
      %4321 = vmatprep.mubr.f32.mxu0 0.0
      %4322 = vmatmul.mubr.f32.gmra.mrb[0].mxu0 %v4109
      %v4323 = vpop.f32.mrb[0].mxu0
      %v4324 = vadd.f32 %v4031, %v4323
      %v4325 = vpop.f32.mrb[0].mxu0
      %4326 = vmatprep.mubr.f32.mxu0 0.0
      %4327 = vmatmul.mubr.f32.gmra.mrb[0].mxu0 %v4112
      %v4328 = vpop.f32.mrb[0].mxu0
      %v4329 = vadd.f32 %v4031, %v4328
      %v4330 = vpop.f32.mrb[0].mxu0
      %4331 = vmatprep.mubr.f32.mxu0 0.0
      %4332 = vmatmul.mubr.f32.gmra.mrb[0].mxu0 %v4115
      %v4333 = vpop.f32.mrb[0].mxu0
      %v4334 = vadd.f32 %v4031, %v4333
      %v4335 = vpop.f32.mrb[0].mxu0
      %4336 = vmatprep.mubr.f32.mxu0 0.0
      %4337 = vmatmul.mubr.f32.gmra.mrb[0].mxu0 %v4118
      %v4338 = vpop.f32.mrb[0].mxu0
      %v4339 = vadd.f32 %v4031, %v4338
      %v4340 = vpop.f32.mrb[0].mxu0
      %4341 = vmatprep.mubr.f32.mxu0 0.0
      %4342 = vmatmul.mubr.f32.gmra.mrb[0].mxu0 %v4121
      %v4343 = vpop.f32.mrb[0].mxu0
      %v4344 = vadd.f32 %v4031, %v4343
      %v4345 = vpop.f32.mrb[0].mxu0
      %4346 = vmatprep.mubr.f32.mxu0 0.0
      %4347 = vmatmul.mubr.f32.gmra.mrb[0].mxu0 %v4124
      %v4348 = vpop.f32.mrb[0].mxu0
      %v4349 = vadd.f32 %v4031, %v4348
      %v4350 = vpop.f32.mrb[0].mxu0
      %4351 = vmatprep.mubr.f32.mxu0 0.0
      %4352 = vmatmul.mubr.f32.gmra.mrb[0].mxu0 %v4127
      %v4353 = vpop.f32.mrb[0].mxu0
      %v4354 = vadd.f32 %v4031, %v4353
      %v4355 = vpop.f32.mrb[0].mxu0
      %4356 = vdwg.mxu0
      %v4357 = vadd.f32 %v4199, %v281
      %v4358 = vadd.f32 %v4204, %v282
      %v4359 = vadd.f32 %v4209, %v283
      %v4360 = vadd.f32 %v4214, %v284
      %v4361 = vadd.f32 %v4219, %v285
      %v4362 = vadd.f32 %v4224, %v286
      %v4363 = vadd.f32 %v4229, %v287
      %v4364 = vadd.f32 %v4234, %v288
      %v4365 = vadd.f32 %v4239, %v289
      %v4366 = vadd.f32 %v4244, %v290
      %v4367 = vadd.f32 %v4249, %v291
      %v4368 = vadd.f32 %v4254, %v292
      %v4369 = vadd.f32 %v4259, %v293
      %v4370 = vadd.f32 %v4264, %v294
      %v4371 = vadd.f32 %v4269, %v295
      %v4372 = vadd.f32 %v4274, %v296
      %v4373 = vadd.f32 %v4279, %v297
      %v4374 = vadd.f32 %v4284, %v298
      %v4375 = vadd.f32 %v4289, %v299
      %v4376 = vadd.f32 %v4294, %v300
      %v4377 = vadd.f32 %v4299, %v301
      %v4378 = vadd.f32 %v4304, %v302
      %v4379 = vadd.f32 %v4309, %v303
      %v4380 = vadd.f32 %v4314, %v304
      %v4381 = vadd.f32 %v4319, %v305
      %v4382 = vadd.f32 %v4324, %v306
      %v4383 = vadd.f32 %v4329, %v307
      %v4384 = vadd.f32 %v4334, %v308
      %v4385 = vadd.f32 %v4339, %v309
      %v4386 = vadd.f32 %v4344, %v310
      %v4387 = vadd.f32 %v4349, %v311
      %v4388 = vadd.f32 %v4354, %v312
      %v4389 = vmax.f32 %v4357, 0.0
      %v4390 = vmax.f32 %v4358, 0.0
      %v4391 = vmax.f32 %v4359, 0.0
      %v4392 = vmax.f32 %v4360, 0.0
      %v4393 = vmax.f32 %v4361, 0.0
      %v4394 = vmax.f32 %v4362, 0.0
      %v4395 = vmax.f32 %v4363, 0.0
      %v4396 = vmax.f32 %v4364, 0.0
      %v4397 = vmax.f32 %v4365, 0.0
      %v4398 = vmax.f32 %v4366, 0.0
      %v4399 = vmax.f32 %v4367, 0.0
      %v4400 = vmax.f32 %v4368, 0.0
      %v4401 = vmax.f32 %v4369, 0.0
      %v4402 = vmax.f32 %v4370, 0.0
      %v4403 = vmax.f32 %v4371, 0.0
      %v4404 = vmax.f32 %v4372, 0.0
      %v4405 = vmax.f32 %v4373, 0.0
      %v4406 = vmax.f32 %v4374, 0.0
      %v4407 = vmax.f32 %v4375, 0.0
      %v4408 = vmax.f32 %v4376, 0.0
      %v4409 = vmax.f32 %v4377, 0.0
      %v4410 = vmax.f32 %v4378, 0.0
      %v4411 = vmax.f32 %v4379, 0.0
      %v4412 = vmax.f32 %v4380, 0.0
      %v4413 = vmax.f32 %v4381, 0.0
      %v4414 = vmax.f32 %v4382, 0.0
      %v4415 = vmax.f32 %v4383, 0.0
      %v4416 = vmax.f32 %v4384, 0.0
      %v4417 = vmax.f32 %v4385, 0.0
      %v4418 = vmax.f32 %v4386, 0.0
      %v4419 = vmax.f32 %v4387, 0.0
      %v4420 = vmax.f32 %v4388, 0.0
      %4421 = vst.msk [vmem:[%s224] sm:$0xff] %vm225, %v4389
      %4422 = vst.msk [vmem:[%s224 + $0x8] sm:$0xff] %vm225, %v4390
      %4423 = vst.msk [vmem:[%s224 + $0x10] sm:$0xff] %vm225, %v4391
      %4424 = vst.msk [vmem:[%s224 + $0x18] sm:$0xff] %vm225, %v4392
      %4425 = vst.msk [vmem:[%s224 + $0x20] sm:$0xff] %vm225, %v4393
      %4426 = vst.msk [vmem:[%s224 + $0x28] sm:$0xff] %vm225, %v4394
      %4427 = vst.msk [vmem:[%s224 + $0x30] sm:$0xff] %vm225, %v4395
      %4428 = vst.msk [vmem:[%s224 + $0x38] sm:$0xff] %vm225, %v4396
      %4429 = vst.msk [vmem:[%s224 + $0x40] sm:$0xff] %vm225, %v4397
      %4430 = vst.msk [vmem:[%s224 + $0x48] sm:$0xff] %vm225, %v4398
      %4431 = vst.msk [vmem:[%s224 + $0x50] sm:$0xff] %vm225, %v4399
      %4432 = vst.msk [vmem:[%s224 + $0x58] sm:$0xff] %vm225, %v4400
      %4433 = vst.msk [vmem:[%s224 + $0x60] sm:$0xff] %vm225, %v4401
      %4434 = vst.msk [vmem:[%s224 + $0x68] sm:$0xff] %vm225, %v4402
      %4435 = vst.msk [vmem:[%s224 + $0x70] sm:$0xff] %vm225, %v4403
      %4436 = vst.msk [vmem:[%s224 + $0x78] sm:$0xff] %vm225, %v4404
      %4437 = vst.msk [vmem:[%s224 + $0x80] sm:$0xff] %vm225, %v4405
      %4438 = vst.msk [vmem:[%s224 + $0x88] sm:$0xff] %vm225, %v4406
      %4439 = vst.msk [vmem:[%s224 + $0x90] sm:$0xff] %vm225, %v4407
      %4440 = vst.msk [vmem:[%s224 + $0x98] sm:$0xff] %vm225, %v4408
      %4441 = vst.msk [vmem:[%s224 + $0xa0] sm:$0xff] %vm225, %v4409
      %4442 = vst.msk [vmem:[%s224 + $0xa8] sm:$0xff] %vm225, %v4410
      %4443 = vst.msk [vmem:[%s224 + $0xb0] sm:$0xff] %vm225, %v4411
      %4444 = vst.msk [vmem:[%s224 + $0xb8] sm:$0xff] %vm225, %v4412
      %4445 = vst.msk [vmem:[%s224 + $0xc0] sm:$0xff] %vm225, %v4413
      %4446 = vst.msk [vmem:[%s224 + $0xc8] sm:$0xff] %vm225, %v4414
      %4447 = vst.msk [vmem:[%s224 + $0xd0] sm:$0xff] %vm225, %v4415
      %4448 = vst.msk [vmem:[%s224 + $0xd8] sm:$0xff] %vm225, %v4416
      %4449 = vst.msk [vmem:[%s224 + $0xe0] sm:$0xff] %vm225, %v4417
      %4450 = vst.msk [vmem:[%s224 + $0xe8] sm:$0xff] %vm225, %v4418
      %4451 = vst.msk [vmem:[%s224 + $0xf0] sm:$0xff] %vm225, %v4419
      %4452 = vst.msk [vmem:[%s224 + $0xf8] sm:$0xff] %vm225, %v4420
      %p4453 = scmp.lt.s32.totalorder %s16, 1
      %s4454 = scalar_select %p4453, %s16, 1
      %s4455 = smul.addr %s4454, 32
      %s4456 = smul.addr %s4455, 8
      %s4457 = scalar_lea.vmem %s5, %s4456
      // Predicated region
      $region41: #{tpu_custom_call.1} parent=39 // pred_check
        %p4458 = pneg %p144
      $region42: #{tpu_custom_call.1} parent=39 // pred_check_branch
        %4460 = sbr.rel (%p4458) target = $region44
      $region43: #{tpu_custom_call.1} parent=39 // pred_region
        _
      $region44: #{tpu_custom_call.1} parent=39 // pred_fallthru
        _
    $region40: #{tpu_custom_call.1} parent=5 // pred_fallthru
      _
    %p4461 = scmp.le.s32.totalorder 2, %s11
    // Predicated region
    $region45: #{tpu_custom_call.1} parent=5 // pred_check
      %p4462 = pneg %p4461
    $region46: #{tpu_custom_call.1} parent=5 // pred_check_branch
      %4464 = sbr.rel (%p4462) target = $region48
    $region47: #{tpu_custom_call.1} parent=5 // pred_region
      %s4465 = ssub.s32 %s11, 2
      // Predicated region
      $region49: #{tpu_custom_call.1} parent=47 // pred_check
        %p4466 = pneg %p150
      $region50: #{tpu_custom_call.1} parent=47 // pred_check_branch
        %4468 = sbr.rel (%p4466) target = $region52
      $region51: #{tpu_custom_call.1} parent=47 // pred_region
        %p4469 = scmp.lt.s32.totalorder %s17, 1
        %s4470 = scalar_select %p4469, %s17, 1
        %s4471 = smul.addr %s4470, 32
        %s4472 = smul.addr %s4471, 8
        %s4473 = scalar_lea.vmem %s5, %s4472
      $region52: #{tpu_custom_call.1} parent=47 // pred_fallthru
        _
    $region48: #{tpu_custom_call.1} parent=5 // pred_fallthru
      _
  $region6: #{tpu_custom_call.1} parent=0 // loop_footer
    %s15 = sadd.s32 1, %s11
  $region7: #{tpu_custom_call.1} parent=0 // loop_footer_branch
    %10 = sbr.rel target = $region3
  $region8: #{tpu_custom_call.1} parent=0 // loop_exit
    _

</llo_original>
